<compile_context>
chip_gen: v5e
topology: v5e:2x2
jax: 0.10.0
libtpu: 0.0.40
codegen_flags: <defaults>
</compile_context>

<pallas_src>
import functools

import jax
import jax.numpy as jnp
from jax.experimental import pallas as pl
from jax.experimental.pallas import tpu as pltpu

# ---- model hyper-parameters (small, consistent with the module) -------------
BATCH = 2
INPUT_SIZE = 512          # TemporalConv(input_size=512, ...)
HIDDEN = 64               # hidden_size
NUM_CLASSES = 32
T_IN = 36                 # input temporal length
HD = HIDDEN // 2          # per-direction LSTM hidden (BiLSTMLayer divides by 2)
K_TAPS = 5                # 'K5' temporal conv kernel size

_BN_EPS = 1e-5
# eval BatchNorm1d with fresh buffers (running_mean=0, running_var=1, affine=Id).
# TODO(synk): with a trained checkpoint fold the real per-channel running stats /
#             gamma / beta into the packed conv weights & bias the same way.
_BN_SCALE = 1.0 / (1.0 + _BN_EPS) ** 0.5


# ============================ fused Pallas kernel =============================

def _slr_fused_kernel(x_ref, w1_ref, b1_ref, w2_ref, b2_ref,
                      wih_ref, wrec_ref, blstm_ref, wcls_ref,
                      feats_ref, logits_ref,
                      h1_s, h2_s, vf_s, *, batch):
    """Whole SLRModel framewise forward in one kernel.

    x_ref:    (B, T, Cin)        bf16 channels-last input
    w1_ref:   (K*Cin, H) bf16    conv1 weight, im2col-packed, BN folded
    b1_ref:   (1, H)     f32     conv1 bias, BN folded
    w2_ref:   (K*H, H)   bf16    conv2 weight, im2col-packed, BN folded
    b2_ref:   (1, H)     f32
    wih_ref:  (2, H, 8*hd) bf16  per-layer LSTM input weights, cols [fwd | bwd]
    wrec_ref: (2, 2*hd, 4*hd) bf16  per-layer recurrent weights, rows [fwd ; bwd]
    blstm_ref:(2, 1, 8*hd) f32   (b_ih + b_hh) folded, [fwd | bwd]
    wcls_ref: (H, C)     bf16    NormLinear weight, already column-normalized
    feats_ref:(T'*B, 2H) f32     lane-dense slab [visual_feat | predictions],
                                 row t*B + b (time-major)
    logits_ref:(2*T'*B, C) f32   rows 0:TB conv_logits, TB:2TB sequence_logits
    h1_s/h2_s/vf_s: VMEM scratch for the strided max-pools / transpose
    """
    B = batch
    _, T, Cin = x_ref.shape
    KC, H = w1_ref.shape
    K = KC // Cin
    T1 = T - (K - 1)          # after conv1 (K5, stride 1, no pad)
    T1p = T1 // 2             # after pool1
    T2 = T1p - (K - 1)        # after conv2
    Tp = T2 // 2              # after pool2
    TB = Tp * B
    hd = wrec_ref.shape[2] // 4
    G = 4 * hd

    # ------------------------- TemporalConv stage ----------------------------
    x = x_ref[...]                                            # (B, T, Cin) bf16
    # conv1 im2col: fold batch into M and the 5 taps into the contraction.
    xcol = jnp.concatenate(
        [x[:, k:k + T1, :].reshape(B * T1, Cin) for k in range(K)], axis=1)
    h1 = jnp.dot(xcol, w1_ref[...], preferred_element_type=jnp.float32)
    h1 = jnp.maximum(h1 + b1_ref[...], 0.0)                   # conv1 + BN + ReLU
    # MaxPool1d(k=2, s=2): two sublane-strided reads + one VPU max.
    h1_s[...] = h1                                            # (B*T1, H)
    p1 = jnp.maximum(h1_s[pl.ds(0, B * T1p, stride=2), :],
                     h1_s[pl.ds(1, B * T1p, stride=2), :])    # (B*T1p, H), row b*T1p+j

    # conv2 im2col: zero-pad the tail so every tap slice is a single aligned
    # (B*T1p, H) slice; rows with j >= T2 are garbage and discarded by pool2.
    p1pad = jnp.concatenate(
        [p1.astype(jnp.bfloat16), jnp.zeros((K - 1, H), jnp.bfloat16)], axis=0)
    pcol = jnp.concatenate([p1pad[k:k + B * T1p, :] for k in range(K)], axis=1)
    h2 = jnp.dot(pcol, w2_ref[...], preferred_element_type=jnp.float32)
    h2 = jnp.maximum(h2 + b2_ref[...], 0.0)                   # (B*T1p, H)
    h2_s[...] = h2
    half = T1p // 2
    vf_s[...] = jnp.maximum(h2_s[pl.ds(0, B * half, stride=2), :],
                            h2_s[pl.ds(1, B * half, stride=2), :])   # row b*half+t

    # pool2 output is batch-major; build the time-major (row t*B + b) visual
    # features with Tp strided 2-row reads (fused transpose, no HBM traffic).
    vf = jnp.concatenate(
        [vf_s[pl.ds(t, B, stride=half), :] for t in range(Tp)], axis=0)   # (TB, H)

    # --------------------- BiLSTM (2 layers, bidirectional) ------------------
    # Stacked-direction state layout: rows 0:B forward, rows B:2B backward.
    mask = jnp.concatenate([
        jnp.concatenate([jnp.ones((B, hd), jnp.float32),
                         jnp.zeros((B, hd), jnp.float32)], axis=1),
        jnp.concatenate([jnp.zeros((B, hd), jnp.float32),
                         jnp.ones((B, hd), jnp.float32)], axis=1)], axis=0)

    def lstm_layer(inp, layer):
        # Input projection for BOTH directions in one bf16 dot.
        xp = jnp.dot(inp.astype(jnp.bfloat16), wih_ref[layer],
                     preferred_element_type=jnp.float32) + blstm_ref[layer]  # (TB, 8hd)
        wrec = wrec_ref[layer]                                               # (2hd, 4hd)
        h = jnp.zeros((2 * B, hd), jnp.float32)
        c = jnp.zeros((2 * B, hd), jnp.float32)
        outs_f = [None] * Tp
        outs_b = [None] * Tp
        for s in range(Tp):              # fully unrolled; fwd step s, bwd step Tp-1-s
            sb = Tp - 1 - s
            xp_step = jnp.concatenate(
                [xp[s * B:(s + 1) * B, 0:G],
                 xp[sb * B:(sb + 1) * B, G:2 * G]], axis=0)                  # (2B, 4hd)
            # One recurrent dot for both directions: tile h, mask to block-diag
            # structure, multiply by stacked [W_hh_fwd ; W_hh_bwd].
            h_exp = (jnp.concatenate([h, h], axis=1) * mask).astype(jnp.bfloat16)
            g = xp_step + jnp.dot(h_exp, wrec, preferred_element_type=jnp.float32)
            i_g = jax.nn.sigmoid(g[:, 0 * hd:1 * hd])        # PyTorch order (i,f,g,o)
            f_g = jax.nn.sigmoid(g[:, 1 * hd:2 * hd])
            g_g = jnp.tanh(g[:, 2 * hd:3 * hd])
            o_g = jax.nn.sigmoid(g[:, 3 * hd:4 * hd])
            c = f_g * c + i_g * g_g
            h = o_g * jnp.tanh(c)
            outs_f[s] = h[0:B, :]
            outs_b[sb] = h[B:2 * B, :]
        # Three big concats instead of per-step assembly.
        return jnp.concatenate([jnp.concatenate(outs_f, axis=0),
                                jnp.concatenate(outs_b, axis=0)], axis=1)    # (TB, 2hd)

    y1 = lstm_layer(vf, 0)
    y2 = lstm_layer(y1, 1)

    # --------------------------- outputs --------------------------------------
    # Lane-dense (TB, 2H) = (12, 128) slab: [visual_feat | predictions].
    feats_ref[...] = jnp.concatenate([vf, y2], axis=1)
    # Shared NormLinear classifier: weight pre-normalized in glue; classify the
    # stacked [visual ; predictions] in one dot -> conv_logits + sequence_logits.
    stacked = jnp.concatenate([vf, y2], axis=0).astype(jnp.bfloat16)         # (2TB, H)
    logits_ref[...] = jnp.dot(stacked, wcls_ref[...],
                              preferred_element_type=jnp.float32)            # (2TB, C)


def slr_fused(xin, w1p, b1, w2p, b2, wih, wrec, blstm, wcls):
    """xin: (B, T, Cin) bf16 channels-last.  Returns (feats, logits)."""
    B, T, Cin = xin.shape
    KC, H = w1p.shape
    K = KC // Cin
    T1 = T - (K - 1)
    T1p = T1 // 2
    Tp = (T1p - (K - 1)) // 2
    TB = Tp * B
    C = wcls.shape[1]
    kernel = functools.partial(_slr_fused_kernel, batch=B)
    # No grid: whole arrays live in VMEM (total footprint < 1 MiB); the model is
    # launch-bound so a single invocation with full-array blocks is optimal.
    return pl.pallas_call(
        kernel,
        out_shape=(jax.ShapeDtypeStruct((TB, 2 * H), jnp.float32),
                   jax.ShapeDtypeStruct((2 * TB, C), jnp.float32)),
        scratch_shapes=[pltpu.VMEM((B * T1, H), jnp.float32),
                        pltpu.VMEM((B * T1p, H), jnp.float32),
                        pltpu.VMEM((B * (T1p // 2), H), jnp.float32)],
    )(xin, w1p, b1, w2p, b2, wih, wrec, blstm, wcls)


# ============================ glue (plain JAX) ================================

def slr_forward(params, x, len_x):
    """x: (B, 512, T) framewise features (PyTorch NCL layout), len_x: (B,) int32."""
    framewise = x                                          # framewise_features
    B = x.shape[0]
    xin = jnp.transpose(x, (0, 2, 1)).astype(jnp.bfloat16)  # (B, T, 512) channels-last

    feats, logits = slr_fused(
        xin, params['w1'], params['b1'], params['w2'], params['b2'],
        params['wih'], params['wrec'], params['blstm'], params['wcls'])

    TB = feats.shape[0]
    H = feats.shape[1] // 2
    Tp = TB // B
    C = logits.shape[1]
    feat_len = ((len_x - 4) // 2 - 4) // 2                 # update_lgt for K5 P2 K5 P2

    visual_feat = feats[:, :H].reshape(Tp, B, H)           # (T', B, H) time-major
    predictions = feats[:, H:].reshape(Tp, B, H)
    conv_logits = logits[:TB].reshape(Tp, B, C)
    sequence_logits = logits[TB:].reshape(Tp, B, C)

    return {
        'framewise_features': framewise,
        'visual_features': visual_feat,
        'temproal_features': predictions,
        'feat_len': feat_len,
        'conv_logits': conv_logits,
        'sequence_logits': sequence_logits,
        'conv_sents': None,        # TODO(synk): beam-search decode not implemented
        'recognized_sents': None,  # TODO(synk): beam-search decode not implemented
    }


def init_params(key):
    """Raw (unpacked) parameters, layouts analogous to the PyTorch module."""
    ks = jax.random.split(key, 24)
    s = 0.1
    p = {
        'conv1_w': s * jax.random.normal(ks[0], (K_TAPS, INPUT_SIZE, HIDDEN), jnp.float32),
        'conv1_b': s * jax.random.normal(ks[1], (HIDDEN,), jnp.float32),
        'conv2_w': s * jax.random.normal(ks[2], (K_TAPS, HIDDEN, HIDDEN), jnp.float32),
        'conv2_b': s * jax.random.normal(ks[3], (HIDDEN,), jnp.float32),
        # NormLinear weight (in_dim, out_dim), xavier-ish init
        'classifier_w': jax.random.normal(ks[4], (HIDDEN, NUM_CLASSES), jnp.float32)
                        * (6.0 / (HIDDEN + NUM_CLASSES)) ** 0.5,
    }
    idx = 5
    for layer in range(2):                       # layer0 / layer1 input dims are both H
        for tag in ('f', 'b'):                   # forward / backward direction
            p[f'l{layer}_wih_{tag}'] = s * jax.random.normal(ks[idx], (HIDDEN, 4 * HD), jnp.float32); idx += 1
            p[f'l{layer}_whh_{tag}'] = s * jax.random.normal(ks[idx], (HD, 4 * HD), jnp.float32); idx += 1
            # (b_ih + b_hh) folded into one bias per direction
            p[f'l{layer}_b_{tag}'] = s * jax.random.normal(ks[idx], (4 * HD,), jnp.float32); idx += 1
    return p


def pack_params(p):
    """One-time, glue-side packing: BN folding, im2col weight packing, direction
    stacking, classifier column-normalization, and bf16 casts of all MXU weights."""
    bf16 = jnp.bfloat16
    packed = {
        'w1': (p['conv1_w'] * _BN_SCALE).reshape(K_TAPS * INPUT_SIZE, HIDDEN).astype(bf16),
        'b1': (p['conv1_b'] * _BN_SCALE).reshape(1, HIDDEN).astype(jnp.float32),
        'w2': (p['conv2_w'] * _BN_SCALE).reshape(K_TAPS * HIDDEN, HIDDEN).astype(bf16),
        'b2': (p['conv2_b'] * _BN_SCALE).reshape(1, HIDDEN).astype(jnp.float32),
    }
    wih, wrec, bl = [], [], []
    for layer in range(2):
        wih.append(jnp.concatenate([p[f'l{layer}_wih_f'], p[f'l{layer}_wih_b']], axis=1))
        wrec.append(jnp.concatenate([p[f'l{layer}_whh_f'], p[f'l{layer}_whh_b']], axis=0))
        bl.append(jnp.concatenate([p[f'l{layer}_b_f'], p[f'l{layer}_b_b']]).reshape(1, 8 * HD))
    packed['wih'] = jnp.stack(wih).astype(bf16)             # (2, H, 8*HD)  [fwd | bwd]
    packed['wrec'] = jnp.stack(wrec).astype(bf16)           # (2, 2*HD, 4*HD) [fwd ; bwd]
    packed['blstm'] = jnp.stack(bl).astype(jnp.float32)     # (2, 1, 8*HD)
    # F.normalize(weight, dim=0): unit-norm each output column over in_dim.
    w = p['classifier_w']
    col_norm = jnp.maximum(jnp.linalg.norm(w, axis=0, keepdims=True), 1e-12)
    packed['wcls'] = (w / col_norm).astype(bf16)            # (H, C) pre-normalized
    return packed


if __name__ == "__main__":
    key = jax.random.PRNGKey(0)
    pkey, xkey = jax.random.split(key)
    raw = init_params(pkey)
    params = pack_params(raw)

    x = jax.random.normal(xkey, (BATCH, INPUT_SIZE, T_IN), jnp.float32)
    len_x = jnp.array([T_IN, T_IN], dtype=jnp.int32)

    out = jax.jit(slr_forward)(params, x, len_x)
    out = jax.block_until_ready(out)

    Tp = ((T_IN - 4) // 2 - 4) // 2
    assert out['visual_features'].shape == (Tp, BATCH, HIDDEN)
    assert out['temproal_features'].shape == (Tp, BATCH, HIDDEN)
    assert out['conv_logits'].shape == (Tp, BATCH, NUM_CLASSES)
    assert out['sequence_logits'].shape == (Tp, BATCH, NUM_CLASSES)
    assert out['feat_len'].shape == (BATCH,)
    assert int(out['feat_len'][0]) == Tp
    assert bool(jnp.all(jnp.isfinite(out['visual_features'])))
    assert bool(jnp.all(jnp.isfinite(out['temproal_features'])))
    assert bool(jnp.all(jnp.isfinite(out['conv_logits'])))
    assert bool(jnp.all(jnp.isfinite(out['sequence_logits'])))
    print("KERNEL_OK")
</pallas_src>

<mosaic_0001>
module attributes {stable_mosaic.version = 11 : i64} {
  func.func @_slr_fused_kernel(%arg0: memref<2x36x512xbf16, #tpu.memory_space<vmem>>, %arg1: memref<2560x64xbf16, #tpu.memory_space<vmem>>, %arg2: memref<1x64xf32, #tpu.memory_space<vmem>>, %arg3: memref<320x64xbf16, #tpu.memory_space<vmem>>, %arg4: memref<1x64xf32, #tpu.memory_space<vmem>>, %arg5: memref<2x64x256xbf16, #tpu.memory_space<vmem>>, %arg6: memref<2x64x128xbf16, #tpu.memory_space<vmem>>, %arg7: memref<2x1x256xf32, #tpu.memory_space<vmem>>, %arg8: memref<64x32xbf16, #tpu.memory_space<vmem>>, %arg9: memref<12x128xf32, #tpu.memory_space<vmem>>, %arg10: memref<24x32xf32, #tpu.memory_space<vmem>>, %arg11: memref<64x64xf32, #tpu.memory_space<vmem>>, %arg12: memref<32x64xf32, #tpu.memory_space<vmem>>, %arg13: memref<16x64xf32, #tpu.memory_space<vmem>>) attributes {dimension_semantics = [], scalar_prefetch = 0 : i64, scratch_operands = 3 : i64, tpu.core_type = #tpu.core_type<tc>} {
    %c0 = arith.constant 0 : index
    %c0_0 = arith.constant 0 : index
    %c0_1 = arith.constant 0 : index
    %0 = vector.load %arg0[%c0, %c0_0, %c0_1] : memref<2x36x512xbf16, #tpu.memory_space<vmem>>, vector<2x36x512xbf16>
    %1 = vector.extract_strided_slice %0 {offsets = [0, 0, 0], sizes = [2, 32, 512], strides = [1, 1, 1]} : vector<2x36x512xbf16> to vector<2x32x512xbf16>
    %2 = vector.shape_cast %1 : vector<2x32x512xbf16> to vector<64x512xbf16>
    %3 = vector.extract_strided_slice %0 {offsets = [0, 1, 0], sizes = [2, 32, 512], strides = [1, 1, 1]} : vector<2x36x512xbf16> to vector<2x32x512xbf16>
    %4 = vector.shape_cast %3 : vector<2x32x512xbf16> to vector<64x512xbf16>
    %5 = vector.extract_strided_slice %0 {offsets = [0, 2, 0], sizes = [2, 32, 512], strides = [1, 1, 1]} : vector<2x36x512xbf16> to vector<2x32x512xbf16>
    %6 = vector.shape_cast %5 : vector<2x32x512xbf16> to vector<64x512xbf16>
    %7 = vector.extract_strided_slice %0 {offsets = [0, 3, 0], sizes = [2, 32, 512], strides = [1, 1, 1]} : vector<2x36x512xbf16> to vector<2x32x512xbf16>
    %8 = vector.shape_cast %7 : vector<2x32x512xbf16> to vector<64x512xbf16>
    %9 = vector.extract_strided_slice %0 {offsets = [0, 4, 0], sizes = [2, 32, 512], strides = [1, 1, 1]} : vector<2x36x512xbf16> to vector<2x32x512xbf16>
    %10 = vector.shape_cast %9 : vector<2x32x512xbf16> to vector<64x512xbf16>
    %11 = tpu.concatenate %2, %4, %6, %8, %10 in 1 : vector<64x512xbf16>, vector<64x512xbf16>, vector<64x512xbf16>, vector<64x512xbf16>, vector<64x512xbf16> -> vector<64x2560xbf16>
    %c0_2 = arith.constant 0 : index
    %c0_3 = arith.constant 0 : index
    %12 = vector.load %arg1[%c0_2, %c0_3] : memref<2560x64xbf16, #tpu.memory_space<vmem>>, vector<2560x64xbf16>
    %cst = arith.constant dense<0.000000e+00> : vector<64x64xf32>
    %13 = tpu.matmul %11, %12, %cst {dimension_numbers = #tpu.dot_dimension_numbers<[1], [0], [0], [1], [0, 0, 1, 1], [], []>} : vector<64x2560xbf16>, vector<2560x64xbf16>, vector<64x64xf32> -> vector<64x64xf32>
    %c0_4 = arith.constant 0 : index
    %c0_5 = arith.constant 0 : index
    %14 = vector.load %arg2[%c0_4, %c0_5] : memref<1x64xf32, #tpu.memory_space<vmem>>, vector<1x64xf32>
    %15 = vector.broadcast %14 : vector<1x64xf32> to vector<64x64xf32>
    %16 = arith.addf %13, %15 : vector<64x64xf32>
    %cst_6 = arith.constant 0.000000e+00 : f32
    %17 = vector.broadcast %cst_6 : f32 to vector<64x64xf32>
    %18 = arith.maximumf %16, %17 : vector<64x64xf32>
    %c0_7 = arith.constant 0 : index
    %c0_8 = arith.constant 0 : index
    %19 = vector.load %arg11[%c0_7, %c0_8] : memref<64x64xf32, #tpu.memory_space<vmem>>, vector<64x64xf32>
    tpu.vector_store %arg11[%c0_7, %c0_8], %18 {strides = array<i32>} : memref<64x64xf32, #tpu.memory_space<vmem>>, vector<64x64xf32>,
    %c0_9 = arith.constant 0 : index
    %c0_10 = arith.constant 0 : index
    %20 = tpu.strided_load %arg11[%c0_9, %c0_10] {strides = array<i32: 2, 1>} : memref<64x64xf32, #tpu.memory_space<vmem>>, vector<32x64xf32>
    %c1 = arith.constant 1 : index
    %c0_11 = arith.constant 0 : index
    %21 = tpu.strided_load %arg11[%c1, %c0_11] {strides = array<i32: 2, 1>} : memref<64x64xf32, #tpu.memory_space<vmem>>, vector<32x64xf32>
    %22 = arith.maximumf %20, %21 : vector<32x64xf32>
    %23 = arith.truncf %22 : vector<32x64xf32> to vector<32x64xbf16>
    %cst_12 = arith.constant 0.000000e+00 : bf16
    %24 = vector.broadcast %cst_12 : bf16 to vector<4x64xbf16>
    %25 = tpu.concatenate %23, %24 in 0 : vector<32x64xbf16>, vector<4x64xbf16> -> vector<36x64xbf16>
    %26 = vector.extract_strided_slice %25 {offsets = [0, 0], sizes = [32, 64], strides = [1, 1]} : vector<36x64xbf16> to vector<32x64xbf16>
    %27 = vector.extract_strided_slice %25 {offsets = [1, 0], sizes = [32, 64], strides = [1, 1]} : vector<36x64xbf16> to vector<32x64xbf16>
    %28 = vector.extract_strided_slice %25 {offsets = [2, 0], sizes = [32, 64], strides = [1, 1]} : vector<36x64xbf16> to vector<32x64xbf16>
    %29 = vector.extract_strided_slice %25 {offsets = [3, 0], sizes = [32, 64], strides = [1, 1]} : vector<36x64xbf16> to vector<32x64xbf16>
    %30 = vector.extract_strided_slice %25 {offsets = [4, 0], sizes = [32, 64], strides = [1, 1]} : vector<36x64xbf16> to vector<32x64xbf16>
    %31 = tpu.concatenate %26, %27, %28, %29, %30 in 1 : vector<32x64xbf16>, vector<32x64xbf16>, vector<32x64xbf16>, vector<32x64xbf16>, vector<32x64xbf16> -> vector<32x320xbf16>
    %c0_13 = arith.constant 0 : index
    %c0_14 = arith.constant 0 : index
    %32 = vector.load %arg3[%c0_13, %c0_14] : memref<320x64xbf16, #tpu.memory_space<vmem>>, vector<320x64xbf16>
    %cst_15 = arith.constant dense<0.000000e+00> : vector<32x64xf32>
    %33 = tpu.matmul %31, %32, %cst_15 {dimension_numbers = #tpu.dot_dimension_numbers<[1], [0], [0], [1], [0, 0, 1, 1], [], []>} : vector<32x320xbf16>, vector<320x64xbf16>, vector<32x64xf32> -> vector<32x64xf32>
    %c0_16 = arith.constant 0 : index
    %c0_17 = arith.constant 0 : index
    %34 = vector.load %arg4[%c0_16, %c0_17] : memref<1x64xf32, #tpu.memory_space<vmem>>, vector<1x64xf32>
    %35 = vector.broadcast %34 : vector<1x64xf32> to vector<32x64xf32>
    %36 = arith.addf %33, %35 : vector<32x64xf32>
    %cst_18 = arith.constant 0.000000e+00 : f32
    %37 = vector.broadcast %cst_18 : f32 to vector<32x64xf32>
    %38 = arith.maximumf %36, %37 : vector<32x64xf32>
    %c0_19 = arith.constant 0 : index
    %c0_20 = arith.constant 0 : index
    %39 = vector.load %arg12[%c0_19, %c0_20] : memref<32x64xf32, #tpu.memory_space<vmem>>, vector<32x64xf32>
    tpu.vector_store %arg12[%c0_19, %c0_20], %38 {strides = array<i32>} : memref<32x64xf32, #tpu.memory_space<vmem>>, vector<32x64xf32>,
    %c0_21 = arith.constant 0 : index
    %c0_22 = arith.constant 0 : index
    %40 = tpu.strided_load %arg12[%c0_21, %c0_22] {strides = array<i32: 2, 1>} : memref<32x64xf32, #tpu.memory_space<vmem>>, vector<16x64xf32>
    %c1_23 = arith.constant 1 : index
    %c0_24 = arith.constant 0 : index
    %41 = tpu.strided_load %arg12[%c1_23, %c0_24] {strides = array<i32: 2, 1>} : memref<32x64xf32, #tpu.memory_space<vmem>>, vector<16x64xf32>
    %42 = arith.maximumf %40, %41 : vector<16x64xf32>
    %c0_25 = arith.constant 0 : index
    %c0_26 = arith.constant 0 : index
    %43 = vector.load %arg13[%c0_25, %c0_26] : memref<16x64xf32, #tpu.memory_space<vmem>>, vector<16x64xf32>
    tpu.vector_store %arg13[%c0_25, %c0_26], %42 {strides = array<i32>} : memref<16x64xf32, #tpu.memory_space<vmem>>, vector<16x64xf32>,
    %c0_27 = arith.constant 0 : index
    %c0_28 = arith.constant 0 : index
    %44 = tpu.strided_load %arg13[%c0_27, %c0_28] {strides = array<i32: 8, 1>} : memref<16x64xf32, #tpu.memory_space<vmem>>, vector<2x64xf32>
    %c1_29 = arith.constant 1 : index
    %c0_30 = arith.constant 0 : index
    %45 = tpu.strided_load %arg13[%c1_29, %c0_30] {strides = array<i32: 8, 1>} : memref<16x64xf32, #tpu.memory_space<vmem>>, vector<2x64xf32>
    %c2 = arith.constant 2 : index
    %c0_31 = arith.constant 0 : index
    %46 = tpu.strided_load %arg13[%c2, %c0_31] {strides = array<i32: 8, 1>} : memref<16x64xf32, #tpu.memory_space<vmem>>, vector<2x64xf32>
    %c3 = arith.constant 3 : index
    %c0_32 = arith.constant 0 : index
    %47 = tpu.strided_load %arg13[%c3, %c0_32] {strides = array<i32: 8, 1>} : memref<16x64xf32, #tpu.memory_space<vmem>>, vector<2x64xf32>
    %c4 = arith.constant 4 : index
    %c0_33 = arith.constant 0 : index
    %48 = tpu.strided_load %arg13[%c4, %c0_33] {strides = array<i32: 8, 1>} : memref<16x64xf32, #tpu.memory_space<vmem>>, vector<2x64xf32>
    %c5 = arith.constant 5 : index
    %c0_34 = arith.constant 0 : index
    %49 = tpu.strided_load %arg13[%c5, %c0_34] {strides = array<i32: 8, 1>} : memref<16x64xf32, #tpu.memory_space<vmem>>, vector<2x64xf32>
    %50 = tpu.concatenate %44, %45, %46, %47, %48, %49 in 0 : vector<2x64xf32>, vector<2x64xf32>, vector<2x64xf32>, vector<2x64xf32>, vector<2x64xf32>, vector<2x64xf32> -> vector<12x64xf32>
    %cst_35 = arith.constant 1.000000e+00 : f32
    %51 = vector.broadcast %cst_35 : f32 to vector<2x32xf32>
    %cst_36 = arith.constant 0.000000e+00 : f32
    %52 = vector.broadcast %cst_36 : f32 to vector<2x32xf32>
    %53 = tpu.concatenate %51, %52 in 1 : vector<2x32xf32>, vector<2x32xf32> -> vector<2x64xf32>
    %cst_37 = arith.constant 0.000000e+00 : f32
    %54 = vector.broadcast %cst_37 : f32 to vector<2x32xf32>
    %cst_38 = arith.constant 1.000000e+00 : f32
    %55 = vector.broadcast %cst_38 : f32 to vector<2x32xf32>
    %56 = tpu.concatenate %54, %55 in 1 : vector<2x32xf32>, vector<2x32xf32> -> vector<2x64xf32>
    %57 = tpu.concatenate %53, %56 in 0 : vector<2x64xf32>, vector<2x64xf32> -> vector<4x64xf32>
    %58 = arith.truncf %50 : vector<12x64xf32> to vector<12x64xbf16>
    %c0_39 = arith.constant 0 : index
    %c0_40 = arith.constant 0 : index
    %c0_41 = arith.constant 0 : index
    %59 = vector.load %arg5[%c0_39, %c0_40, %c0_41] : memref<2x64x256xbf16, #tpu.memory_space<vmem>>, vector<1x64x256xbf16>
    %60 = vector.shape_cast %59 : vector<1x64x256xbf16> to vector<64x256xbf16>
    %cst_42 = arith.constant dense<0.000000e+00> : vector<12x256xf32>
    %61 = tpu.matmul %58, %60, %cst_42 {dimension_numbers = #tpu.dot_dimension_numbers<[1], [0], [0], [1], [0, 0, 1, 1], [], []>} : vector<12x64xbf16>, vector<64x256xbf16>, vector<12x256xf32> -> vector<12x256xf32>
    %c0_43 = arith.constant 0 : index
    %c0_44 = arith.constant 0 : index
    %c0_45 = arith.constant 0 : index
    %62 = vector.load %arg7[%c0_43, %c0_44, %c0_45] : memref<2x1x256xf32, #tpu.memory_space<vmem>>, vector<1x1x256xf32>
    %63 = vector.shape_cast %62 : vector<1x1x256xf32> to vector<1x256xf32>
    %64 = vector.broadcast %63 : vector<1x256xf32> to vector<12x256xf32>
    %65 = arith.addf %61, %64 : vector<12x256xf32>
    %c0_46 = arith.constant 0 : index
    %c0_47 = arith.constant 0 : index
    %c0_48 = arith.constant 0 : index
    %66 = vector.load %arg6[%c0_46, %c0_47, %c0_48] : memref<2x64x128xbf16, #tpu.memory_space<vmem>>, vector<1x64x128xbf16>
    %67 = vector.shape_cast %66 : vector<1x64x128xbf16> to vector<64x128xbf16>
    %cst_49 = arith.constant 0.000000e+00 : f32
    %68 = vector.broadcast %cst_49 : f32 to vector<4x32xf32>
    %cst_50 = arith.constant 0.000000e+00 : f32
    %69 = vector.broadcast %cst_50 : f32 to vector<4x32xf32>
    %70 = vector.extract_strided_slice %65 {offsets = [0, 0], sizes = [2, 128], strides = [1, 1]} : vector<12x256xf32> to vector<2x128xf32>
    %71 = vector.extract_strided_slice %65 {offsets = [10, 128], sizes = [2, 128], strides = [1, 1]} : vector<12x256xf32> to vector<2x128xf32>
    %72 = tpu.concatenate %70, %71 in 0 : vector<2x128xf32>, vector<2x128xf32> -> vector<4x128xf32>
    %73 = tpu.concatenate %68, %68 in 1 : vector<4x32xf32>, vector<4x32xf32> -> vector<4x64xf32>
    %74 = arith.mulf %73, %57 : vector<4x64xf32>
    %75 = arith.truncf %74 : vector<4x64xf32> to vector<4x64xbf16>
    %cst_51 = arith.constant dense<0.000000e+00> : vector<4x128xf32>
    %76 = tpu.matmul %75, %67, %cst_51 {dimension_numbers = #tpu.dot_dimension_numbers<[1], [0], [0], [1], [0, 0, 1, 1], [], []>} : vector<4x64xbf16>, vector<64x128xbf16>, vector<4x128xf32> -> vector<4x128xf32>
    %77 = arith.addf %72, %76 : vector<4x128xf32>
    %78 = vector.extract_strided_slice %77 {offsets = [0, 0], sizes = [4, 32], strides = [1, 1]} : vector<4x128xf32> to vector<4x32xf32>
    %79 = arith.negf %78 : vector<4x32xf32>
    %80 = math.exp %79 : vector<4x32xf32>
    %cst_52 = arith.constant 1.000000e+00 : f32
    %81 = vector.broadcast %cst_52 : f32 to vector<4x32xf32>
    %82 = arith.addf %81, %80 : vector<4x32xf32>
    %83 = arith.divf %81, %82 : vector<4x32xf32>
    %84 = vector.extract_strided_slice %77 {offsets = [0, 32], sizes = [4, 32], strides = [1, 1]} : vector<4x128xf32> to vector<4x32xf32>
    %85 = arith.negf %84 : vector<4x32xf32>
    %86 = math.exp %85 : vector<4x32xf32>
    %cst_53 = arith.constant 1.000000e+00 : f32
    %87 = vector.broadcast %cst_53 : f32 to vector<4x32xf32>
    %88 = arith.addf %87, %86 : vector<4x32xf32>
    %89 = arith.divf %87, %88 : vector<4x32xf32>
    %90 = vector.extract_strided_slice %77 {offsets = [0, 64], sizes = [4, 32], strides = [1, 1]} : vector<4x128xf32> to vector<4x32xf32>
    %91 = math.tanh %90 : vector<4x32xf32>
    %92 = vector.extract_strided_slice %77 {offsets = [0, 96], sizes = [4, 32], strides = [1, 1]} : vector<4x128xf32> to vector<4x32xf32>
    %93 = arith.negf %92 : vector<4x32xf32>
    %94 = math.exp %93 : vector<4x32xf32>
    %cst_54 = arith.constant 1.000000e+00 : f32
    %95 = vector.broadcast %cst_54 : f32 to vector<4x32xf32>
    %96 = arith.addf %95, %94 : vector<4x32xf32>
    %97 = arith.divf %95, %96 : vector<4x32xf32>
    %98 = arith.mulf %89, %69 : vector<4x32xf32>
    %99 = arith.mulf %83, %91 : vector<4x32xf32>
    %100 = arith.addf %98, %99 : vector<4x32xf32>
    %101 = math.tanh %100 : vector<4x32xf32>
    %102 = arith.mulf %97, %101 : vector<4x32xf32>
    %103 = vector.extract_strided_slice %102 {offsets = [0, 0], sizes = [2, 32], strides = [1, 1]} : vector<4x32xf32> to vector<2x32xf32>
    %104 = vector.extract_strided_slice %102 {offsets = [2, 0], sizes = [2, 32], strides = [1, 1]} : vector<4x32xf32> to vector<2x32xf32>
    %105 = vector.extract_strided_slice %65 {offsets = [2, 0], sizes = [2, 128], strides = [1, 1]} : vector<12x256xf32> to vector<2x128xf32>
    %106 = vector.extract_strided_slice %65 {offsets = [8, 128], sizes = [2, 128], strides = [1, 1]} : vector<12x256xf32> to vector<2x128xf32>
    %107 = tpu.concatenate %105, %106 in 0 : vector<2x128xf32>, vector<2x128xf32> -> vector<4x128xf32>
    %108 = tpu.concatenate %102, %102 in 1 : vector<4x32xf32>, vector<4x32xf32> -> vector<4x64xf32>
    %109 = arith.mulf %108, %57 : vector<4x64xf32>
    %110 = arith.truncf %109 : vector<4x64xf32> to vector<4x64xbf16>
    %cst_55 = arith.constant dense<0.000000e+00> : vector<4x128xf32>
    %111 = tpu.matmul %110, %67, %cst_55 {dimension_numbers = #tpu.dot_dimension_numbers<[1], [0], [0], [1], [0, 0, 1, 1], [], []>} : vector<4x64xbf16>, vector<64x128xbf16>, vector<4x128xf32> -> vector<4x128xf32>
    %112 = arith.addf %107, %111 : vector<4x128xf32>
    %113 = vector.extract_strided_slice %112 {offsets = [0, 0], sizes = [4, 32], strides = [1, 1]} : vector<4x128xf32> to vector<4x32xf32>
    %114 = arith.negf %113 : vector<4x32xf32>
    %115 = math.exp %114 : vector<4x32xf32>
    %cst_56 = arith.constant 1.000000e+00 : f32
    %116 = vector.broadcast %cst_56 : f32 to vector<4x32xf32>
    %117 = arith.addf %116, %115 : vector<4x32xf32>
    %118 = arith.divf %116, %117 : vector<4x32xf32>
    %119 = vector.extract_strided_slice %112 {offsets = [0, 32], sizes = [4, 32], strides = [1, 1]} : vector<4x128xf32> to vector<4x32xf32>
    %120 = arith.negf %119 : vector<4x32xf32>
    %121 = math.exp %120 : vector<4x32xf32>
    %cst_57 = arith.constant 1.000000e+00 : f32
    %122 = vector.broadcast %cst_57 : f32 to vector<4x32xf32>
    %123 = arith.addf %122, %121 : vector<4x32xf32>
    %124 = arith.divf %122, %123 : vector<4x32xf32>
    %125 = vector.extract_strided_slice %112 {offsets = [0, 64], sizes = [4, 32], strides = [1, 1]} : vector<4x128xf32> to vector<4x32xf32>
    %126 = math.tanh %125 : vector<4x32xf32>
    %127 = vector.extract_strided_slice %112 {offsets = [0, 96], sizes = [4, 32], strides = [1, 1]} : vector<4x128xf32> to vector<4x32xf32>
    %128 = arith.negf %127 : vector<4x32xf32>
    %129 = math.exp %128 : vector<4x32xf32>
    %cst_58 = arith.constant 1.000000e+00 : f32
    %130 = vector.broadcast %cst_58 : f32 to vector<4x32xf32>
    %131 = arith.addf %130, %129 : vector<4x32xf32>
    %132 = arith.divf %130, %131 : vector<4x32xf32>
    %133 = arith.mulf %124, %100 : vector<4x32xf32>
    %134 = arith.mulf %118, %126 : vector<4x32xf32>
    %135 = arith.addf %133, %134 : vector<4x32xf32>
    %136 = math.tanh %135 : vector<4x32xf32>
    %137 = arith.mulf %132, %136 : vector<4x32xf32>
    %138 = vector.extract_strided_slice %137 {offsets = [0, 0], sizes = [2, 32], strides = [1, 1]} : vector<4x32xf32> to vector<2x32xf32>
    %139 = vector.extract_strided_slice %137 {offsets = [2, 0], sizes = [2, 32], strides = [1, 1]} : vector<4x32xf32> to vector<2x32xf32>
    %140 = vector.extract_strided_slice %65 {offsets = [4, 0], sizes = [2, 128], strides = [1, 1]} : vector<12x256xf32> to vector<2x128xf32>
    %141 = vector.extract_strided_slice %65 {offsets = [6, 128], sizes = [2, 128], strides = [1, 1]} : vector<12x256xf32> to vector<2x128xf32>
    %142 = tpu.concatenate %140, %141 in 0 : vector<2x128xf32>, vector<2x128xf32> -> vector<4x128xf32>
    %143 = tpu.concatenate %137, %137 in 1 : vector<4x32xf32>, vector<4x32xf32> -> vector<4x64xf32>
    %144 = arith.mulf %143, %57 : vector<4x64xf32>
    %145 = arith.truncf %144 : vector<4x64xf32> to vector<4x64xbf16>
    %cst_59 = arith.constant dense<0.000000e+00> : vector<4x128xf32>
    %146 = tpu.matmul %145, %67, %cst_59 {dimension_numbers = #tpu.dot_dimension_numbers<[1], [0], [0], [1], [0, 0, 1, 1], [], []>} : vector<4x64xbf16>, vector<64x128xbf16>, vector<4x128xf32> -> vector<4x128xf32>
    %147 = arith.addf %142, %146 : vector<4x128xf32>
    %148 = vector.extract_strided_slice %147 {offsets = [0, 0], sizes = [4, 32], strides = [1, 1]} : vector<4x128xf32> to vector<4x32xf32>
    %149 = arith.negf %148 : vector<4x32xf32>
    %150 = math.exp %149 : vector<4x32xf32>
    %cst_60 = arith.constant 1.000000e+00 : f32
    %151 = vector.broadcast %cst_60 : f32 to vector<4x32xf32>
    %152 = arith.addf %151, %150 : vector<4x32xf32>
    %153 = arith.divf %151, %152 : vector<4x32xf32>
    %154 = vector.extract_strided_slice %147 {offsets = [0, 32], sizes = [4, 32], strides = [1, 1]} : vector<4x128xf32> to vector<4x32xf32>
    %155 = arith.negf %154 : vector<4x32xf32>
    %156 = math.exp %155 : vector<4x32xf32>
    %cst_61 = arith.constant 1.000000e+00 : f32
    %157 = vector.broadcast %cst_61 : f32 to vector<4x32xf32>
    %158 = arith.addf %157, %156 : vector<4x32xf32>
    %159 = arith.divf %157, %158 : vector<4x32xf32>
    %160 = vector.extract_strided_slice %147 {offsets = [0, 64], sizes = [4, 32], strides = [1, 1]} : vector<4x128xf32> to vector<4x32xf32>
    %161 = math.tanh %160 : vector<4x32xf32>
    %162 = vector.extract_strided_slice %147 {offsets = [0, 96], sizes = [4, 32], strides = [1, 1]} : vector<4x128xf32> to vector<4x32xf32>
    %163 = arith.negf %162 : vector<4x32xf32>
    %164 = math.exp %163 : vector<4x32xf32>
    %cst_62 = arith.constant 1.000000e+00 : f32
    %165 = vector.broadcast %cst_62 : f32 to vector<4x32xf32>
    %166 = arith.addf %165, %164 : vector<4x32xf32>
    %167 = arith.divf %165, %166 : vector<4x32xf32>
    %168 = arith.mulf %159, %135 : vector<4x32xf32>
    %169 = arith.mulf %153, %161 : vector<4x32xf32>
    %170 = arith.addf %168, %169 : vector<4x32xf32>
    %171 = math.tanh %170 : vector<4x32xf32>
    %172 = arith.mulf %167, %171 : vector<4x32xf32>
    %173 = vector.extract_strided_slice %172 {offsets = [0, 0], sizes = [2, 32], strides = [1, 1]} : vector<4x32xf32> to vector<2x32xf32>
    %174 = vector.extract_strided_slice %172 {offsets = [2, 0], sizes = [2, 32], strides = [1, 1]} : vector<4x32xf32> to vector<2x32xf32>
    %175 = vector.extract_strided_slice %65 {offsets = [6, 0], sizes = [2, 128], strides = [1, 1]} : vector<12x256xf32> to vector<2x128xf32>
    %176 = vector.extract_strided_slice %65 {offsets = [4, 128], sizes = [2, 128], strides = [1, 1]} : vector<12x256xf32> to vector<2x128xf32>
    %177 = tpu.concatenate %175, %176 in 0 : vector<2x128xf32>, vector<2x128xf32> -> vector<4x128xf32>
    %178 = tpu.concatenate %172, %172 in 1 : vector<4x32xf32>, vector<4x32xf32> -> vector<4x64xf32>
    %179 = arith.mulf %178, %57 : vector<4x64xf32>
    %180 = arith.truncf %179 : vector<4x64xf32> to vector<4x64xbf16>
    %cst_63 = arith.constant dense<0.000000e+00> : vector<4x128xf32>
    %181 = tpu.matmul %180, %67, %cst_63 {dimension_numbers = #tpu.dot_dimension_numbers<[1], [0], [0], [1], [0, 0, 1, 1], [], []>} : vector<4x64xbf16>, vector<64x128xbf16>, vector<4x128xf32> -> vector<4x128xf32>
    %182 = arith.addf %177, %181 : vector<4x128xf32>
    %183 = vector.extract_strided_slice %182 {offsets = [0, 0], sizes = [4, 32], strides = [1, 1]} : vector<4x128xf32> to vector<4x32xf32>
    %184 = arith.negf %183 : vector<4x32xf32>
    %185 = math.exp %184 : vector<4x32xf32>
    %cst_64 = arith.constant 1.000000e+00 : f32
    %186 = vector.broadcast %cst_64 : f32 to vector<4x32xf32>
    %187 = arith.addf %186, %185 : vector<4x32xf32>
    %188 = arith.divf %186, %187 : vector<4x32xf32>
    %189 = vector.extract_strided_slice %182 {offsets = [0, 32], sizes = [4, 32], strides = [1, 1]} : vector<4x128xf32> to vector<4x32xf32>
    %190 = arith.negf %189 : vector<4x32xf32>
    %191 = math.exp %190 : vector<4x32xf32>
    %cst_65 = arith.constant 1.000000e+00 : f32
    %192 = vector.broadcast %cst_65 : f32 to vector<4x32xf32>
    %193 = arith.addf %192, %191 : vector<4x32xf32>
    %194 = arith.divf %192, %193 : vector<4x32xf32>
    %195 = vector.extract_strided_slice %182 {offsets = [0, 64], sizes = [4, 32], strides = [1, 1]} : vector<4x128xf32> to vector<4x32xf32>
    %196 = math.tanh %195 : vector<4x32xf32>
    %197 = vector.extract_strided_slice %182 {offsets = [0, 96], sizes = [4, 32], strides = [1, 1]} : vector<4x128xf32> to vector<4x32xf32>
    %198 = arith.negf %197 : vector<4x32xf32>
    %199 = math.exp %198 : vector<4x32xf32>
    %cst_66 = arith.constant 1.000000e+00 : f32
    %200 = vector.broadcast %cst_66 : f32 to vector<4x32xf32>
    %201 = arith.addf %200, %199 : vector<4x32xf32>
    %202 = arith.divf %200, %201 : vector<4x32xf32>
    %203 = arith.mulf %194, %170 : vector<4x32xf32>
    %204 = arith.mulf %188, %196 : vector<4x32xf32>
    %205 = arith.addf %203, %204 : vector<4x32xf32>
    %206 = math.tanh %205 : vector<4x32xf32>
    %207 = arith.mulf %202, %206 : vector<4x32xf32>
    %208 = vector.extract_strided_slice %207 {offsets = [0, 0], sizes = [2, 32], strides = [1, 1]} : vector<4x32xf32> to vector<2x32xf32>
    %209 = vector.extract_strided_slice %207 {offsets = [2, 0], sizes = [2, 32], strides = [1, 1]} : vector<4x32xf32> to vector<2x32xf32>
    %210 = vector.extract_strided_slice %65 {offsets = [8, 0], sizes = [2, 128], strides = [1, 1]} : vector<12x256xf32> to vector<2x128xf32>
    %211 = vector.extract_strided_slice %65 {offsets = [2, 128], sizes = [2, 128], strides = [1, 1]} : vector<12x256xf32> to vector<2x128xf32>
    %212 = tpu.concatenate %210, %211 in 0 : vector<2x128xf32>, vector<2x128xf32> -> vector<4x128xf32>
    %213 = tpu.concatenate %207, %207 in 1 : vector<4x32xf32>, vector<4x32xf32> -> vector<4x64xf32>
    %214 = arith.mulf %213, %57 : vector<4x64xf32>
    %215 = arith.truncf %214 : vector<4x64xf32> to vector<4x64xbf16>
    %cst_67 = arith.constant dense<0.000000e+00> : vector<4x128xf32>
    %216 = tpu.matmul %215, %67, %cst_67 {dimension_numbers = #tpu.dot_dimension_numbers<[1], [0], [0], [1], [0, 0, 1, 1], [], []>} : vector<4x64xbf16>, vector<64x128xbf16>, vector<4x128xf32> -> vector<4x128xf32>
    %217 = arith.addf %212, %216 : vector<4x128xf32>
    %218 = vector.extract_strided_slice %217 {offsets = [0, 0], sizes = [4, 32], strides = [1, 1]} : vector<4x128xf32> to vector<4x32xf32>
    %219 = arith.negf %218 : vector<4x32xf32>
    %220 = math.exp %219 : vector<4x32xf32>
    %cst_68 = arith.constant 1.000000e+00 : f32
    %221 = vector.broadcast %cst_68 : f32 to vector<4x32xf32>
    %222 = arith.addf %221, %220 : vector<4x32xf32>
    %223 = arith.divf %221, %222 : vector<4x32xf32>
    %224 = vector.extract_strided_slice %217 {offsets = [0, 32], sizes = [4, 32], strides = [1, 1]} : vector<4x128xf32> to vector<4x32xf32>
    %225 = arith.negf %224 : vector<4x32xf32>
    %226 = math.exp %225 : vector<4x32xf32>
    %cst_69 = arith.constant 1.000000e+00 : f32
    %227 = vector.broadcast %cst_69 : f32 to vector<4x32xf32>
    %228 = arith.addf %227, %226 : vector<4x32xf32>
    %229 = arith.divf %227, %228 : vector<4x32xf32>
    %230 = vector.extract_strided_slice %217 {offsets = [0, 64], sizes = [4, 32], strides = [1, 1]} : vector<4x128xf32> to vector<4x32xf32>
    %231 = math.tanh %230 : vector<4x32xf32>
    %232 = vector.extract_strided_slice %217 {offsets = [0, 96], sizes = [4, 32], strides = [1, 1]} : vector<4x128xf32> to vector<4x32xf32>
    %233 = arith.negf %232 : vector<4x32xf32>
    %234 = math.exp %233 : vector<4x32xf32>
    %cst_70 = arith.constant 1.000000e+00 : f32
    %235 = vector.broadcast %cst_70 : f32 to vector<4x32xf32>
    %236 = arith.addf %235, %234 : vector<4x32xf32>
    %237 = arith.divf %235, %236 : vector<4x32xf32>
    %238 = arith.mulf %229, %205 : vector<4x32xf32>
    %239 = arith.mulf %223, %231 : vector<4x32xf32>
    %240 = arith.addf %238, %239 : vector<4x32xf32>
    %241 = math.tanh %240 : vector<4x32xf32>
    %242 = arith.mulf %237, %241 : vector<4x32xf32>
    %243 = vector.extract_strided_slice %242 {offsets = [0, 0], sizes = [2, 32], strides = [1, 1]} : vector<4x32xf32> to vector<2x32xf32>
    %244 = vector.extract_strided_slice %242 {offsets = [2, 0], sizes = [2, 32], strides = [1, 1]} : vector<4x32xf32> to vector<2x32xf32>
    %245 = vector.extract_strided_slice %65 {offsets = [10, 0], sizes = [2, 128], strides = [1, 1]} : vector<12x256xf32> to vector<2x128xf32>
    %246 = vector.extract_strided_slice %65 {offsets = [0, 128], sizes = [2, 128], strides = [1, 1]} : vector<12x256xf32> to vector<2x128xf32>
    %247 = tpu.concatenate %245, %246 in 0 : vector<2x128xf32>, vector<2x128xf32> -> vector<4x128xf32>
    %248 = tpu.concatenate %242, %242 in 1 : vector<4x32xf32>, vector<4x32xf32> -> vector<4x64xf32>
    %249 = arith.mulf %248, %57 : vector<4x64xf32>
    %250 = arith.truncf %249 : vector<4x64xf32> to vector<4x64xbf16>
    %cst_71 = arith.constant dense<0.000000e+00> : vector<4x128xf32>
    %251 = tpu.matmul %250, %67, %cst_71 {dimension_numbers = #tpu.dot_dimension_numbers<[1], [0], [0], [1], [0, 0, 1, 1], [], []>} : vector<4x64xbf16>, vector<64x128xbf16>, vector<4x128xf32> -> vector<4x128xf32>
    %252 = arith.addf %247, %251 : vector<4x128xf32>
    %253 = vector.extract_strided_slice %252 {offsets = [0, 0], sizes = [4, 32], strides = [1, 1]} : vector<4x128xf32> to vector<4x32xf32>
    %254 = arith.negf %253 : vector<4x32xf32>
    %255 = math.exp %254 : vector<4x32xf32>
    %cst_72 = arith.constant 1.000000e+00 : f32
    %256 = vector.broadcast %cst_72 : f32 to vector<4x32xf32>
    %257 = arith.addf %256, %255 : vector<4x32xf32>
    %258 = arith.divf %256, %257 : vector<4x32xf32>
    %259 = vector.extract_strided_slice %252 {offsets = [0, 32], sizes = [4, 32], strides = [1, 1]} : vector<4x128xf32> to vector<4x32xf32>
    %260 = arith.negf %259 : vector<4x32xf32>
    %261 = math.exp %260 : vector<4x32xf32>
    %cst_73 = arith.constant 1.000000e+00 : f32
    %262 = vector.broadcast %cst_73 : f32 to vector<4x32xf32>
    %263 = arith.addf %262, %261 : vector<4x32xf32>
    %264 = arith.divf %262, %263 : vector<4x32xf32>
    %265 = vector.extract_strided_slice %252 {offsets = [0, 64], sizes = [4, 32], strides = [1, 1]} : vector<4x128xf32> to vector<4x32xf32>
    %266 = math.tanh %265 : vector<4x32xf32>
    %267 = vector.extract_strided_slice %252 {offsets = [0, 96], sizes = [4, 32], strides = [1, 1]} : vector<4x128xf32> to vector<4x32xf32>
    %268 = arith.negf %267 : vector<4x32xf32>
    %269 = math.exp %268 : vector<4x32xf32>
    %cst_74 = arith.constant 1.000000e+00 : f32
    %270 = vector.broadcast %cst_74 : f32 to vector<4x32xf32>
    %271 = arith.addf %270, %269 : vector<4x32xf32>
    %272 = arith.divf %270, %271 : vector<4x32xf32>
    %273 = arith.mulf %264, %240 : vector<4x32xf32>
    %274 = arith.mulf %258, %266 : vector<4x32xf32>
    %275 = arith.addf %273, %274 : vector<4x32xf32>
    %276 = math.tanh %275 : vector<4x32xf32>
    %277 = arith.mulf %272, %276 : vector<4x32xf32>
    %278 = vector.extract_strided_slice %277 {offsets = [0, 0], sizes = [2, 32], strides = [1, 1]} : vector<4x32xf32> to vector<2x32xf32>
    %279 = vector.extract_strided_slice %277 {offsets = [2, 0], sizes = [2, 32], strides = [1, 1]} : vector<4x32xf32> to vector<2x32xf32>
    %280 = tpu.concatenate %103, %138, %173, %208, %243, %278 in 0 : vector<2x32xf32>, vector<2x32xf32>, vector<2x32xf32>, vector<2x32xf32>, vector<2x32xf32>, vector<2x32xf32> -> vector<12x32xf32>
    %281 = tpu.concatenate %279, %244, %209, %174, %139, %104 in 0 : vector<2x32xf32>, vector<2x32xf32>, vector<2x32xf32>, vector<2x32xf32>, vector<2x32xf32>, vector<2x32xf32> -> vector<12x32xf32>
    %282 = tpu.concatenate %280, %281 in 1 : vector<12x32xf32>, vector<12x32xf32> -> vector<12x64xf32>
    %283 = arith.truncf %282 : vector<12x64xf32> to vector<12x64xbf16>
    %c1_75 = arith.constant 1 : index
    %c0_76 = arith.constant 0 : index
    %c0_77 = arith.constant 0 : index
    %284 = vector.load %arg5[%c1_75, %c0_76, %c0_77] : memref<2x64x256xbf16, #tpu.memory_space<vmem>>, vector<1x64x256xbf16>
    %285 = vector.shape_cast %284 : vector<1x64x256xbf16> to vector<64x256xbf16>
    %cst_78 = arith.constant dense<0.000000e+00> : vector<12x256xf32>
    %286 = tpu.matmul %283, %285, %cst_78 {dimension_numbers = #tpu.dot_dimension_numbers<[1], [0], [0], [1], [0, 0, 1, 1], [], []>} : vector<12x64xbf16>, vector<64x256xbf16>, vector<12x256xf32> -> vector<12x256xf32>
    %c1_79 = arith.constant 1 : index
    %c0_80 = arith.constant 0 : index
    %c0_81 = arith.constant 0 : index
    %287 = vector.load %arg7[%c1_79, %c0_80, %c0_81] : memref<2x1x256xf32, #tpu.memory_space<vmem>>, vector<1x1x256xf32>
    %288 = vector.shape_cast %287 : vector<1x1x256xf32> to vector<1x256xf32>
    %289 = vector.broadcast %288 : vector<1x256xf32> to vector<12x256xf32>
    %290 = arith.addf %286, %289 : vector<12x256xf32>
    %c1_82 = arith.constant 1 : index
    %c0_83 = arith.constant 0 : index
    %c0_84 = arith.constant 0 : index
    %291 = vector.load %arg6[%c1_82, %c0_83, %c0_84] : memref<2x64x128xbf16, #tpu.memory_space<vmem>>, vector<1x64x128xbf16>
    %292 = vector.shape_cast %291 : vector<1x64x128xbf16> to vector<64x128xbf16>
    %cst_85 = arith.constant 0.000000e+00 : f32
    %293 = vector.broadcast %cst_85 : f32 to vector<4x32xf32>
    %cst_86 = arith.constant 0.000000e+00 : f32
    %294 = vector.broadcast %cst_86 : f32 to vector<4x32xf32>
    %295 = vector.extract_strided_slice %290 {offsets = [0, 0], sizes = [2, 128], strides = [1, 1]} : vector<12x256xf32> to vector<2x128xf32>
    %296 = vector.extract_strided_slice %290 {offsets = [10, 128], sizes = [2, 128], strides = [1, 1]} : vector<12x256xf32> to vector<2x128xf32>
    %297 = tpu.concatenate %295, %296 in 0 : vector<2x128xf32>, vector<2x128xf32> -> vector<4x128xf32>
    %298 = tpu.concatenate %293, %293 in 1 : vector<4x32xf32>, vector<4x32xf32> -> vector<4x64xf32>
    %299 = arith.mulf %298, %57 : vector<4x64xf32>
    %300 = arith.truncf %299 : vector<4x64xf32> to vector<4x64xbf16>
    %cst_87 = arith.constant dense<0.000000e+00> : vector<4x128xf32>
    %301 = tpu.matmul %300, %292, %cst_87 {dimension_numbers = #tpu.dot_dimension_numbers<[1], [0], [0], [1], [0, 0, 1, 1], [], []>} : vector<4x64xbf16>, vector<64x128xbf16>, vector<4x128xf32> -> vector<4x128xf32>
    %302 = arith.addf %297, %301 : vector<4x128xf32>
    %303 = vector.extract_strided_slice %302 {offsets = [0, 0], sizes = [4, 32], strides = [1, 1]} : vector<4x128xf32> to vector<4x32xf32>
    %304 = arith.negf %303 : vector<4x32xf32>
    %305 = math.exp %304 : vector<4x32xf32>
    %cst_88 = arith.constant 1.000000e+00 : f32
    %306 = vector.broadcast %cst_88 : f32 to vector<4x32xf32>
    %307 = arith.addf %306, %305 : vector<4x32xf32>
    %308 = arith.divf %306, %307 : vector<4x32xf32>
    %309 = vector.extract_strided_slice %302 {offsets = [0, 32], sizes = [4, 32], strides = [1, 1]} : vector<4x128xf32> to vector<4x32xf32>
    %310 = arith.negf %309 : vector<4x32xf32>
    %311 = math.exp %310 : vector<4x32xf32>
    %cst_89 = arith.constant 1.000000e+00 : f32
    %312 = vector.broadcast %cst_89 : f32 to vector<4x32xf32>
    %313 = arith.addf %312, %311 : vector<4x32xf32>
    %314 = arith.divf %312, %313 : vector<4x32xf32>
    %315 = vector.extract_strided_slice %302 {offsets = [0, 64], sizes = [4, 32], strides = [1, 1]} : vector<4x128xf32> to vector<4x32xf32>
    %316 = math.tanh %315 : vector<4x32xf32>
    %317 = vector.extract_strided_slice %302 {offsets = [0, 96], sizes = [4, 32], strides = [1, 1]} : vector<4x128xf32> to vector<4x32xf32>
    %318 = arith.negf %317 : vector<4x32xf32>
    %319 = math.exp %318 : vector<4x32xf32>
    %cst_90 = arith.constant 1.000000e+00 : f32
    %320 = vector.broadcast %cst_90 : f32 to vector<4x32xf32>
    %321 = arith.addf %320, %319 : vector<4x32xf32>
    %322 = arith.divf %320, %321 : vector<4x32xf32>
    %323 = arith.mulf %314, %294 : vector<4x32xf32>
    %324 = arith.mulf %308, %316 : vector<4x32xf32>
    %325 = arith.addf %323, %324 : vector<4x32xf32>
    %326 = math.tanh %325 : vector<4x32xf32>
    %327 = arith.mulf %322, %326 : vector<4x32xf32>
    %328 = vector.extract_strided_slice %327 {offsets = [0, 0], sizes = [2, 32], strides = [1, 1]} : vector<4x32xf32> to vector<2x32xf32>
    %329 = vector.extract_strided_slice %327 {offsets = [2, 0], sizes = [2, 32], strides = [1, 1]} : vector<4x32xf32> to vector<2x32xf32>
    %330 = vector.extract_strided_slice %290 {offsets = [2, 0], sizes = [2, 128], strides = [1, 1]} : vector<12x256xf32> to vector<2x128xf32>
    %331 = vector.extract_strided_slice %290 {offsets = [8, 128], sizes = [2, 128], strides = [1, 1]} : vector<12x256xf32> to vector<2x128xf32>
    %332 = tpu.concatenate %330, %331 in 0 : vector<2x128xf32>, vector<2x128xf32> -> vector<4x128xf32>
    %333 = tpu.concatenate %327, %327 in 1 : vector<4x32xf32>, vector<4x32xf32> -> vector<4x64xf32>
    %334 = arith.mulf %333, %57 : vector<4x64xf32>
    %335 = arith.truncf %334 : vector<4x64xf32> to vector<4x64xbf16>
    %cst_91 = arith.constant dense<0.000000e+00> : vector<4x128xf32>
    %336 = tpu.matmul %335, %292, %cst_91 {dimension_numbers = #tpu.dot_dimension_numbers<[1], [0], [0], [1], [0, 0, 1, 1], [], []>} : vector<4x64xbf16>, vector<64x128xbf16>, vector<4x128xf32> -> vector<4x128xf32>
    %337 = arith.addf %332, %336 : vector<4x128xf32>
    %338 = vector.extract_strided_slice %337 {offsets = [0, 0], sizes = [4, 32], strides = [1, 1]} : vector<4x128xf32> to vector<4x32xf32>
    %339 = arith.negf %338 : vector<4x32xf32>
    %340 = math.exp %339 : vector<4x32xf32>
    %cst_92 = arith.constant 1.000000e+00 : f32
    %341 = vector.broadcast %cst_92 : f32 to vector<4x32xf32>
    %342 = arith.addf %341, %340 : vector<4x32xf32>
    %343 = arith.divf %341, %342 : vector<4x32xf32>
    %344 = vector.extract_strided_slice %337 {offsets = [0, 32], sizes = [4, 32], strides = [1, 1]} : vector<4x128xf32> to vector<4x32xf32>
    %345 = arith.negf %344 : vector<4x32xf32>
    %346 = math.exp %345 : vector<4x32xf32>
    %cst_93 = arith.constant 1.000000e+00 : f32
    %347 = vector.broadcast %cst_93 : f32 to vector<4x32xf32>
    %348 = arith.addf %347, %346 : vector<4x32xf32>
    %349 = arith.divf %347, %348 : vector<4x32xf32>
    %350 = vector.extract_strided_slice %337 {offsets = [0, 64], sizes = [4, 32], strides = [1, 1]} : vector<4x128xf32> to vector<4x32xf32>
    %351 = math.tanh %350 : vector<4x32xf32>
    %352 = vector.extract_strided_slice %337 {offsets = [0, 96], sizes = [4, 32], strides = [1, 1]} : vector<4x128xf32> to vector<4x32xf32>
    %353 = arith.negf %352 : vector<4x32xf32>
    %354 = math.exp %353 : vector<4x32xf32>
    %cst_94 = arith.constant 1.000000e+00 : f32
    %355 = vector.broadcast %cst_94 : f32 to vector<4x32xf32>
    %356 = arith.addf %355, %354 : vector<4x32xf32>
    %357 = arith.divf %355, %356 : vector<4x32xf32>
    %358 = arith.mulf %349, %325 : vector<4x32xf32>
    %359 = arith.mulf %343, %351 : vector<4x32xf32>
    %360 = arith.addf %358, %359 : vector<4x32xf32>
    %361 = math.tanh %360 : vector<4x32xf32>
    %362 = arith.mulf %357, %361 : vector<4x32xf32>
    %363 = vector.extract_strided_slice %362 {offsets = [0, 0], sizes = [2, 32], strides = [1, 1]} : vector<4x32xf32> to vector<2x32xf32>
    %364 = vector.extract_strided_slice %362 {offsets = [2, 0], sizes = [2, 32], strides = [1, 1]} : vector<4x32xf32> to vector<2x32xf32>
    %365 = vector.extract_strided_slice %290 {offsets = [4, 0], sizes = [2, 128], strides = [1, 1]} : vector<12x256xf32> to vector<2x128xf32>
    %366 = vector.extract_strided_slice %290 {offsets = [6, 128], sizes = [2, 128], strides = [1, 1]} : vector<12x256xf32> to vector<2x128xf32>
    %367 = tpu.concatenate %365, %366 in 0 : vector<2x128xf32>, vector<2x128xf32> -> vector<4x128xf32>
    %368 = tpu.concatenate %362, %362 in 1 : vector<4x32xf32>, vector<4x32xf32> -> vector<4x64xf32>
    %369 = arith.mulf %368, %57 : vector<4x64xf32>
    %370 = arith.truncf %369 : vector<4x64xf32> to vector<4x64xbf16>
    %cst_95 = arith.constant dense<0.000000e+00> : vector<4x128xf32>
    %371 = tpu.matmul %370, %292, %cst_95 {dimension_numbers = #tpu.dot_dimension_numbers<[1], [0], [0], [1], [0, 0, 1, 1], [], []>} : vector<4x64xbf16>, vector<64x128xbf16>, vector<4x128xf32> -> vector<4x128xf32>
    %372 = arith.addf %367, %371 : vector<4x128xf32>
    %373 = vector.extract_strided_slice %372 {offsets = [0, 0], sizes = [4, 32], strides = [1, 1]} : vector<4x128xf32> to vector<4x32xf32>
    %374 = arith.negf %373 : vector<4x32xf32>
    %375 = math.exp %374 : vector<4x32xf32>
    %cst_96 = arith.constant 1.000000e+00 : f32
    %376 = vector.broadcast %cst_96 : f32 to vector<4x32xf32>
    %377 = arith.addf %376, %375 : vector<4x32xf32>
    %378 = arith.divf %376, %377 : vector<4x32xf32>
    %379 = vector.extract_strided_slice %372 {offsets = [0, 32], sizes = [4, 32], strides = [1, 1]} : vector<4x128xf32> to vector<4x32xf32>
    %380 = arith.negf %379 : vector<4x32xf32>
    %381 = math.exp %380 : vector<4x32xf32>
    %cst_97 = arith.constant 1.000000e+00 : f32
    %382 = vector.broadcast %cst_97 : f32 to vector<4x32xf32>
    %383 = arith.addf %382, %381 : vector<4x32xf32>
    %384 = arith.divf %382, %383 : vector<4x32xf32>
    %385 = vector.extract_strided_slice %372 {offsets = [0, 64], sizes = [4, 32], strides = [1, 1]} : vector<4x128xf32> to vector<4x32xf32>
    %386 = math.tanh %385 : vector<4x32xf32>
    %387 = vector.extract_strided_slice %372 {offsets = [0, 96], sizes = [4, 32], strides = [1, 1]} : vector<4x128xf32> to vector<4x32xf32>
    %388 = arith.negf %387 : vector<4x32xf32>
    %389 = math.exp %388 : vector<4x32xf32>
    %cst_98 = arith.constant 1.000000e+00 : f32
    %390 = vector.broadcast %cst_98 : f32 to vector<4x32xf32>
    %391 = arith.addf %390, %389 : vector<4x32xf32>
    %392 = arith.divf %390, %391 : vector<4x32xf32>
    %393 = arith.mulf %384, %360 : vector<4x32xf32>
    %394 = arith.mulf %378, %386 : vector<4x32xf32>
    %395 = arith.addf %393, %394 : vector<4x32xf32>
    %396 = math.tanh %395 : vector<4x32xf32>
    %397 = arith.mulf %392, %396 : vector<4x32xf32>
    %398 = vector.extract_strided_slice %397 {offsets = [0, 0], sizes = [2, 32], strides = [1, 1]} : vector<4x32xf32> to vector<2x32xf32>
    %399 = vector.extract_strided_slice %397 {offsets = [2, 0], sizes = [2, 32], strides = [1, 1]} : vector<4x32xf32> to vector<2x32xf32>
    %400 = vector.extract_strided_slice %290 {offsets = [6, 0], sizes = [2, 128], strides = [1, 1]} : vector<12x256xf32> to vector<2x128xf32>
    %401 = vector.extract_strided_slice %290 {offsets = [4, 128], sizes = [2, 128], strides = [1, 1]} : vector<12x256xf32> to vector<2x128xf32>
    %402 = tpu.concatenate %400, %401 in 0 : vector<2x128xf32>, vector<2x128xf32> -> vector<4x128xf32>
    %403 = tpu.concatenate %397, %397 in 1 : vector<4x32xf32>, vector<4x32xf32> -> vector<4x64xf32>
    %404 = arith.mulf %403, %57 : vector<4x64xf32>
    %405 = arith.truncf %404 : vector<4x64xf32> to vector<4x64xbf16>
    %cst_99 = arith.constant dense<0.000000e+00> : vector<4x128xf32>
    %406 = tpu.matmul %405, %292, %cst_99 {dimension_numbers = #tpu.dot_dimension_numbers<[1], [0], [0], [1], [0, 0, 1, 1], [], []>} : vector<4x64xbf16>, vector<64x128xbf16>, vector<4x128xf32> -> vector<4x128xf32>
    %407 = arith.addf %402, %406 : vector<4x128xf32>
    %408 = vector.extract_strided_slice %407 {offsets = [0, 0], sizes = [4, 32], strides = [1, 1]} : vector<4x128xf32> to vector<4x32xf32>
    %409 = arith.negf %408 : vector<4x32xf32>
    %410 = math.exp %409 : vector<4x32xf32>
    %cst_100 = arith.constant 1.000000e+00 : f32
    %411 = vector.broadcast %cst_100 : f32 to vector<4x32xf32>
    %412 = arith.addf %411, %410 : vector<4x32xf32>
    %413 = arith.divf %411, %412 : vector<4x32xf32>
    %414 = vector.extract_strided_slice %407 {offsets = [0, 32], sizes = [4, 32], strides = [1, 1]} : vector<4x128xf32> to vector<4x32xf32>
    %415 = arith.negf %414 : vector<4x32xf32>
    %416 = math.exp %415 : vector<4x32xf32>
    %cst_101 = arith.constant 1.000000e+00 : f32
    %417 = vector.broadcast %cst_101 : f32 to vector<4x32xf32>
    %418 = arith.addf %417, %416 : vector<4x32xf32>
    %419 = arith.divf %417, %418 : vector<4x32xf32>
    %420 = vector.extract_strided_slice %407 {offsets = [0, 64], sizes = [4, 32], strides = [1, 1]} : vector<4x128xf32> to vector<4x32xf32>
    %421 = math.tanh %420 : vector<4x32xf32>
    %422 = vector.extract_strided_slice %407 {offsets = [0, 96], sizes = [4, 32], strides = [1, 1]} : vector<4x128xf32> to vector<4x32xf32>
    %423 = arith.negf %422 : vector<4x32xf32>
    %424 = math.exp %423 : vector<4x32xf32>
    %cst_102 = arith.constant 1.000000e+00 : f32
    %425 = vector.broadcast %cst_102 : f32 to vector<4x32xf32>
    %426 = arith.addf %425, %424 : vector<4x32xf32>
    %427 = arith.divf %425, %426 : vector<4x32xf32>
    %428 = arith.mulf %419, %395 : vector<4x32xf32>
    %429 = arith.mulf %413, %421 : vector<4x32xf32>
    %430 = arith.addf %428, %429 : vector<4x32xf32>
    %431 = math.tanh %430 : vector<4x32xf32>
    %432 = arith.mulf %427, %431 : vector<4x32xf32>
    %433 = vector.extract_strided_slice %432 {offsets = [0, 0], sizes = [2, 32], strides = [1, 1]} : vector<4x32xf32> to vector<2x32xf32>
    %434 = vector.extract_strided_slice %432 {offsets = [2, 0], sizes = [2, 32], strides = [1, 1]} : vector<4x32xf32> to vector<2x32xf32>
    %435 = vector.extract_strided_slice %290 {offsets = [8, 0], sizes = [2, 128], strides = [1, 1]} : vector<12x256xf32> to vector<2x128xf32>
    %436 = vector.extract_strided_slice %290 {offsets = [2, 128], sizes = [2, 128], strides = [1, 1]} : vector<12x256xf32> to vector<2x128xf32>
    %437 = tpu.concatenate %435, %436 in 0 : vector<2x128xf32>, vector<2x128xf32> -> vector<4x128xf32>
    %438 = tpu.concatenate %432, %432 in 1 : vector<4x32xf32>, vector<4x32xf32> -> vector<4x64xf32>
    %439 = arith.mulf %438, %57 : vector<4x64xf32>
    %440 = arith.truncf %439 : vector<4x64xf32> to vector<4x64xbf16>
    %cst_103 = arith.constant dense<0.000000e+00> : vector<4x128xf32>
    %441 = tpu.matmul %440, %292, %cst_103 {dimension_numbers = #tpu.dot_dimension_numbers<[1], [0], [0], [1], [0, 0, 1, 1], [], []>} : vector<4x64xbf16>, vector<64x128xbf16>, vector<4x128xf32> -> vector<4x128xf32>
    %442 = arith.addf %437, %441 : vector<4x128xf32>
    %443 = vector.extract_strided_slice %442 {offsets = [0, 0], sizes = [4, 32], strides = [1, 1]} : vector<4x128xf32> to vector<4x32xf32>
    %444 = arith.negf %443 : vector<4x32xf32>
    %445 = math.exp %444 : vector<4x32xf32>
    %cst_104 = arith.constant 1.000000e+00 : f32
    %446 = vector.broadcast %cst_104 : f32 to vector<4x32xf32>
    %447 = arith.addf %446, %445 : vector<4x32xf32>
    %448 = arith.divf %446, %447 : vector<4x32xf32>
    %449 = vector.extract_strided_slice %442 {offsets = [0, 32], sizes = [4, 32], strides = [1, 1]} : vector<4x128xf32> to vector<4x32xf32>
    %450 = arith.negf %449 : vector<4x32xf32>
    %451 = math.exp %450 : vector<4x32xf32>
    %cst_105 = arith.constant 1.000000e+00 : f32
    %452 = vector.broadcast %cst_105 : f32 to vector<4x32xf32>
    %453 = arith.addf %452, %451 : vector<4x32xf32>
    %454 = arith.divf %452, %453 : vector<4x32xf32>
    %455 = vector.extract_strided_slice %442 {offsets = [0, 64], sizes = [4, 32], strides = [1, 1]} : vector<4x128xf32> to vector<4x32xf32>
    %456 = math.tanh %455 : vector<4x32xf32>
    %457 = vector.extract_strided_slice %442 {offsets = [0, 96], sizes = [4, 32], strides = [1, 1]} : vector<4x128xf32> to vector<4x32xf32>
    %458 = arith.negf %457 : vector<4x32xf32>
    %459 = math.exp %458 : vector<4x32xf32>
    %cst_106 = arith.constant 1.000000e+00 : f32
    %460 = vector.broadcast %cst_106 : f32 to vector<4x32xf32>
    %461 = arith.addf %460, %459 : vector<4x32xf32>
    %462 = arith.divf %460, %461 : vector<4x32xf32>
    %463 = arith.mulf %454, %430 : vector<4x32xf32>
    %464 = arith.mulf %448, %456 : vector<4x32xf32>
    %465 = arith.addf %463, %464 : vector<4x32xf32>
    %466 = math.tanh %465 : vector<4x32xf32>
    %467 = arith.mulf %462, %466 : vector<4x32xf32>
    %468 = vector.extract_strided_slice %467 {offsets = [0, 0], sizes = [2, 32], strides = [1, 1]} : vector<4x32xf32> to vector<2x32xf32>
    %469 = vector.extract_strided_slice %467 {offsets = [2, 0], sizes = [2, 32], strides = [1, 1]} : vector<4x32xf32> to vector<2x32xf32>
    %470 = vector.extract_strided_slice %290 {offsets = [10, 0], sizes = [2, 128], strides = [1, 1]} : vector<12x256xf32> to vector<2x128xf32>
    %471 = vector.extract_strided_slice %290 {offsets = [0, 128], sizes = [2, 128], strides = [1, 1]} : vector<12x256xf32> to vector<2x128xf32>
    %472 = tpu.concatenate %470, %471 in 0 : vector<2x128xf32>, vector<2x128xf32> -> vector<4x128xf32>
    %473 = tpu.concatenate %467, %467 in 1 : vector<4x32xf32>, vector<4x32xf32> -> vector<4x64xf32>
    %474 = arith.mulf %473, %57 : vector<4x64xf32>
    %475 = arith.truncf %474 : vector<4x64xf32> to vector<4x64xbf16>
    %cst_107 = arith.constant dense<0.000000e+00> : vector<4x128xf32>
    %476 = tpu.matmul %475, %292, %cst_107 {dimension_numbers = #tpu.dot_dimension_numbers<[1], [0], [0], [1], [0, 0, 1, 1], [], []>} : vector<4x64xbf16>, vector<64x128xbf16>, vector<4x128xf32> -> vector<4x128xf32>
    %477 = arith.addf %472, %476 : vector<4x128xf32>
    %478 = vector.extract_strided_slice %477 {offsets = [0, 0], sizes = [4, 32], strides = [1, 1]} : vector<4x128xf32> to vector<4x32xf32>
    %479 = arith.negf %478 : vector<4x32xf32>
    %480 = math.exp %479 : vector<4x32xf32>
    %cst_108 = arith.constant 1.000000e+00 : f32
    %481 = vector.broadcast %cst_108 : f32 to vector<4x32xf32>
    %482 = arith.addf %481, %480 : vector<4x32xf32>
    %483 = arith.divf %481, %482 : vector<4x32xf32>
    %484 = vector.extract_strided_slice %477 {offsets = [0, 32], sizes = [4, 32], strides = [1, 1]} : vector<4x128xf32> to vector<4x32xf32>
    %485 = arith.negf %484 : vector<4x32xf32>
    %486 = math.exp %485 : vector<4x32xf32>
    %cst_109 = arith.constant 1.000000e+00 : f32
    %487 = vector.broadcast %cst_109 : f32 to vector<4x32xf32>
    %488 = arith.addf %487, %486 : vector<4x32xf32>
    %489 = arith.divf %487, %488 : vector<4x32xf32>
    %490 = vector.extract_strided_slice %477 {offsets = [0, 64], sizes = [4, 32], strides = [1, 1]} : vector<4x128xf32> to vector<4x32xf32>
    %491 = math.tanh %490 : vector<4x32xf32>
    %492 = vector.extract_strided_slice %477 {offsets = [0, 96], sizes = [4, 32], strides = [1, 1]} : vector<4x128xf32> to vector<4x32xf32>
    %493 = arith.negf %492 : vector<4x32xf32>
    %494 = math.exp %493 : vector<4x32xf32>
    %cst_110 = arith.constant 1.000000e+00 : f32
    %495 = vector.broadcast %cst_110 : f32 to vector<4x32xf32>
    %496 = arith.addf %495, %494 : vector<4x32xf32>
    %497 = arith.divf %495, %496 : vector<4x32xf32>
    %498 = arith.mulf %489, %465 : vector<4x32xf32>
    %499 = arith.mulf %483, %491 : vector<4x32xf32>
    %500 = arith.addf %498, %499 : vector<4x32xf32>
    %501 = math.tanh %500 : vector<4x32xf32>
    %502 = arith.mulf %497, %501 : vector<4x32xf32>
    %503 = vector.extract_strided_slice %502 {offsets = [0, 0], sizes = [2, 32], strides = [1, 1]} : vector<4x32xf32> to vector<2x32xf32>
    %504 = vector.extract_strided_slice %502 {offsets = [2, 0], sizes = [2, 32], strides = [1, 1]} : vector<4x32xf32> to vector<2x32xf32>
    %505 = tpu.concatenate %328, %363, %398, %433, %468, %503 in 0 : vector<2x32xf32>, vector<2x32xf32>, vector<2x32xf32>, vector<2x32xf32>, vector<2x32xf32>, vector<2x32xf32> -> vector<12x32xf32>
    %506 = tpu.concatenate %504, %469, %434, %399, %364, %329 in 0 : vector<2x32xf32>, vector<2x32xf32>, vector<2x32xf32>, vector<2x32xf32>, vector<2x32xf32>, vector<2x32xf32> -> vector<12x32xf32>
    %507 = tpu.concatenate %505, %506 in 1 : vector<12x32xf32>, vector<12x32xf32> -> vector<12x64xf32>
    %508 = tpu.concatenate %50, %507 in 1 : vector<12x64xf32>, vector<12x64xf32> -> vector<12x128xf32>
    %c0_111 = arith.constant 0 : index
    %c0_112 = arith.constant 0 : index
    %509 = vector.load %arg9[%c0_111, %c0_112] : memref<12x128xf32, #tpu.memory_space<vmem>>, vector<12x128xf32>
    tpu.vector_store %arg9[%c0_111, %c0_112], %508 {strides = array<i32>} : memref<12x128xf32, #tpu.memory_space<vmem>>, vector<12x128xf32>,
    %510 = tpu.concatenate %50, %507 in 0 : vector<12x64xf32>, vector<12x64xf32> -> vector<24x64xf32>
    %511 = arith.truncf %510 : vector<24x64xf32> to vector<24x64xbf16>
    %c0_113 = arith.constant 0 : index
    %c0_114 = arith.constant 0 : index
    %512 = vector.load %arg8[%c0_113, %c0_114] : memref<64x32xbf16, #tpu.memory_space<vmem>>, vector<64x32xbf16>
    %cst_115 = arith.constant dense<0.000000e+00> : vector<24x32xf32>
    %513 = tpu.matmul %511, %512, %cst_115 {dimension_numbers = #tpu.dot_dimension_numbers<[1], [0], [0], [1], [0, 0, 1, 1], [], []>} : vector<24x64xbf16>, vector<64x32xbf16>, vector<24x32xf32> -> vector<24x32xf32>
    %c0_116 = arith.constant 0 : index
    %c0_117 = arith.constant 0 : index
    %514 = vector.load %arg10[%c0_116, %c0_117] : memref<24x32xf32, #tpu.memory_space<vmem>>, vector<24x32xf32>
    tpu.vector_store %arg10[%c0_116, %c0_117], %513 {strides = array<i32>} : memref<24x32xf32, #tpu.memory_space<vmem>>, vector<24x32xf32>,
    return
  }
}

</mosaic_0001>

<llo_original>
// kernel: slr_forward.1
$region0: #{slr_forward.1}
  #allocation0 [shape = 'u32[]', space=smem, size = 0x4, offset = 0x4, fixed_abs, tag = 'smem constant byte address 0x4 - core index']
  #allocation1 [shape = 'u32[72,128]{1,0:T(1,128)}', space=vmem, size = 0x9000, scoped, tag = 'internal scratch']
  #allocation2 [shape = 'f32[64,64]{1,0:T(8,128)}', space=vmem, size = 0x8000, scoped, tag = 'scratch operand']
  #allocation3 [shape = 'f32[32,64]{1,0:T(8,128)}', space=vmem, size = 0x4000, scoped, tag = 'scratch operand']
  #allocation4 [shape = 'f32[16,64]{1,0:T(8,128)}', space=vmem, size = 0x2000, scoped, tag = 'scratch operand']
  %s0 = inlined_call_operand.vmem [shape: bf16[2,36,512], index: 0, kind: input, shape index: {}]
  %s1 = inlined_call_operand.vmem [shape: bf16[2560,64], index: 1, kind: input, shape index: {}]
  %s2 = inlined_call_operand.vmem [shape: f32[1,64], index: 2, kind: input, shape index: {}]
  %s3 = inlined_call_operand.vmem [shape: bf16[320,64], index: 3, kind: input, shape index: {}]
  %s4 = inlined_call_operand.vmem [shape: f32[1,64], index: 4, kind: input, shape index: {}]
  %s5 = inlined_call_operand.vmem [shape: bf16[2,64,256], index: 5, kind: input, shape index: {}]
  %s6 = inlined_call_operand.vmem [shape: bf16[2,64,128], index: 6, kind: input, shape index: {}]
  %s7 = inlined_call_operand.vmem [shape: f32[2,1,256], index: 7, kind: input, shape index: {}]
  %s8 = inlined_call_operand.vmem [shape: bf16[64,32], index: 8, kind: input, shape index: {}]
  %s9 = inlined_call_operand.vmem [shape: f32[12,128], index: 9, kind: output, shape index: {0}]
  %s10 = inlined_call_operand.vmem [shape: f32[24,32], index: 10, kind: output, shape index: {1}]
  %11 = xla_tuple %s9, %s10
  %s12 = sld [smem:[#allocation0]]
  $region54: #{slr_forward.1} parent=0
    _
  %s14 = ssub.s32 1, %s12
  %s15 = scalar_select 0, %s14, %s12
  // Predicated region
  $region2: #{slr_forward.1} parent=0 // pred_check
    _
  $region3: #{slr_forward.1} parent=0 // pred_check_branch
    %17 = sbr.rel (0) target = $region5
  $region4: #{slr_forward.1} parent=0 // pred_region
    _
  $region5: #{slr_forward.1} parent=0 // pred_fallthru
    _
  // Predicated region
  $region6: #{slr_forward.1} parent=0 // pred_check
    _
  $region7: #{slr_forward.1} parent=0 // pred_check_branch
    %19 = sbr.rel (0) target = $region9
  $region8: #{slr_forward.1} parent=0 // pred_region
    _
  $region9: #{slr_forward.1} parent=0 // pred_fallthru
    _
  // Predicated region
  $region10: #{slr_forward.1} parent=0 // pred_check
    _
  $region11: #{slr_forward.1} parent=0 // pred_check_branch
    %21 = sbr.rel (0) target = $region13
  $region12: #{slr_forward.1} parent=0 // pred_region
    _
  $region13: #{slr_forward.1} parent=0 // pred_fallthru
    _
  // Predicated region
  $region14: #{slr_forward.1} parent=0 // pred_check
    _
  $region15: #{slr_forward.1} parent=0 // pred_check_branch
    %23 = sbr.rel (0) target = $region17
  $region16: #{slr_forward.1} parent=0 // pred_region
    _
  $region17: #{slr_forward.1} parent=0 // pred_fallthru
    _
  // Predicated region
  $region18: #{slr_forward.1} parent=0 // pred_check
    _
  $region19: #{slr_forward.1} parent=0 // pred_check_branch
    %25 = sbr.rel (0) target = $region21
  $region20: #{slr_forward.1} parent=0 // pred_region
    _
  $region21: #{slr_forward.1} parent=0 // pred_fallthru
    _
  // Predicated region
  $region22: #{slr_forward.1} parent=0 // pred_check
    _
  $region23: #{slr_forward.1} parent=0 // pred_check_branch
    %27 = sbr.rel (0) target = $region25
  $region24: #{slr_forward.1} parent=0 // pred_region
    _
  $region25: #{slr_forward.1} parent=0 // pred_fallthru
    _
  // Predicated region
  $region26: #{slr_forward.1} parent=0 // pred_check
    _
  $region27: #{slr_forward.1} parent=0 // pred_check_branch
    %29 = sbr.rel (0) target = $region29
  $region28: #{slr_forward.1} parent=0 // pred_region
    _
  $region29: #{slr_forward.1} parent=0 // pred_fallthru
    _
  // Predicated region
  $region30: #{slr_forward.1} parent=0 // pred_check
    _
  $region31: #{slr_forward.1} parent=0 // pred_check_branch
    %31 = sbr.rel (0) target = $region33
  $region32: #{slr_forward.1} parent=0 // pred_region
    _
  $region33: #{slr_forward.1} parent=0 // pred_fallthru
    _
  // Predicated region
  $region34: #{slr_forward.1} parent=0 // pred_check
    _
  $region35: #{slr_forward.1} parent=0 // pred_check_branch
    %33 = sbr.rel (0) target = $region37
  $region36: #{slr_forward.1} parent=0 // pred_region
    _
  $region37: #{slr_forward.1} parent=0 // pred_fallthru
    _
  %v35 = vld [vmem:[%s0] sm:$0xff]
  %v36 = vld [vmem:[%s0 + $0x8] sm:$0xff]
  %v37 = vld [vmem:[%s0 + $0x10] sm:$0xff]
  %v38 = vld [vmem:[%s0 + $0x18] sm:$0xff]
  %v39 = vld [vmem:[%s0 + $0x20] sm:$0xff]
  %v40 = vld [vmem:[%s0 + $0x28] sm:$0xff]
  %v41 = vld [vmem:[%s0 + $0x30] sm:$0xff]
  %v42 = vld [vmem:[%s0 + $0x38] sm:$0xff]
  %v43 = vld [vmem:[%s0 + $0x40] sm:$0x33]
  %v44 = vld [vmem:[%s0 + $0x48] sm:$0x33]
  %v45 = vld [vmem:[%s0 + $0x50] sm:$0xff]
  %v46 = vld [vmem:[%s0 + $0x58] sm:$0xff]
  %v47 = vld [vmem:[%s0 + $0x60] sm:$0xff]
  %v48 = vld [vmem:[%s0 + $0x68] sm:$0xff]
  %v49 = vld [vmem:[%s0 + $0x70] sm:$0xff]
  %v50 = vld [vmem:[%s0 + $0x78] sm:$0xff]
  %v51 = vld [vmem:[%s0 + $0x80] sm:$0xff]
  %v52 = vld [vmem:[%s0 + $0x88] sm:$0xff]
  %v53 = vld [vmem:[%s0 + $0x90] sm:$0x33]
  %v54 = vld [vmem:[%s0 + $0x98] sm:$0x33]
  %vm55 = vsmask.f32 3328
  %vm56 = vsmask.f32 7440
  %vm57 = vmor %vm55, %vm56
  %v59 = vshrl.u32 %v35, 16
  %v61 = vrot.slane %v59, 4
  %v62 = vshll.u32 %v35, 16
  %v64 = vrot.slane %v62, 5
  %v65 = vor.u32 %v61, %v64
  %v66 = vrot.slane %v65, 4
  %v68 = vshll.u32 %v37, 16
  %v70 = vrot.slane %v68, 5
  %v71 = vsel %vm57, %v66, %v70
  %v73 = vshrl.u32 %v36, 16
  %v75 = vrot.slane %v73, 4
  %v76 = vshll.u32 %v36, 16
  %v78 = vrot.slane %v76, 5
  %v79 = vor.u32 %v75, %v78
  %v80 = vrot.slane %v79, 4
  %v82 = vshll.u32 %v38, 16
  %v84 = vrot.slane %v82, 5
  %v85 = vsel %vm57, %v80, %v84
  %v86 = vshrl.u32 %v37, 16
  %v88 = vrot.slane %v86, 4
  %v89 = vor.u32 %v88, %v70
  %v90 = vrot.slane %v89, 4
  %v92 = vshll.u32 %v39, 16
  %v94 = vrot.slane %v92, 5
  %v95 = vsel %vm57, %v90, %v94
  %v96 = vshrl.u32 %v38, 16
  %v98 = vrot.slane %v96, 4
  %v99 = vor.u32 %v98, %v84
  %v100 = vrot.slane %v99, 4
  %v102 = vshll.u32 %v40, 16
  %v104 = vrot.slane %v102, 5
  %v105 = vsel %vm57, %v100, %v104
  %v106 = vshrl.u32 %v39, 16
  %v108 = vrot.slane %v106, 4
  %v109 = vor.u32 %v108, %v94
  %v110 = vrot.slane %v109, 4
  %v112 = vshll.u32 %v41, 16
  %v114 = vrot.slane %v112, 5
  %v115 = vsel %vm57, %v110, %v114
  %v116 = vshrl.u32 %v40, 16
  %v118 = vrot.slane %v116, 4
  %v119 = vor.u32 %v118, %v104
  %v120 = vrot.slane %v119, 4
  %v122 = vshll.u32 %v42, 16
  %v124 = vrot.slane %v122, 5
  %v125 = vsel %vm57, %v120, %v124
  %v126 = vshrl.u32 %v41, 16
  %v128 = vrot.slane %v126, 4
  %v129 = vor.u32 %v128, %v114
  %v130 = vrot.slane %v129, 4
  %v132 = vshll.u32 %v43, 16
  %v134 = vrot.slane %v132, 5
  %v135 = vsel %vm57, %v130, %v134
  %v136 = vshrl.u32 %v42, 16
  %v138 = vrot.slane %v136, 4
  %v139 = vor.u32 %v138, %v124
  %v140 = vrot.slane %v139, 4
  %v142 = vshll.u32 %v44, 16
  %v144 = vrot.slane %v142, 5
  %v145 = vsel %vm57, %v140, %v144
  %v147 = vshrl.u32 %v45, 16
  %v149 = vrot.slane %v147, 4
  %v150 = vshll.u32 %v45, 16
  %v152 = vrot.slane %v150, 5
  %v153 = vor.u32 %v149, %v152
  %v154 = vrot.slane %v153, 4
  %v156 = vshll.u32 %v47, 16
  %v158 = vrot.slane %v156, 5
  %v159 = vsel %vm57, %v154, %v158
  %v161 = vshrl.u32 %v46, 16
  %v163 = vrot.slane %v161, 4
  %v164 = vshll.u32 %v46, 16
  %v166 = vrot.slane %v164, 5
  %v167 = vor.u32 %v163, %v166
  %v168 = vrot.slane %v167, 4
  %v170 = vshll.u32 %v48, 16
  %v172 = vrot.slane %v170, 5
  %v173 = vsel %vm57, %v168, %v172
  %v174 = vshrl.u32 %v47, 16
  %v176 = vrot.slane %v174, 4
  %v177 = vor.u32 %v176, %v158
  %v178 = vrot.slane %v177, 4
  %v180 = vshll.u32 %v49, 16
  %v182 = vrot.slane %v180, 5
  %v183 = vsel %vm57, %v178, %v182
  %v184 = vshrl.u32 %v48, 16
  %v186 = vrot.slane %v184, 4
  %v187 = vor.u32 %v186, %v172
  %v188 = vrot.slane %v187, 4
  %v190 = vshll.u32 %v50, 16
  %v192 = vrot.slane %v190, 5
  %v193 = vsel %vm57, %v188, %v192
  %v194 = vshrl.u32 %v49, 16
  %v196 = vrot.slane %v194, 4
  %v197 = vor.u32 %v196, %v182
  %v198 = vrot.slane %v197, 4
  %v200 = vshll.u32 %v51, 16
  %v202 = vrot.slane %v200, 5
  %v203 = vsel %vm57, %v198, %v202
  %v204 = vshrl.u32 %v50, 16
  %v206 = vrot.slane %v204, 4
  %v207 = vor.u32 %v206, %v192
  %v208 = vrot.slane %v207, 4
  %v210 = vshll.u32 %v52, 16
  %v212 = vrot.slane %v210, 5
  %v213 = vsel %vm57, %v208, %v212
  %v214 = vshrl.u32 %v51, 16
  %v216 = vrot.slane %v214, 4
  %v217 = vor.u32 %v216, %v202
  %v218 = vrot.slane %v217, 4
  %v220 = vshll.u32 %v53, 16
  %v222 = vrot.slane %v220, 5
  %v223 = vsel %vm57, %v218, %v222
  %v224 = vshrl.u32 %v52, 16
  %v226 = vrot.slane %v224, 4
  %v227 = vor.u32 %v226, %v212
  %v228 = vrot.slane %v227, 4
  %v230 = vshll.u32 %v54, 16
  %v232 = vrot.slane %v230, 5
  %v233 = vsel %vm57, %v228, %v232
  %vm254 = vcmask 1042432
  %vm255 = vcmask 1046532
  %vm256 = vmor %vm254, %vm255
  %v257 = vrot.slane %v35, 5
  %v258 = vrot.slane %v257, 4
  %v259 = vrot.slane %v37, 5
  %v260 = vsel %vm256, %v258, %v259
  %v261 = vrot.slane %v36, 5
  %v262 = vrot.slane %v261, 4
  %v263 = vrot.slane %v38, 5
  %v264 = vsel %vm256, %v262, %v263
  %v265 = vrot.slane %v259, 4
  %v266 = vrot.slane %v39, 5
  %v267 = vsel %vm256, %v265, %v266
  %v268 = vrot.slane %v263, 4
  %v269 = vrot.slane %v40, 5
  %v270 = vsel %vm256, %v268, %v269
  %v271 = vrot.slane %v266, 4
  %v272 = vrot.slane %v41, 5
  %v273 = vsel %vm256, %v271, %v272
  %v274 = vrot.slane %v269, 4
  %v275 = vrot.slane %v42, 5
  %v276 = vsel %vm256, %v274, %v275
  %v277 = vrot.slane %v272, 4
  %v278 = vrot.slane %v43, 5
  %v279 = vsel %vm256, %v277, %v278
  %v280 = vrot.slane %v275, 4
  %v281 = vrot.slane %v44, 5
  %v282 = vsel %vm256, %v280, %v281
  %v283 = vrot.slane %v45, 5
  %v284 = vrot.slane %v283, 4
  %v285 = vrot.slane %v47, 5
  %v286 = vsel %vm256, %v284, %v285
  %v287 = vrot.slane %v46, 5
  %v288 = vrot.slane %v287, 4
  %v289 = vrot.slane %v48, 5
  %v290 = vsel %vm256, %v288, %v289
  %v291 = vrot.slane %v285, 4
  %v292 = vrot.slane %v49, 5
  %v293 = vsel %vm256, %v291, %v292
  %v294 = vrot.slane %v289, 4
  %v295 = vrot.slane %v50, 5
  %v296 = vsel %vm256, %v294, %v295
  %v297 = vrot.slane %v292, 4
  %v298 = vrot.slane %v51, 5
  %v299 = vsel %vm256, %v297, %v298
  %v300 = vrot.slane %v295, 4
  %v301 = vrot.slane %v52, 5
  %v302 = vsel %vm256, %v300, %v301
  %v303 = vrot.slane %v298, 4
  %v304 = vrot.slane %v53, 5
  %v305 = vsel %vm256, %v303, %v304
  %v306 = vrot.slane %v301, 4
  %v307 = vrot.slane %v54, 5
  %v308 = vsel %vm256, %v306, %v307
  %vm309 = vsmask.f32 2304
  %vm310 = vsmask.f32 6416
  %vm311 = vmor %vm309, %vm310
  %v312 = vrot.slane %v59, 5
  %v313 = vrot.slane %v62, 6
  %v314 = vor.u32 %v312, %v313
  %v315 = vrot.slane %v314, 4
  %v316 = vrot.slane %v86, 5
  %v317 = vrot.slane %v68, 6
  %v318 = vor.u32 %v316, %v317
  %v319 = vsel %vm311, %v315, %v318
  %v320 = vrot.slane %v73, 5
  %v321 = vrot.slane %v76, 6
  %v322 = vor.u32 %v320, %v321
  %v323 = vrot.slane %v322, 4
  %v324 = vrot.slane %v96, 5
  %v325 = vrot.slane %v82, 6
  %v326 = vor.u32 %v324, %v325
  %v327 = vsel %vm311, %v323, %v326
  %v328 = vrot.slane %v318, 4
  %v329 = vrot.slane %v106, 5
  %v330 = vrot.slane %v92, 6
  %v331 = vor.u32 %v329, %v330
  %v332 = vsel %vm311, %v328, %v331
  %v333 = vrot.slane %v326, 4
  %v334 = vrot.slane %v116, 5
  %v335 = vrot.slane %v102, 6
  %v336 = vor.u32 %v334, %v335
  %v337 = vsel %vm311, %v333, %v336
  %v338 = vrot.slane %v331, 4
  %v339 = vrot.slane %v126, 5
  %v340 = vrot.slane %v112, 6
  %v341 = vor.u32 %v339, %v340
  %v342 = vsel %vm311, %v338, %v341
  %v343 = vrot.slane %v336, 4
  %v344 = vrot.slane %v136, 5
  %v345 = vrot.slane %v122, 6
  %v346 = vor.u32 %v344, %v345
  %v347 = vsel %vm311, %v343, %v346
  %v348 = vrot.slane %v341, 4
  %v349 = vshrl.u32 %v43, 16
  %v351 = vrot.slane %v349, 5
  %v352 = vrot.slane %v132, 6
  %v353 = vor.u32 %v351, %v352
  %v354 = vsel %vm311, %v348, %v353
  %v355 = vrot.slane %v346, 4
  %v356 = vshrl.u32 %v44, 16
  %v358 = vrot.slane %v356, 5
  %v359 = vrot.slane %v142, 6
  %v360 = vor.u32 %v358, %v359
  %v361 = vsel %vm311, %v355, %v360
  %v362 = vrot.slane %v147, 5
  %v363 = vrot.slane %v150, 6
  %v364 = vor.u32 %v362, %v363
  %v365 = vrot.slane %v364, 4
  %v366 = vrot.slane %v174, 5
  %v367 = vrot.slane %v156, 6
  %v368 = vor.u32 %v366, %v367
  %v369 = vsel %vm311, %v365, %v368
  %v370 = vrot.slane %v161, 5
  %v371 = vrot.slane %v164, 6
  %v372 = vor.u32 %v370, %v371
  %v373 = vrot.slane %v372, 4
  %v374 = vrot.slane %v184, 5
  %v375 = vrot.slane %v170, 6
  %v376 = vor.u32 %v374, %v375
  %v377 = vsel %vm311, %v373, %v376
  %v378 = vrot.slane %v368, 4
  %v379 = vrot.slane %v194, 5
  %v380 = vrot.slane %v180, 6
  %v381 = vor.u32 %v379, %v380
  %v382 = vsel %vm311, %v378, %v381
  %v383 = vrot.slane %v376, 4
  %v384 = vrot.slane %v204, 5
  %v385 = vrot.slane %v190, 6
  %v386 = vor.u32 %v384, %v385
  %v387 = vsel %vm311, %v383, %v386
  %v388 = vrot.slane %v381, 4
  %v389 = vrot.slane %v214, 5
  %v390 = vrot.slane %v200, 6
  %v391 = vor.u32 %v389, %v390
  %v392 = vsel %vm311, %v388, %v391
  %v393 = vrot.slane %v386, 4
  %v394 = vrot.slane %v224, 5
  %v395 = vrot.slane %v210, 6
  %v396 = vor.u32 %v394, %v395
  %v397 = vsel %vm311, %v393, %v396
  %v398 = vrot.slane %v391, 4
  %v399 = vshrl.u32 %v53, 16
  %v401 = vrot.slane %v399, 5
  %v402 = vrot.slane %v220, 6
  %v403 = vor.u32 %v401, %v402
  %v404 = vsel %vm311, %v398, %v403
  %v405 = vrot.slane %v396, 4
  %v406 = vshrl.u32 %v54, 16
  %v408 = vrot.slane %v406, 5
  %v409 = vrot.slane %v230, 6
  %v410 = vor.u32 %v408, %v409
  %v411 = vsel %vm311, %v405, %v410
  %vm412 = vcmask 1041408
  %vm413 = vcmask 1045508
  %vm414 = vmor %vm412, %vm413
  %v415 = vrot.slane %v35, 6
  %v416 = vrot.slane %v415, 4
  %v417 = vrot.slane %v37, 6
  %v418 = vsel %vm414, %v416, %v417
  %v419 = vrot.slane %v36, 6
  %v420 = vrot.slane %v419, 4
  %v421 = vrot.slane %v38, 6
  %v422 = vsel %vm414, %v420, %v421
  %v423 = vrot.slane %v417, 4
  %v424 = vrot.slane %v39, 6
  %v425 = vsel %vm414, %v423, %v424
  %v426 = vrot.slane %v421, 4
  %v427 = vrot.slane %v40, 6
  %v428 = vsel %vm414, %v426, %v427
  %v429 = vrot.slane %v424, 4
  %v430 = vrot.slane %v41, 6
  %v431 = vsel %vm414, %v429, %v430
  %v432 = vrot.slane %v427, 4
  %v433 = vrot.slane %v42, 6
  %v434 = vsel %vm414, %v432, %v433
  %v435 = vrot.slane %v430, 4
  %v436 = vrot.slane %v43, 6
  %v437 = vsel %vm414, %v435, %v436
  %v438 = vrot.slane %v433, 4
  %v439 = vrot.slane %v44, 6
  %v440 = vsel %vm414, %v438, %v439
  %v441 = vrot.slane %v45, 6
  %v442 = vrot.slane %v441, 4
  %v443 = vrot.slane %v47, 6
  %v444 = vsel %vm414, %v442, %v443
  %v445 = vrot.slane %v46, 6
  %v446 = vrot.slane %v445, 4
  %v447 = vrot.slane %v48, 6
  %v448 = vsel %vm414, %v446, %v447
  %v449 = vrot.slane %v443, 4
  %v450 = vrot.slane %v49, 6
  %v451 = vsel %vm414, %v449, %v450
  %v452 = vrot.slane %v447, 4
  %v453 = vrot.slane %v50, 6
  %v454 = vsel %vm414, %v452, %v453
  %v455 = vrot.slane %v450, 4
  %v456 = vrot.slane %v51, 6
  %v457 = vsel %vm414, %v455, %v456
  %v458 = vrot.slane %v453, 4
  %v459 = vrot.slane %v52, 6
  %v460 = vsel %vm414, %v458, %v459
  %v461 = vrot.slane %v456, 4
  %v462 = vrot.slane %v53, 6
  %v463 = vsel %vm414, %v461, %v462
  %v464 = vrot.slane %v459, 4
  %v465 = vrot.slane %v54, 6
  %v466 = vsel %vm414, %v464, %v465
  %v467 = vunpack.c.l.b16 %v35
  %v468 = vunpack.c.h.b16 %v35
  %v469 = vunpack.c.l.b16 %v36
  %v470 = vunpack.c.h.b16 %v36
  %v471 = vunpack.c.l.b16 %v37
  %v472 = vunpack.c.h.b16 %v37
  %v473 = vunpack.c.l.b16 %v38
  %v474 = vunpack.c.h.b16 %v38
  %v475 = vunpack.c.l.b16 %v39
  %v476 = vunpack.c.h.b16 %v39
  %v477 = vunpack.c.l.b16 %v40
  %v478 = vunpack.c.h.b16 %v40
  %v479 = vunpack.c.l.b16 %v41
  %v480 = vunpack.c.h.b16 %v41
  %v481 = vunpack.c.l.b16 %v42
  %v482 = vunpack.c.h.b16 %v42
  %v483 = vunpack.c.l.b16 %v45
  %v484 = vunpack.c.h.b16 %v45
  %v485 = vunpack.c.l.b16 %v46
  %v486 = vunpack.c.h.b16 %v46
  %v487 = vunpack.c.l.b16 %v47
  %v488 = vunpack.c.h.b16 %v47
  %v489 = vunpack.c.l.b16 %v48
  %v490 = vunpack.c.h.b16 %v48
  %v491 = vunpack.c.l.b16 %v49
  %v492 = vunpack.c.h.b16 %v49
  %v493 = vunpack.c.l.b16 %v50
  %v494 = vunpack.c.h.b16 %v50
  %v495 = vunpack.c.l.b16 %v51
  %v496 = vunpack.c.h.b16 %v51
  %v497 = vunpack.c.l.b16 %v52
  %v498 = vunpack.c.h.b16 %v52
  %v499 = vpack.c.b16 %v471, %v467
  %v500 = vpack.c.b16 %v472, %v468
  %v501 = vpack.c.b16 %v473, %v469
  %v502 = vpack.c.b16 %v474, %v470
  %v503 = vpack.c.b16 %v479, %v475
  %v504 = vpack.c.b16 %v480, %v476
  %v505 = vpack.c.b16 %v481, %v477
  %v506 = vpack.c.b16 %v482, %v478
  %v507 = vpack.c.b16 %v487, %v483
  %v508 = vpack.c.b16 %v488, %v484
  %v509 = vpack.c.b16 %v489, %v485
  %v510 = vpack.c.b16 %v490, %v486
  %v511 = vpack.c.b16 %v495, %v491
  %v512 = vpack.c.b16 %v496, %v492
  %v513 = vpack.c.b16 %v497, %v493
  %v514 = vpack.c.b16 %v498, %v494
  %v531 = vunpack.c.l.b16 %v71
  %v532 = vunpack.c.h.b16 %v71
  %v533 = vunpack.c.l.b16 %v85
  %v534 = vunpack.c.h.b16 %v85
  %v535 = vunpack.c.l.b16 %v95
  %v536 = vunpack.c.h.b16 %v95
  %v537 = vunpack.c.l.b16 %v105
  %v538 = vunpack.c.h.b16 %v105
  %v539 = vunpack.c.l.b16 %v115
  %v540 = vunpack.c.h.b16 %v115
  %v541 = vunpack.c.l.b16 %v125
  %v542 = vunpack.c.h.b16 %v125
  %v543 = vunpack.c.l.b16 %v135
  %v544 = vunpack.c.h.b16 %v135
  %v545 = vunpack.c.l.b16 %v145
  %v546 = vunpack.c.h.b16 %v145
  %v547 = vunpack.c.l.b16 %v159
  %v548 = vunpack.c.h.b16 %v159
  %v549 = vunpack.c.l.b16 %v173
  %v550 = vunpack.c.h.b16 %v173
  %v551 = vunpack.c.l.b16 %v183
  %v552 = vunpack.c.h.b16 %v183
  %v553 = vunpack.c.l.b16 %v193
  %v554 = vunpack.c.h.b16 %v193
  %v555 = vunpack.c.l.b16 %v203
  %v556 = vunpack.c.h.b16 %v203
  %v557 = vunpack.c.l.b16 %v213
  %v558 = vunpack.c.h.b16 %v213
  %v559 = vunpack.c.l.b16 %v223
  %v560 = vunpack.c.h.b16 %v223
  %v561 = vunpack.c.l.b16 %v233
  %v562 = vunpack.c.h.b16 %v233
  %v563 = vpack.c.b16 %v535, %v531
  %v564 = vpack.c.b16 %v536, %v532
  %v565 = vpack.c.b16 %v537, %v533
  %v566 = vpack.c.b16 %v538, %v534
  %v567 = vpack.c.b16 %v543, %v539
  %v568 = vpack.c.b16 %v544, %v540
  %v569 = vpack.c.b16 %v545, %v541
  %v570 = vpack.c.b16 %v546, %v542
  %v571 = vpack.c.b16 %v551, %v547
  %v572 = vpack.c.b16 %v552, %v548
  %v573 = vpack.c.b16 %v553, %v549
  %v574 = vpack.c.b16 %v554, %v550
  %v575 = vpack.c.b16 %v559, %v555
  %v576 = vpack.c.b16 %v560, %v556
  %v577 = vpack.c.b16 %v561, %v557
  %v578 = vpack.c.b16 %v562, %v558
  %v595 = vunpack.c.l.b16 %v260
  %v596 = vunpack.c.h.b16 %v260
  %v597 = vunpack.c.l.b16 %v264
  %v598 = vunpack.c.h.b16 %v264
  %v599 = vunpack.c.l.b16 %v267
  %v600 = vunpack.c.h.b16 %v267
  %v601 = vunpack.c.l.b16 %v270
  %v602 = vunpack.c.h.b16 %v270
  %v603 = vunpack.c.l.b16 %v273
  %v604 = vunpack.c.h.b16 %v273
  %v605 = vunpack.c.l.b16 %v276
  %v606 = vunpack.c.h.b16 %v276
  %v607 = vunpack.c.l.b16 %v279
  %v608 = vunpack.c.h.b16 %v279
  %v609 = vunpack.c.l.b16 %v282
  %v610 = vunpack.c.h.b16 %v282
  %v611 = vunpack.c.l.b16 %v286
  %v612 = vunpack.c.h.b16 %v286
  %v613 = vunpack.c.l.b16 %v290
  %v614 = vunpack.c.h.b16 %v290
  %v615 = vunpack.c.l.b16 %v293
  %v616 = vunpack.c.h.b16 %v293
  %v617 = vunpack.c.l.b16 %v296
  %v618 = vunpack.c.h.b16 %v296
  %v619 = vunpack.c.l.b16 %v299
  %v620 = vunpack.c.h.b16 %v299
  %v621 = vunpack.c.l.b16 %v302
  %v622 = vunpack.c.h.b16 %v302
  %v623 = vunpack.c.l.b16 %v305
  %v624 = vunpack.c.h.b16 %v305
  %v625 = vunpack.c.l.b16 %v308
  %v626 = vunpack.c.h.b16 %v308
  %v627 = vpack.c.b16 %v599, %v595
  %v628 = vpack.c.b16 %v600, %v596
  %v629 = vpack.c.b16 %v601, %v597
  %v630 = vpack.c.b16 %v602, %v598
  %v631 = vpack.c.b16 %v607, %v603
  %v632 = vpack.c.b16 %v608, %v604
  %v633 = vpack.c.b16 %v609, %v605
  %v634 = vpack.c.b16 %v610, %v606
  %v635 = vpack.c.b16 %v615, %v611
  %v636 = vpack.c.b16 %v616, %v612
  %v637 = vpack.c.b16 %v617, %v613
  %v638 = vpack.c.b16 %v618, %v614
  %v639 = vpack.c.b16 %v623, %v619
  %v640 = vpack.c.b16 %v624, %v620
  %v641 = vpack.c.b16 %v625, %v621
  %v642 = vpack.c.b16 %v626, %v622
  %v659 = vunpack.c.l.b16 %v319
  %v660 = vunpack.c.h.b16 %v319
  %v661 = vunpack.c.l.b16 %v327
  %v662 = vunpack.c.h.b16 %v327
  %v663 = vunpack.c.l.b16 %v332
  %v664 = vunpack.c.h.b16 %v332
  %v665 = vunpack.c.l.b16 %v337
  %v666 = vunpack.c.h.b16 %v337
  %v667 = vunpack.c.l.b16 %v342
  %v668 = vunpack.c.h.b16 %v342
  %v669 = vunpack.c.l.b16 %v347
  %v670 = vunpack.c.h.b16 %v347
  %v671 = vunpack.c.l.b16 %v354
  %v672 = vunpack.c.h.b16 %v354
  %v673 = vunpack.c.l.b16 %v361
  %v674 = vunpack.c.h.b16 %v361
  %v675 = vunpack.c.l.b16 %v369
  %v676 = vunpack.c.h.b16 %v369
  %v677 = vunpack.c.l.b16 %v377
  %v678 = vunpack.c.h.b16 %v377
  %v679 = vunpack.c.l.b16 %v382
  %v680 = vunpack.c.h.b16 %v382
  %v681 = vunpack.c.l.b16 %v387
  %v682 = vunpack.c.h.b16 %v387
  %v683 = vunpack.c.l.b16 %v392
  %v684 = vunpack.c.h.b16 %v392
  %v685 = vunpack.c.l.b16 %v397
  %v686 = vunpack.c.h.b16 %v397
  %v687 = vunpack.c.l.b16 %v404
  %v688 = vunpack.c.h.b16 %v404
  %v689 = vunpack.c.l.b16 %v411
  %v690 = vunpack.c.h.b16 %v411
  %v691 = vpack.c.b16 %v663, %v659
  %v692 = vpack.c.b16 %v664, %v660
  %v693 = vpack.c.b16 %v665, %v661
  %v694 = vpack.c.b16 %v666, %v662
  %v695 = vpack.c.b16 %v671, %v667
  %v696 = vpack.c.b16 %v672, %v668
  %v697 = vpack.c.b16 %v673, %v669
  %v698 = vpack.c.b16 %v674, %v670
  %v699 = vpack.c.b16 %v679, %v675
  %v700 = vpack.c.b16 %v680, %v676
  %v701 = vpack.c.b16 %v681, %v677
  %v702 = vpack.c.b16 %v682, %v678
  %v703 = vpack.c.b16 %v687, %v683
  %v704 = vpack.c.b16 %v688, %v684
  %v705 = vpack.c.b16 %v689, %v685
  %v706 = vpack.c.b16 %v690, %v686
  %v723 = vunpack.c.l.b16 %v418
  %v724 = vunpack.c.h.b16 %v418
  %v725 = vunpack.c.l.b16 %v422
  %v726 = vunpack.c.h.b16 %v422
  %v727 = vunpack.c.l.b16 %v425
  %v728 = vunpack.c.h.b16 %v425
  %v729 = vunpack.c.l.b16 %v428
  %v730 = vunpack.c.h.b16 %v428
  %v731 = vunpack.c.l.b16 %v431
  %v732 = vunpack.c.h.b16 %v431
  %v733 = vunpack.c.l.b16 %v434
  %v734 = vunpack.c.h.b16 %v434
  %v735 = vunpack.c.l.b16 %v437
  %v736 = vunpack.c.h.b16 %v437
  %v737 = vunpack.c.l.b16 %v440
  %v738 = vunpack.c.h.b16 %v440
  %v739 = vunpack.c.l.b16 %v444
  %v740 = vunpack.c.h.b16 %v444
  %v741 = vunpack.c.l.b16 %v448
  %v742 = vunpack.c.h.b16 %v448
  %v743 = vunpack.c.l.b16 %v451
  %v744 = vunpack.c.h.b16 %v451
  %v745 = vunpack.c.l.b16 %v454
  %v746 = vunpack.c.h.b16 %v454
  %v747 = vunpack.c.l.b16 %v457
  %v748 = vunpack.c.h.b16 %v457
  %v749 = vunpack.c.l.b16 %v460
  %v750 = vunpack.c.h.b16 %v460
  %v751 = vunpack.c.l.b16 %v463
  %v752 = vunpack.c.h.b16 %v463
  %v753 = vunpack.c.l.b16 %v466
  %v754 = vunpack.c.h.b16 %v466
  %v755 = vpack.c.b16 %v727, %v723
  %v756 = vpack.c.b16 %v728, %v724
  %v757 = vpack.c.b16 %v729, %v725
  %v758 = vpack.c.b16 %v730, %v726
  %v759 = vpack.c.b16 %v735, %v731
  %v760 = vpack.c.b16 %v736, %v732
  %v761 = vpack.c.b16 %v737, %v733
  %v762 = vpack.c.b16 %v738, %v734
  %v763 = vpack.c.b16 %v743, %v739
  %v764 = vpack.c.b16 %v744, %v740
  %v765 = vpack.c.b16 %v745, %v741
  %v766 = vpack.c.b16 %v746, %v742
  %v767 = vpack.c.b16 %v751, %v747
  %v768 = vpack.c.b16 %v752, %v748
  %v769 = vpack.c.b16 %v753, %v749
  %v770 = vpack.c.b16 %v754, %v750
  %v787 = vld [vmem:[%s1] sm:$0xf]
  %v788 = vld [vmem:[%s1 + $0x4] sm:$0xf]
  %v789 = vld [vmem:[%s1 + $0x8] sm:$0xf]
  %v790 = vld [vmem:[%s1 + $0xc] sm:$0xf]
  %v791 = vld [vmem:[%s1 + $0x10] sm:$0xf]
  %v792 = vld [vmem:[%s1 + $0x14] sm:$0xf]
  %v793 = vld [vmem:[%s1 + $0x18] sm:$0xf]
  %v794 = vld [vmem:[%s1 + $0x1c] sm:$0xf]
  %v795 = vld [vmem:[%s1 + $0x20] sm:$0xf]
  %v796 = vld [vmem:[%s1 + $0x24] sm:$0xf]
  %v797 = vld [vmem:[%s1 + $0x28] sm:$0xf]
  %v798 = vld [vmem:[%s1 + $0x2c] sm:$0xf]
  %v799 = vld [vmem:[%s1 + $0x30] sm:$0xf]
  %v800 = vld [vmem:[%s1 + $0x34] sm:$0xf]
  %v801 = vld [vmem:[%s1 + $0x38] sm:$0xf]
  %v802 = vld [vmem:[%s1 + $0x3c] sm:$0xf]
  %v803 = vld [vmem:[%s1 + $0x40] sm:$0xf]
  %v804 = vld [vmem:[%s1 + $0x44] sm:$0xf]
  %v805 = vld [vmem:[%s1 + $0x48] sm:$0xf]
  %v806 = vld [vmem:[%s1 + $0x4c] sm:$0xf]
  %v807 = vld [vmem:[%s1 + $0x50] sm:$0xf]
  %v808 = vld [vmem:[%s1 + $0x54] sm:$0xf]
  %v809 = vld [vmem:[%s1 + $0x58] sm:$0xf]
  %v810 = vld [vmem:[%s1 + $0x5c] sm:$0xf]
  %v811 = vld [vmem:[%s1 + $0x60] sm:$0xf]
  %v812 = vld [vmem:[%s1 + $0x64] sm:$0xf]
  %v813 = vld [vmem:[%s1 + $0x68] sm:$0xf]
  %v814 = vld [vmem:[%s1 + $0x6c] sm:$0xf]
  %v815 = vld [vmem:[%s1 + $0x70] sm:$0xf]
  %v816 = vld [vmem:[%s1 + $0x74] sm:$0xf]
  %v817 = vld [vmem:[%s1 + $0x78] sm:$0xf]
  %v818 = vld [vmem:[%s1 + $0x7c] sm:$0xf]
  %v819 = vld [vmem:[%s1 + $0x80] sm:$0xf]
  %v820 = vld [vmem:[%s1 + $0x84] sm:$0xf]
  %v821 = vld [vmem:[%s1 + $0x88] sm:$0xf]
  %v822 = vld [vmem:[%s1 + $0x8c] sm:$0xf]
  %v823 = vld [vmem:[%s1 + $0x90] sm:$0xf]
  %v824 = vld [vmem:[%s1 + $0x94] sm:$0xf]
  %v825 = vld [vmem:[%s1 + $0x98] sm:$0xf]
  %v826 = vld [vmem:[%s1 + $0x9c] sm:$0xf]
  %v827 = vld [vmem:[%s1 + $0xa0] sm:$0xf]
  %v828 = vld [vmem:[%s1 + $0xa4] sm:$0xf]
  %v829 = vld [vmem:[%s1 + $0xa8] sm:$0xf]
  %v830 = vld [vmem:[%s1 + $0xac] sm:$0xf]
  %v831 = vld [vmem:[%s1 + $0xb0] sm:$0xf]
  %v832 = vld [vmem:[%s1 + $0xb4] sm:$0xf]
  %v833 = vld [vmem:[%s1 + $0xb8] sm:$0xf]
  %v834 = vld [vmem:[%s1 + $0xbc] sm:$0xf]
  %v835 = vld [vmem:[%s1 + $0xc0] sm:$0xf]
  %v836 = vld [vmem:[%s1 + $0xc4] sm:$0xf]
  %v837 = vld [vmem:[%s1 + $0xc8] sm:$0xf]
  %v838 = vld [vmem:[%s1 + $0xcc] sm:$0xf]
  %v839 = vld [vmem:[%s1 + $0xd0] sm:$0xf]
  %v840 = vld [vmem:[%s1 + $0xd4] sm:$0xf]
  %v841 = vld [vmem:[%s1 + $0xd8] sm:$0xf]
  %v842 = vld [vmem:[%s1 + $0xdc] sm:$0xf]
  %v843 = vld [vmem:[%s1 + $0xe0] sm:$0xf]
  %v844 = vld [vmem:[%s1 + $0xe4] sm:$0xf]
  %v845 = vld [vmem:[%s1 + $0xe8] sm:$0xf]
  %v846 = vld [vmem:[%s1 + $0xec] sm:$0xf]
  %v847 = vld [vmem:[%s1 + $0xf0] sm:$0xf]
  %v848 = vld [vmem:[%s1 + $0xf4] sm:$0xf]
  %v849 = vld [vmem:[%s1 + $0xf8] sm:$0xf]
  %v850 = vld [vmem:[%s1 + $0xfc] sm:$0xf]
  %v851 = vld [vmem:[%s1 + $0x100] sm:$0xf]
  %v852 = vld [vmem:[%s1 + $0x104] sm:$0xf]
  %v853 = vld [vmem:[%s1 + $0x108] sm:$0xf]
  %v854 = vld [vmem:[%s1 + $0x10c] sm:$0xf]
  %v855 = vld [vmem:[%s1 + $0x110] sm:$0xf]
  %v856 = vld [vmem:[%s1 + $0x114] sm:$0xf]
  %v857 = vld [vmem:[%s1 + $0x118] sm:$0xf]
  %v858 = vld [vmem:[%s1 + $0x11c] sm:$0xf]
  %v859 = vld [vmem:[%s1 + $0x120] sm:$0xf]
  %v860 = vld [vmem:[%s1 + $0x124] sm:$0xf]
  %v861 = vld [vmem:[%s1 + $0x128] sm:$0xf]
  %v862 = vld [vmem:[%s1 + $0x12c] sm:$0xf]
  %v863 = vld [vmem:[%s1 + $0x130] sm:$0xf]
  %v864 = vld [vmem:[%s1 + $0x134] sm:$0xf]
  %v865 = vld [vmem:[%s1 + $0x138] sm:$0xf]
  %v866 = vld [vmem:[%s1 + $0x13c] sm:$0xf]
  %v867 = vld [vmem:[%s1 + $0x140] sm:$0xf]
  %v868 = vld [vmem:[%s1 + $0x144] sm:$0xf]
  %v869 = vld [vmem:[%s1 + $0x148] sm:$0xf]
  %v870 = vld [vmem:[%s1 + $0x14c] sm:$0xf]
  %v871 = vld [vmem:[%s1 + $0x150] sm:$0xf]
  %v872 = vld [vmem:[%s1 + $0x154] sm:$0xf]
  %v873 = vld [vmem:[%s1 + $0x158] sm:$0xf]
  %v874 = vld [vmem:[%s1 + $0x15c] sm:$0xf]
  %v875 = vld [vmem:[%s1 + $0x160] sm:$0xf]
  %v876 = vld [vmem:[%s1 + $0x164] sm:$0xf]
  %v877 = vld [vmem:[%s1 + $0x168] sm:$0xf]
  %v878 = vld [vmem:[%s1 + $0x16c] sm:$0xf]
  %v879 = vld [vmem:[%s1 + $0x170] sm:$0xf]
  %v880 = vld [vmem:[%s1 + $0x174] sm:$0xf]
  %v881 = vld [vmem:[%s1 + $0x178] sm:$0xf]
  %v882 = vld [vmem:[%s1 + $0x17c] sm:$0xf]
  %v883 = vld [vmem:[%s1 + $0x180] sm:$0xf]
  %v884 = vld [vmem:[%s1 + $0x184] sm:$0xf]
  %v885 = vld [vmem:[%s1 + $0x188] sm:$0xf]
  %v886 = vld [vmem:[%s1 + $0x18c] sm:$0xf]
  %v887 = vld [vmem:[%s1 + $0x190] sm:$0xf]
  %v888 = vld [vmem:[%s1 + $0x194] sm:$0xf]
  %v889 = vld [vmem:[%s1 + $0x198] sm:$0xf]
  %v890 = vld [vmem:[%s1 + $0x19c] sm:$0xf]
  %v891 = vld [vmem:[%s1 + $0x1a0] sm:$0xf]
  %v892 = vld [vmem:[%s1 + $0x1a4] sm:$0xf]
  %v893 = vld [vmem:[%s1 + $0x1a8] sm:$0xf]
  %v894 = vld [vmem:[%s1 + $0x1ac] sm:$0xf]
  %v895 = vld [vmem:[%s1 + $0x1b0] sm:$0xf]
  %v896 = vld [vmem:[%s1 + $0x1b4] sm:$0xf]
  %v897 = vld [vmem:[%s1 + $0x1b8] sm:$0xf]
  %v898 = vld [vmem:[%s1 + $0x1bc] sm:$0xf]
  %v899 = vld [vmem:[%s1 + $0x1c0] sm:$0xf]
  %v900 = vld [vmem:[%s1 + $0x1c4] sm:$0xf]
  %v901 = vld [vmem:[%s1 + $0x1c8] sm:$0xf]
  %v902 = vld [vmem:[%s1 + $0x1cc] sm:$0xf]
  %v903 = vld [vmem:[%s1 + $0x1d0] sm:$0xf]
  %v904 = vld [vmem:[%s1 + $0x1d4] sm:$0xf]
  %v905 = vld [vmem:[%s1 + $0x1d8] sm:$0xf]
  %v906 = vld [vmem:[%s1 + $0x1dc] sm:$0xf]
  %v907 = vld [vmem:[%s1 + $0x1e0] sm:$0xf]
  %v908 = vld [vmem:[%s1 + $0x1e4] sm:$0xf]
  %v909 = vld [vmem:[%s1 + $0x1e8] sm:$0xf]
  %v910 = vld [vmem:[%s1 + $0x1ec] sm:$0xf]
  %v911 = vld [vmem:[%s1 + $0x1f0] sm:$0xf]
  %v912 = vld [vmem:[%s1 + $0x1f4] sm:$0xf]
  %v913 = vld [vmem:[%s1 + $0x1f8] sm:$0xf]
  %v914 = vld [vmem:[%s1 + $0x1fc] sm:$0xf]
  %v915 = vld [vmem:[%s1 + $0x200] sm:$0xf]
  %v916 = vld [vmem:[%s1 + $0x204] sm:$0xf]
  %v917 = vld [vmem:[%s1 + $0x208] sm:$0xf]
  %v918 = vld [vmem:[%s1 + $0x20c] sm:$0xf]
  %v919 = vld [vmem:[%s1 + $0x210] sm:$0xf]
  %v920 = vld [vmem:[%s1 + $0x214] sm:$0xf]
  %v921 = vld [vmem:[%s1 + $0x218] sm:$0xf]
  %v922 = vld [vmem:[%s1 + $0x21c] sm:$0xf]
  %v923 = vld [vmem:[%s1 + $0x220] sm:$0xf]
  %v924 = vld [vmem:[%s1 + $0x224] sm:$0xf]
  %v925 = vld [vmem:[%s1 + $0x228] sm:$0xf]
  %v926 = vld [vmem:[%s1 + $0x22c] sm:$0xf]
  %v927 = vld [vmem:[%s1 + $0x230] sm:$0xf]
  %v928 = vld [vmem:[%s1 + $0x234] sm:$0xf]
  %v929 = vld [vmem:[%s1 + $0x238] sm:$0xf]
  %v930 = vld [vmem:[%s1 + $0x23c] sm:$0xf]
  %v931 = vld [vmem:[%s1 + $0x240] sm:$0xf]
  %v932 = vld [vmem:[%s1 + $0x244] sm:$0xf]
  %v933 = vld [vmem:[%s1 + $0x248] sm:$0xf]
  %v934 = vld [vmem:[%s1 + $0x24c] sm:$0xf]
  %v935 = vld [vmem:[%s1 + $0x250] sm:$0xf]
  %v936 = vld [vmem:[%s1 + $0x254] sm:$0xf]
  %v937 = vld [vmem:[%s1 + $0x258] sm:$0xf]
  %v938 = vld [vmem:[%s1 + $0x25c] sm:$0xf]
  %v939 = vld [vmem:[%s1 + $0x260] sm:$0xf]
  %v940 = vld [vmem:[%s1 + $0x264] sm:$0xf]
  %v941 = vld [vmem:[%s1 + $0x268] sm:$0xf]
  %v942 = vld [vmem:[%s1 + $0x26c] sm:$0xf]
  %v943 = vld [vmem:[%s1 + $0x270] sm:$0xf]
  %v944 = vld [vmem:[%s1 + $0x274] sm:$0xf]
  %v945 = vld [vmem:[%s1 + $0x278] sm:$0xf]
  %v946 = vld [vmem:[%s1 + $0x27c] sm:$0xf]
  %v947 = vld [vmem:[%s1 + $0x280] sm:$0xf]
  %v948 = vld [vmem:[%s1 + $0x284] sm:$0xf]
  %v949 = vld [vmem:[%s1 + $0x288] sm:$0xf]
  %v950 = vld [vmem:[%s1 + $0x28c] sm:$0xf]
  %v951 = vld [vmem:[%s1 + $0x290] sm:$0xf]
  %v952 = vld [vmem:[%s1 + $0x294] sm:$0xf]
  %v953 = vld [vmem:[%s1 + $0x298] sm:$0xf]
  %v954 = vld [vmem:[%s1 + $0x29c] sm:$0xf]
  %v955 = vld [vmem:[%s1 + $0x2a0] sm:$0xf]
  %v956 = vld [vmem:[%s1 + $0x2a4] sm:$0xf]
  %v957 = vld [vmem:[%s1 + $0x2a8] sm:$0xf]
  %v958 = vld [vmem:[%s1 + $0x2ac] sm:$0xf]
  %v959 = vld [vmem:[%s1 + $0x2b0] sm:$0xf]
  %v960 = vld [vmem:[%s1 + $0x2b4] sm:$0xf]
  %v961 = vld [vmem:[%s1 + $0x2b8] sm:$0xf]
  %v962 = vld [vmem:[%s1 + $0x2bc] sm:$0xf]
  %v963 = vld [vmem:[%s1 + $0x2c0] sm:$0xf]
  %v964 = vld [vmem:[%s1 + $0x2c4] sm:$0xf]
  %v965 = vld [vmem:[%s1 + $0x2c8] sm:$0xf]
  %v966 = vld [vmem:[%s1 + $0x2cc] sm:$0xf]
  %v967 = vld [vmem:[%s1 + $0x2d0] sm:$0xf]
  %v968 = vld [vmem:[%s1 + $0x2d4] sm:$0xf]
  %v969 = vld [vmem:[%s1 + $0x2d8] sm:$0xf]
  %v970 = vld [vmem:[%s1 + $0x2dc] sm:$0xf]
  %v971 = vld [vmem:[%s1 + $0x2e0] sm:$0xf]
  %v972 = vld [vmem:[%s1 + $0x2e4] sm:$0xf]
  %v973 = vld [vmem:[%s1 + $0x2e8] sm:$0xf]
  %v974 = vld [vmem:[%s1 + $0x2ec] sm:$0xf]
  %v975 = vld [vmem:[%s1 + $0x2f0] sm:$0xf]
  %v976 = vld [vmem:[%s1 + $0x2f4] sm:$0xf]
  %v977 = vld [vmem:[%s1 + $0x2f8] sm:$0xf]
  %v978 = vld [vmem:[%s1 + $0x2fc] sm:$0xf]
  %v979 = vld [vmem:[%s1 + $0x300] sm:$0xf]
  %v980 = vld [vmem:[%s1 + $0x304] sm:$0xf]
  %v981 = vld [vmem:[%s1 + $0x308] sm:$0xf]
  %v982 = vld [vmem:[%s1 + $0x30c] sm:$0xf]
  %v983 = vld [vmem:[%s1 + $0x310] sm:$0xf]
  %v984 = vld [vmem:[%s1 + $0x314] sm:$0xf]
  %v985 = vld [vmem:[%s1 + $0x318] sm:$0xf]
  %v986 = vld [vmem:[%s1 + $0x31c] sm:$0xf]
  %v987 = vld [vmem:[%s1 + $0x320] sm:$0xf]
  %v988 = vld [vmem:[%s1 + $0x324] sm:$0xf]
  %v989 = vld [vmem:[%s1 + $0x328] sm:$0xf]
  %v990 = vld [vmem:[%s1 + $0x32c] sm:$0xf]
  %v991 = vld [vmem:[%s1 + $0x330] sm:$0xf]
  %v992 = vld [vmem:[%s1 + $0x334] sm:$0xf]
  %v993 = vld [vmem:[%s1 + $0x338] sm:$0xf]
  %v994 = vld [vmem:[%s1 + $0x33c] sm:$0xf]
  %v995 = vld [vmem:[%s1 + $0x340] sm:$0xf]
  %v996 = vld [vmem:[%s1 + $0x344] sm:$0xf]
  %v997 = vld [vmem:[%s1 + $0x348] sm:$0xf]
  %v998 = vld [vmem:[%s1 + $0x34c] sm:$0xf]
  %v999 = vld [vmem:[%s1 + $0x350] sm:$0xf]
  %v1000 = vld [vmem:[%s1 + $0x354] sm:$0xf]
  %v1001 = vld [vmem:[%s1 + $0x358] sm:$0xf]
  %v1002 = vld [vmem:[%s1 + $0x35c] sm:$0xf]
  %v1003 = vld [vmem:[%s1 + $0x360] sm:$0xf]
  %v1004 = vld [vmem:[%s1 + $0x364] sm:$0xf]
  %v1005 = vld [vmem:[%s1 + $0x368] sm:$0xf]
  %v1006 = vld [vmem:[%s1 + $0x36c] sm:$0xf]
  %v1007 = vld [vmem:[%s1 + $0x370] sm:$0xf]
  %v1008 = vld [vmem:[%s1 + $0x374] sm:$0xf]
  %v1009 = vld [vmem:[%s1 + $0x378] sm:$0xf]
  %v1010 = vld [vmem:[%s1 + $0x37c] sm:$0xf]
  %v1011 = vld [vmem:[%s1 + $0x380] sm:$0xf]
  %v1012 = vld [vmem:[%s1 + $0x384] sm:$0xf]
  %v1013 = vld [vmem:[%s1 + $0x388] sm:$0xf]
  %v1014 = vld [vmem:[%s1 + $0x38c] sm:$0xf]
  %v1015 = vld [vmem:[%s1 + $0x390] sm:$0xf]
  %v1016 = vld [vmem:[%s1 + $0x394] sm:$0xf]
  %v1017 = vld [vmem:[%s1 + $0x398] sm:$0xf]
  %v1018 = vld [vmem:[%s1 + $0x39c] sm:$0xf]
  %v1019 = vld [vmem:[%s1 + $0x3a0] sm:$0xf]
  %v1020 = vld [vmem:[%s1 + $0x3a4] sm:$0xf]
  %v1021 = vld [vmem:[%s1 + $0x3a8] sm:$0xf]
  %v1022 = vld [vmem:[%s1 + $0x3ac] sm:$0xf]
  %v1023 = vld [vmem:[%s1 + $0x3b0] sm:$0xf]
  %v1024 = vld [vmem:[%s1 + $0x3b4] sm:$0xf]
  %v1025 = vld [vmem:[%s1 + $0x3b8] sm:$0xf]
  %v1026 = vld [vmem:[%s1 + $0x3bc] sm:$0xf]
  %v1027 = vld [vmem:[%s1 + $0x3c0] sm:$0xf]
  %v1028 = vld [vmem:[%s1 + $0x3c4] sm:$0xf]
  %v1029 = vld [vmem:[%s1 + $0x3c8] sm:$0xf]
  %v1030 = vld [vmem:[%s1 + $0x3cc] sm:$0xf]
  %v1031 = vld [vmem:[%s1 + $0x3d0] sm:$0xf]
  %v1032 = vld [vmem:[%s1 + $0x3d4] sm:$0xf]
  %v1033 = vld [vmem:[%s1 + $0x3d8] sm:$0xf]
  %v1034 = vld [vmem:[%s1 + $0x3dc] sm:$0xf]
  %v1035 = vld [vmem:[%s1 + $0x3e0] sm:$0xf]
  %v1036 = vld [vmem:[%s1 + $0x3e4] sm:$0xf]
  %v1037 = vld [vmem:[%s1 + $0x3e8] sm:$0xf]
  %v1038 = vld [vmem:[%s1 + $0x3ec] sm:$0xf]
  %v1039 = vld [vmem:[%s1 + $0x3f0] sm:$0xf]
  %v1040 = vld [vmem:[%s1 + $0x3f4] sm:$0xf]
  %v1041 = vld [vmem:[%s1 + $0x3f8] sm:$0xf]
  %v1042 = vld [vmem:[%s1 + $0x3fc] sm:$0xf]
  %v1043 = vld [vmem:[%s1 + $0x400] sm:$0xf]
  %v1044 = vld [vmem:[%s1 + $0x404] sm:$0xf]
  %v1045 = vld [vmem:[%s1 + $0x408] sm:$0xf]
  %v1046 = vld [vmem:[%s1 + $0x40c] sm:$0xf]
  %v1047 = vld [vmem:[%s1 + $0x410] sm:$0xf]
  %v1048 = vld [vmem:[%s1 + $0x414] sm:$0xf]
  %v1049 = vld [vmem:[%s1 + $0x418] sm:$0xf]
  %v1050 = vld [vmem:[%s1 + $0x41c] sm:$0xf]
  %v1051 = vld [vmem:[%s1 + $0x420] sm:$0xf]
  %v1052 = vld [vmem:[%s1 + $0x424] sm:$0xf]
  %v1053 = vld [vmem:[%s1 + $0x428] sm:$0xf]
  %v1054 = vld [vmem:[%s1 + $0x42c] sm:$0xf]
  %v1055 = vld [vmem:[%s1 + $0x430] sm:$0xf]
  %v1056 = vld [vmem:[%s1 + $0x434] sm:$0xf]
  %v1057 = vld [vmem:[%s1 + $0x438] sm:$0xf]
  %v1058 = vld [vmem:[%s1 + $0x43c] sm:$0xf]
  %v1059 = vld [vmem:[%s1 + $0x440] sm:$0xf]
  %v1060 = vld [vmem:[%s1 + $0x444] sm:$0xf]
  %v1061 = vld [vmem:[%s1 + $0x448] sm:$0xf]
  %v1062 = vld [vmem:[%s1 + $0x44c] sm:$0xf]
  %v1063 = vld [vmem:[%s1 + $0x450] sm:$0xf]
  %v1064 = vld [vmem:[%s1 + $0x454] sm:$0xf]
  %v1065 = vld [vmem:[%s1 + $0x458] sm:$0xf]
  %v1066 = vld [vmem:[%s1 + $0x45c] sm:$0xf]
  %v1067 = vld [vmem:[%s1 + $0x460] sm:$0xf]
  %v1068 = vld [vmem:[%s1 + $0x464] sm:$0xf]
  %v1069 = vld [vmem:[%s1 + $0x468] sm:$0xf]
  %v1070 = vld [vmem:[%s1 + $0x46c] sm:$0xf]
  %v1071 = vld [vmem:[%s1 + $0x470] sm:$0xf]
  %v1072 = vld [vmem:[%s1 + $0x474] sm:$0xf]
  %v1073 = vld [vmem:[%s1 + $0x478] sm:$0xf]
  %v1074 = vld [vmem:[%s1 + $0x47c] sm:$0xf]
  %v1075 = vld [vmem:[%s1 + $0x480] sm:$0xf]
  %v1076 = vld [vmem:[%s1 + $0x484] sm:$0xf]
  %v1077 = vld [vmem:[%s1 + $0x488] sm:$0xf]
  %v1078 = vld [vmem:[%s1 + $0x48c] sm:$0xf]
  %v1079 = vld [vmem:[%s1 + $0x490] sm:$0xf]
  %v1080 = vld [vmem:[%s1 + $0x494] sm:$0xf]
  %v1081 = vld [vmem:[%s1 + $0x498] sm:$0xf]
  %v1082 = vld [vmem:[%s1 + $0x49c] sm:$0xf]
  %v1083 = vld [vmem:[%s1 + $0x4a0] sm:$0xf]
  %v1084 = vld [vmem:[%s1 + $0x4a4] sm:$0xf]
  %v1085 = vld [vmem:[%s1 + $0x4a8] sm:$0xf]
  %v1086 = vld [vmem:[%s1 + $0x4ac] sm:$0xf]
  %v1087 = vld [vmem:[%s1 + $0x4b0] sm:$0xf]
  %v1088 = vld [vmem:[%s1 + $0x4b4] sm:$0xf]
  %v1089 = vld [vmem:[%s1 + $0x4b8] sm:$0xf]
  %v1090 = vld [vmem:[%s1 + $0x4bc] sm:$0xf]
  %v1091 = vld [vmem:[%s1 + $0x4c0] sm:$0xf]
  %v1092 = vld [vmem:[%s1 + $0x4c4] sm:$0xf]
  %v1093 = vld [vmem:[%s1 + $0x4c8] sm:$0xf]
  %v1094 = vld [vmem:[%s1 + $0x4cc] sm:$0xf]
  %v1095 = vld [vmem:[%s1 + $0x4d0] sm:$0xf]
  %v1096 = vld [vmem:[%s1 + $0x4d4] sm:$0xf]
  %v1097 = vld [vmem:[%s1 + $0x4d8] sm:$0xf]
  %v1098 = vld [vmem:[%s1 + $0x4dc] sm:$0xf]
  %v1099 = vld [vmem:[%s1 + $0x4e0] sm:$0xf]
  %v1100 = vld [vmem:[%s1 + $0x4e4] sm:$0xf]
  %v1101 = vld [vmem:[%s1 + $0x4e8] sm:$0xf]
  %v1102 = vld [vmem:[%s1 + $0x4ec] sm:$0xf]
  %v1103 = vld [vmem:[%s1 + $0x4f0] sm:$0xf]
  %v1104 = vld [vmem:[%s1 + $0x4f4] sm:$0xf]
  %v1105 = vld [vmem:[%s1 + $0x4f8] sm:$0xf]
  %v1106 = vld [vmem:[%s1 + $0x4fc] sm:$0xf]
  %v1107 = vld [vmem:[%s2] sm:$0x1]
  %v1109 = vperm.slane %v1107, 0
  %v1431 = vunpack.c.l.b16 %v787
  %v1432 = vunpack.c.l.b16 %v788
  %v1433 = vunpack.c.l.b16 %v789
  %v1434 = vunpack.c.l.b16 %v790
  %v1435 = vunpack.c.l.b16 %v791
  %v1436 = vunpack.c.l.b16 %v792
  %v1437 = vunpack.c.l.b16 %v793
  %v1438 = vunpack.c.l.b16 %v794
  %v1439 = vunpack.c.l.b16 %v795
  %v1440 = vunpack.c.l.b16 %v796
  %v1441 = vunpack.c.l.b16 %v797
  %v1442 = vunpack.c.l.b16 %v798
  %v1443 = vunpack.c.l.b16 %v799
  %v1444 = vunpack.c.l.b16 %v800
  %v1445 = vunpack.c.l.b16 %v801
  %v1446 = vunpack.c.l.b16 %v802
  %v1447 = vunpack.c.l.b16 %v803
  %v1448 = vunpack.c.l.b16 %v804
  %v1449 = vunpack.c.l.b16 %v805
  %v1450 = vunpack.c.l.b16 %v806
  %v1451 = vunpack.c.l.b16 %v807
  %v1452 = vunpack.c.l.b16 %v808
  %v1453 = vunpack.c.l.b16 %v809
  %v1454 = vunpack.c.l.b16 %v810
  %v1455 = vunpack.c.l.b16 %v811
  %v1456 = vunpack.c.l.b16 %v812
  %v1457 = vunpack.c.l.b16 %v813
  %v1458 = vunpack.c.l.b16 %v814
  %v1459 = vunpack.c.l.b16 %v815
  %v1460 = vunpack.c.l.b16 %v816
  %v1461 = vunpack.c.l.b16 %v817
  %v1462 = vunpack.c.l.b16 %v818
  %v1463 = vunpack.c.l.b16 %v819
  %v1464 = vunpack.c.l.b16 %v820
  %v1465 = vunpack.c.l.b16 %v821
  %v1466 = vunpack.c.l.b16 %v822
  %v1467 = vunpack.c.l.b16 %v823
  %v1468 = vunpack.c.l.b16 %v824
  %v1469 = vunpack.c.l.b16 %v825
  %v1470 = vunpack.c.l.b16 %v826
  %v1471 = vunpack.c.l.b16 %v827
  %v1472 = vunpack.c.l.b16 %v828
  %v1473 = vunpack.c.l.b16 %v829
  %v1474 = vunpack.c.l.b16 %v830
  %v1475 = vunpack.c.l.b16 %v831
  %v1476 = vunpack.c.l.b16 %v832
  %v1477 = vunpack.c.l.b16 %v833
  %v1478 = vunpack.c.l.b16 %v834
  %v1479 = vunpack.c.l.b16 %v835
  %v1480 = vunpack.c.l.b16 %v836
  %v1481 = vunpack.c.l.b16 %v837
  %v1482 = vunpack.c.l.b16 %v838
  %v1483 = vunpack.c.l.b16 %v839
  %v1484 = vunpack.c.l.b16 %v840
  %v1485 = vunpack.c.l.b16 %v841
  %v1486 = vunpack.c.l.b16 %v842
  %v1487 = vunpack.c.l.b16 %v843
  %v1488 = vunpack.c.l.b16 %v844
  %v1489 = vunpack.c.l.b16 %v845
  %v1490 = vunpack.c.l.b16 %v846
  %v1491 = vunpack.c.l.b16 %v847
  %v1492 = vunpack.c.l.b16 %v848
  %v1493 = vunpack.c.l.b16 %v849
  %v1494 = vunpack.c.l.b16 %v850
  %v1495 = vunpack.c.l.b16 %v851
  %v1496 = vunpack.c.l.b16 %v852
  %v1497 = vunpack.c.l.b16 %v853
  %v1498 = vunpack.c.l.b16 %v854
  %v1499 = vunpack.c.l.b16 %v855
  %v1500 = vunpack.c.l.b16 %v856
  %v1501 = vunpack.c.l.b16 %v857
  %v1502 = vunpack.c.l.b16 %v858
  %v1503 = vunpack.c.l.b16 %v859
  %v1504 = vunpack.c.l.b16 %v860
  %v1505 = vunpack.c.l.b16 %v861
  %v1506 = vunpack.c.l.b16 %v862
  %v1507 = vunpack.c.l.b16 %v863
  %v1508 = vunpack.c.l.b16 %v864
  %v1509 = vunpack.c.l.b16 %v865
  %v1510 = vunpack.c.l.b16 %v866
  %v1511 = vunpack.c.l.b16 %v867
  %v1512 = vunpack.c.l.b16 %v868
  %v1513 = vunpack.c.l.b16 %v869
  %v1514 = vunpack.c.l.b16 %v870
  %v1515 = vunpack.c.l.b16 %v871
  %v1516 = vunpack.c.l.b16 %v872
  %v1517 = vunpack.c.l.b16 %v873
  %v1518 = vunpack.c.l.b16 %v874
  %v1519 = vunpack.c.l.b16 %v875
  %v1520 = vunpack.c.l.b16 %v876
  %v1521 = vunpack.c.l.b16 %v877
  %v1522 = vunpack.c.l.b16 %v878
  %v1523 = vunpack.c.l.b16 %v879
  %v1524 = vunpack.c.l.b16 %v880
  %v1525 = vunpack.c.l.b16 %v881
  %v1526 = vunpack.c.l.b16 %v882
  %v1527 = vunpack.c.l.b16 %v883
  %v1528 = vunpack.c.l.b16 %v884
  %v1529 = vunpack.c.l.b16 %v885
  %v1530 = vunpack.c.l.b16 %v886
  %v1531 = vunpack.c.l.b16 %v887
  %v1532 = vunpack.c.l.b16 %v888
  %v1533 = vunpack.c.l.b16 %v889
  %v1534 = vunpack.c.l.b16 %v890
  %v1535 = vunpack.c.l.b16 %v891
  %v1536 = vunpack.c.l.b16 %v892
  %v1537 = vunpack.c.l.b16 %v893
  %v1538 = vunpack.c.l.b16 %v894
  %v1539 = vunpack.c.l.b16 %v895
  %v1540 = vunpack.c.l.b16 %v896
  %v1541 = vunpack.c.l.b16 %v897
  %v1542 = vunpack.c.l.b16 %v898
  %v1543 = vunpack.c.l.b16 %v899
  %v1544 = vunpack.c.l.b16 %v900
  %v1545 = vunpack.c.l.b16 %v901
  %v1546 = vunpack.c.l.b16 %v902
  %v1547 = vunpack.c.l.b16 %v903
  %v1548 = vunpack.c.l.b16 %v904
  %v1549 = vunpack.c.l.b16 %v905
  %v1550 = vunpack.c.l.b16 %v906
  %v1551 = vunpack.c.l.b16 %v907
  %v1552 = vunpack.c.l.b16 %v908
  %v1553 = vunpack.c.l.b16 %v909
  %v1554 = vunpack.c.l.b16 %v910
  %v1555 = vunpack.c.l.b16 %v911
  %v1556 = vunpack.c.l.b16 %v912
  %v1557 = vunpack.c.l.b16 %v913
  %v1558 = vunpack.c.l.b16 %v914
  %v1559 = vunpack.c.l.b16 %v915
  %v1560 = vunpack.c.l.b16 %v916
  %v1561 = vunpack.c.l.b16 %v917
  %v1562 = vunpack.c.l.b16 %v918
  %v1563 = vunpack.c.l.b16 %v919
  %v1564 = vunpack.c.l.b16 %v920
  %v1565 = vunpack.c.l.b16 %v921
  %v1566 = vunpack.c.l.b16 %v922
  %v1567 = vunpack.c.l.b16 %v923
  %v1568 = vunpack.c.l.b16 %v924
  %v1569 = vunpack.c.l.b16 %v925
  %v1570 = vunpack.c.l.b16 %v926
  %v1571 = vunpack.c.l.b16 %v927
  %v1572 = vunpack.c.l.b16 %v928
  %v1573 = vunpack.c.l.b16 %v929
  %v1574 = vunpack.c.l.b16 %v930
  %v1575 = vunpack.c.l.b16 %v931
  %v1576 = vunpack.c.l.b16 %v932
  %v1577 = vunpack.c.l.b16 %v933
  %v1578 = vunpack.c.l.b16 %v934
  %v1579 = vunpack.c.l.b16 %v935
  %v1580 = vunpack.c.l.b16 %v936
  %v1581 = vunpack.c.l.b16 %v937
  %v1582 = vunpack.c.l.b16 %v938
  %v1583 = vunpack.c.l.b16 %v939
  %v1584 = vunpack.c.l.b16 %v940
  %v1585 = vunpack.c.l.b16 %v941
  %v1586 = vunpack.c.l.b16 %v942
  %v1587 = vunpack.c.l.b16 %v943
  %v1588 = vunpack.c.l.b16 %v944
  %v1589 = vunpack.c.l.b16 %v945
  %v1590 = vunpack.c.l.b16 %v946
  %v1591 = vunpack.c.l.b16 %v947
  %v1592 = vunpack.c.l.b16 %v948
  %v1593 = vunpack.c.l.b16 %v949
  %v1594 = vunpack.c.l.b16 %v950
  %v1595 = vunpack.c.l.b16 %v951
  %v1596 = vunpack.c.l.b16 %v952
  %v1597 = vunpack.c.l.b16 %v953
  %v1598 = vunpack.c.l.b16 %v954
  %v1599 = vunpack.c.l.b16 %v955
  %v1600 = vunpack.c.l.b16 %v956
  %v1601 = vunpack.c.l.b16 %v957
  %v1602 = vunpack.c.l.b16 %v958
  %v1603 = vunpack.c.l.b16 %v959
  %v1604 = vunpack.c.l.b16 %v960
  %v1605 = vunpack.c.l.b16 %v961
  %v1606 = vunpack.c.l.b16 %v962
  %v1607 = vunpack.c.l.b16 %v963
  %v1608 = vunpack.c.l.b16 %v964
  %v1609 = vunpack.c.l.b16 %v965
  %v1610 = vunpack.c.l.b16 %v966
  %v1611 = vunpack.c.l.b16 %v967
  %v1612 = vunpack.c.l.b16 %v968
  %v1613 = vunpack.c.l.b16 %v969
  %v1614 = vunpack.c.l.b16 %v970
  %v1615 = vunpack.c.l.b16 %v971
  %v1616 = vunpack.c.l.b16 %v972
  %v1617 = vunpack.c.l.b16 %v973
  %v1618 = vunpack.c.l.b16 %v974
  %v1619 = vunpack.c.l.b16 %v975
  %v1620 = vunpack.c.l.b16 %v976
  %v1621 = vunpack.c.l.b16 %v977
  %v1622 = vunpack.c.l.b16 %v978
  %v1623 = vunpack.c.l.b16 %v979
  %v1624 = vunpack.c.l.b16 %v980
  %v1625 = vunpack.c.l.b16 %v981
  %v1626 = vunpack.c.l.b16 %v982
  %v1627 = vunpack.c.l.b16 %v983
  %v1628 = vunpack.c.l.b16 %v984
  %v1629 = vunpack.c.l.b16 %v985
  %v1630 = vunpack.c.l.b16 %v986
  %v1631 = vunpack.c.l.b16 %v987
  %v1632 = vunpack.c.l.b16 %v988
  %v1633 = vunpack.c.l.b16 %v989
  %v1634 = vunpack.c.l.b16 %v990
  %v1635 = vunpack.c.l.b16 %v991
  %v1636 = vunpack.c.l.b16 %v992
  %v1637 = vunpack.c.l.b16 %v993
  %v1638 = vunpack.c.l.b16 %v994
  %v1639 = vunpack.c.l.b16 %v995
  %v1640 = vunpack.c.l.b16 %v996
  %v1641 = vunpack.c.l.b16 %v997
  %v1642 = vunpack.c.l.b16 %v998
  %v1643 = vunpack.c.l.b16 %v999
  %v1644 = vunpack.c.l.b16 %v1000
  %v1645 = vunpack.c.l.b16 %v1001
  %v1646 = vunpack.c.l.b16 %v1002
  %v1647 = vunpack.c.l.b16 %v1003
  %v1648 = vunpack.c.l.b16 %v1004
  %v1649 = vunpack.c.l.b16 %v1005
  %v1650 = vunpack.c.l.b16 %v1006
  %v1651 = vunpack.c.l.b16 %v1007
  %v1652 = vunpack.c.l.b16 %v1008
  %v1653 = vunpack.c.l.b16 %v1009
  %v1654 = vunpack.c.l.b16 %v1010
  %v1655 = vunpack.c.l.b16 %v1011
  %v1656 = vunpack.c.l.b16 %v1012
  %v1657 = vunpack.c.l.b16 %v1013
  %v1658 = vunpack.c.l.b16 %v1014
  %v1659 = vunpack.c.l.b16 %v1015
  %v1660 = vunpack.c.l.b16 %v1016
  %v1661 = vunpack.c.l.b16 %v1017
  %v1662 = vunpack.c.l.b16 %v1018
  %v1663 = vunpack.c.l.b16 %v1019
  %v1664 = vunpack.c.l.b16 %v1020
  %v1665 = vunpack.c.l.b16 %v1021
  %v1666 = vunpack.c.l.b16 %v1022
  %v1667 = vunpack.c.l.b16 %v1023
  %v1668 = vunpack.c.l.b16 %v1024
  %v1669 = vunpack.c.l.b16 %v1025
  %v1670 = vunpack.c.l.b16 %v1026
  %v1671 = vunpack.c.l.b16 %v1027
  %v1672 = vunpack.c.l.b16 %v1028
  %v1673 = vunpack.c.l.b16 %v1029
  %v1674 = vunpack.c.l.b16 %v1030
  %v1675 = vunpack.c.l.b16 %v1031
  %v1676 = vunpack.c.l.b16 %v1032
  %v1677 = vunpack.c.l.b16 %v1033
  %v1678 = vunpack.c.l.b16 %v1034
  %v1679 = vunpack.c.l.b16 %v1035
  %v1680 = vunpack.c.l.b16 %v1036
  %v1681 = vunpack.c.l.b16 %v1037
  %v1682 = vunpack.c.l.b16 %v1038
  %v1683 = vunpack.c.l.b16 %v1039
  %v1684 = vunpack.c.l.b16 %v1040
  %v1685 = vunpack.c.l.b16 %v1041
  %v1686 = vunpack.c.l.b16 %v1042
  %v1687 = vunpack.c.l.b16 %v1043
  %v1688 = vunpack.c.l.b16 %v1044
  %v1689 = vunpack.c.l.b16 %v1045
  %v1690 = vunpack.c.l.b16 %v1046
  %v1691 = vunpack.c.l.b16 %v1047
  %v1692 = vunpack.c.l.b16 %v1048
  %v1693 = vunpack.c.l.b16 %v1049
  %v1694 = vunpack.c.l.b16 %v1050
  %v1695 = vunpack.c.l.b16 %v1051
  %v1696 = vunpack.c.l.b16 %v1052
  %v1697 = vunpack.c.l.b16 %v1053
  %v1698 = vunpack.c.l.b16 %v1054
  %v1699 = vunpack.c.l.b16 %v1055
  %v1700 = vunpack.c.l.b16 %v1056
  %v1701 = vunpack.c.l.b16 %v1057
  %v1702 = vunpack.c.l.b16 %v1058
  %v1703 = vunpack.c.l.b16 %v1059
  %v1704 = vunpack.c.l.b16 %v1060
  %v1705 = vunpack.c.l.b16 %v1061
  %v1706 = vunpack.c.l.b16 %v1062
  %v1707 = vunpack.c.l.b16 %v1063
  %v1708 = vunpack.c.l.b16 %v1064
  %v1709 = vunpack.c.l.b16 %v1065
  %v1710 = vunpack.c.l.b16 %v1066
  %v1711 = vunpack.c.l.b16 %v1067
  %v1712 = vunpack.c.l.b16 %v1068
  %v1713 = vunpack.c.l.b16 %v1069
  %v1714 = vunpack.c.l.b16 %v1070
  %v1715 = vunpack.c.l.b16 %v1071
  %v1716 = vunpack.c.l.b16 %v1072
  %v1717 = vunpack.c.l.b16 %v1073
  %v1718 = vunpack.c.l.b16 %v1074
  %v1719 = vunpack.c.l.b16 %v1075
  %v1720 = vunpack.c.l.b16 %v1076
  %v1721 = vunpack.c.l.b16 %v1077
  %v1722 = vunpack.c.l.b16 %v1078
  %v1723 = vunpack.c.l.b16 %v1079
  %v1724 = vunpack.c.l.b16 %v1080
  %v1725 = vunpack.c.l.b16 %v1081
  %v1726 = vunpack.c.l.b16 %v1082
  %v1727 = vunpack.c.l.b16 %v1083
  %v1728 = vunpack.c.l.b16 %v1084
  %v1729 = vunpack.c.l.b16 %v1085
  %v1730 = vunpack.c.l.b16 %v1086
  %v1731 = vunpack.c.l.b16 %v1087
  %v1732 = vunpack.c.l.b16 %v1088
  %v1733 = vunpack.c.l.b16 %v1089
  %v1734 = vunpack.c.l.b16 %v1090
  %v1735 = vunpack.c.l.b16 %v1091
  %v1736 = vunpack.c.l.b16 %v1092
  %v1737 = vunpack.c.l.b16 %v1093
  %v1738 = vunpack.c.l.b16 %v1094
  %v1739 = vunpack.c.l.b16 %v1095
  %v1740 = vunpack.c.l.b16 %v1096
  %v1741 = vunpack.c.l.b16 %v1097
  %v1742 = vunpack.c.l.b16 %v1098
  %v1743 = vunpack.c.l.b16 %v1099
  %v1744 = vunpack.c.l.b16 %v1100
  %v1745 = vunpack.c.l.b16 %v1101
  %v1746 = vunpack.c.l.b16 %v1102
  %v1747 = vunpack.c.l.b16 %v1103
  %v1748 = vunpack.c.l.b16 %v1104
  %v1749 = vunpack.c.l.b16 %v1105
  %v1750 = vunpack.c.l.b16 %v1106
  %v1751 = vpack.c.b16 %v1432, %v1431
  %v1752 = vpack.c.b16 %v1434, %v1433
  %v1753 = vpack.c.b16 %v1436, %v1435
  %v1754 = vpack.c.b16 %v1438, %v1437
  %v1755 = vpack.c.b16 %v1440, %v1439
  %v1756 = vpack.c.b16 %v1442, %v1441
  %v1757 = vpack.c.b16 %v1444, %v1443
  %v1758 = vpack.c.b16 %v1446, %v1445
  %v1759 = vpack.c.b16 %v1448, %v1447
  %v1760 = vpack.c.b16 %v1450, %v1449
  %v1761 = vpack.c.b16 %v1452, %v1451
  %v1762 = vpack.c.b16 %v1454, %v1453
  %v1763 = vpack.c.b16 %v1456, %v1455
  %v1764 = vpack.c.b16 %v1458, %v1457
  %v1765 = vpack.c.b16 %v1460, %v1459
  %v1766 = vpack.c.b16 %v1462, %v1461
  %v1767 = vpack.c.b16 %v1464, %v1463
  %v1768 = vpack.c.b16 %v1466, %v1465
  %v1769 = vpack.c.b16 %v1468, %v1467
  %v1770 = vpack.c.b16 %v1470, %v1469
  %v1771 = vpack.c.b16 %v1472, %v1471
  %v1772 = vpack.c.b16 %v1474, %v1473
  %v1773 = vpack.c.b16 %v1476, %v1475
  %v1774 = vpack.c.b16 %v1478, %v1477
  %v1775 = vpack.c.b16 %v1480, %v1479
  %v1776 = vpack.c.b16 %v1482, %v1481
  %v1777 = vpack.c.b16 %v1484, %v1483
  %v1778 = vpack.c.b16 %v1486, %v1485
  %v1779 = vpack.c.b16 %v1488, %v1487
  %v1780 = vpack.c.b16 %v1490, %v1489
  %v1781 = vpack.c.b16 %v1492, %v1491
  %v1782 = vpack.c.b16 %v1494, %v1493
  %v1783 = vpack.c.b16 %v1496, %v1495
  %v1784 = vpack.c.b16 %v1498, %v1497
  %v1785 = vpack.c.b16 %v1500, %v1499
  %v1786 = vpack.c.b16 %v1502, %v1501
  %v1787 = vpack.c.b16 %v1504, %v1503
  %v1788 = vpack.c.b16 %v1506, %v1505
  %v1789 = vpack.c.b16 %v1508, %v1507
  %v1790 = vpack.c.b16 %v1510, %v1509
  %v1791 = vpack.c.b16 %v1512, %v1511
  %v1792 = vpack.c.b16 %v1514, %v1513
  %v1793 = vpack.c.b16 %v1516, %v1515
  %v1794 = vpack.c.b16 %v1518, %v1517
  %v1795 = vpack.c.b16 %v1520, %v1519
  %v1796 = vpack.c.b16 %v1522, %v1521
  %v1797 = vpack.c.b16 %v1524, %v1523
  %v1798 = vpack.c.b16 %v1526, %v1525
  %v1799 = vpack.c.b16 %v1528, %v1527
  %v1800 = vpack.c.b16 %v1530, %v1529
  %v1801 = vpack.c.b16 %v1532, %v1531
  %v1802 = vpack.c.b16 %v1534, %v1533
  %v1803 = vpack.c.b16 %v1536, %v1535
  %v1804 = vpack.c.b16 %v1538, %v1537
  %v1805 = vpack.c.b16 %v1540, %v1539
  %v1806 = vpack.c.b16 %v1542, %v1541
  %v1807 = vpack.c.b16 %v1544, %v1543
  %v1808 = vpack.c.b16 %v1546, %v1545
  %v1809 = vpack.c.b16 %v1548, %v1547
  %v1810 = vpack.c.b16 %v1550, %v1549
  %v1811 = vpack.c.b16 %v1552, %v1551
  %v1812 = vpack.c.b16 %v1554, %v1553
  %v1813 = vpack.c.b16 %v1556, %v1555
  %v1814 = vpack.c.b16 %v1558, %v1557
  %v1815 = vpack.c.b16 %v1560, %v1559
  %v1816 = vpack.c.b16 %v1562, %v1561
  %v1817 = vpack.c.b16 %v1564, %v1563
  %v1818 = vpack.c.b16 %v1566, %v1565
  %v1819 = vpack.c.b16 %v1568, %v1567
  %v1820 = vpack.c.b16 %v1570, %v1569
  %v1821 = vpack.c.b16 %v1572, %v1571
  %v1822 = vpack.c.b16 %v1574, %v1573
  %v1823 = vpack.c.b16 %v1576, %v1575
  %v1824 = vpack.c.b16 %v1578, %v1577
  %v1825 = vpack.c.b16 %v1580, %v1579
  %v1826 = vpack.c.b16 %v1582, %v1581
  %v1827 = vpack.c.b16 %v1584, %v1583
  %v1828 = vpack.c.b16 %v1586, %v1585
  %v1829 = vpack.c.b16 %v1588, %v1587
  %v1830 = vpack.c.b16 %v1590, %v1589
  %v1831 = vpack.c.b16 %v1592, %v1591
  %v1832 = vpack.c.b16 %v1594, %v1593
  %v1833 = vpack.c.b16 %v1596, %v1595
  %v1834 = vpack.c.b16 %v1598, %v1597
  %v1835 = vpack.c.b16 %v1600, %v1599
  %v1836 = vpack.c.b16 %v1602, %v1601
  %v1837 = vpack.c.b16 %v1604, %v1603
  %v1838 = vpack.c.b16 %v1606, %v1605
  %v1839 = vpack.c.b16 %v1608, %v1607
  %v1840 = vpack.c.b16 %v1610, %v1609
  %v1841 = vpack.c.b16 %v1612, %v1611
  %v1842 = vpack.c.b16 %v1614, %v1613
  %v1843 = vpack.c.b16 %v1616, %v1615
  %v1844 = vpack.c.b16 %v1618, %v1617
  %v1845 = vpack.c.b16 %v1620, %v1619
  %v1846 = vpack.c.b16 %v1622, %v1621
  %v1847 = vpack.c.b16 %v1624, %v1623
  %v1848 = vpack.c.b16 %v1626, %v1625
  %v1849 = vpack.c.b16 %v1628, %v1627
  %v1850 = vpack.c.b16 %v1630, %v1629
  %v1851 = vpack.c.b16 %v1632, %v1631
  %v1852 = vpack.c.b16 %v1634, %v1633
  %v1853 = vpack.c.b16 %v1636, %v1635
  %v1854 = vpack.c.b16 %v1638, %v1637
  %v1855 = vpack.c.b16 %v1640, %v1639
  %v1856 = vpack.c.b16 %v1642, %v1641
  %v1857 = vpack.c.b16 %v1644, %v1643
  %v1858 = vpack.c.b16 %v1646, %v1645
  %v1859 = vpack.c.b16 %v1648, %v1647
  %v1860 = vpack.c.b16 %v1650, %v1649
  %v1861 = vpack.c.b16 %v1652, %v1651
  %v1862 = vpack.c.b16 %v1654, %v1653
  %v1863 = vpack.c.b16 %v1656, %v1655
  %v1864 = vpack.c.b16 %v1658, %v1657
  %v1865 = vpack.c.b16 %v1660, %v1659
  %v1866 = vpack.c.b16 %v1662, %v1661
  %v1867 = vpack.c.b16 %v1664, %v1663
  %v1868 = vpack.c.b16 %v1666, %v1665
  %v1869 = vpack.c.b16 %v1668, %v1667
  %v1870 = vpack.c.b16 %v1670, %v1669
  %v1871 = vpack.c.b16 %v1672, %v1671
  %v1872 = vpack.c.b16 %v1674, %v1673
  %v1873 = vpack.c.b16 %v1676, %v1675
  %v1874 = vpack.c.b16 %v1678, %v1677
  %v1875 = vpack.c.b16 %v1680, %v1679
  %v1876 = vpack.c.b16 %v1682, %v1681
  %v1877 = vpack.c.b16 %v1684, %v1683
  %v1878 = vpack.c.b16 %v1686, %v1685
  %v1879 = vpack.c.b16 %v1688, %v1687
  %v1880 = vpack.c.b16 %v1690, %v1689
  %v1881 = vpack.c.b16 %v1692, %v1691
  %v1882 = vpack.c.b16 %v1694, %v1693
  %v1883 = vpack.c.b16 %v1696, %v1695
  %v1884 = vpack.c.b16 %v1698, %v1697
  %v1885 = vpack.c.b16 %v1700, %v1699
  %v1886 = vpack.c.b16 %v1702, %v1701
  %v1887 = vpack.c.b16 %v1704, %v1703
  %v1888 = vpack.c.b16 %v1706, %v1705
  %v1889 = vpack.c.b16 %v1708, %v1707
  %v1890 = vpack.c.b16 %v1710, %v1709
  %v1891 = vpack.c.b16 %v1712, %v1711
  %v1892 = vpack.c.b16 %v1714, %v1713
  %v1893 = vpack.c.b16 %v1716, %v1715
  %v1894 = vpack.c.b16 %v1718, %v1717
  %v1895 = vpack.c.b16 %v1720, %v1719
  %v1896 = vpack.c.b16 %v1722, %v1721
  %v1897 = vpack.c.b16 %v1724, %v1723
  %v1898 = vpack.c.b16 %v1726, %v1725
  %v1899 = vpack.c.b16 %v1728, %v1727
  %v1900 = vpack.c.b16 %v1730, %v1729
  %v1901 = vpack.c.b16 %v1732, %v1731
  %v1902 = vpack.c.b16 %v1734, %v1733
  %v1903 = vpack.c.b16 %v1736, %v1735
  %v1904 = vpack.c.b16 %v1738, %v1737
  %v1905 = vpack.c.b16 %v1740, %v1739
  %v1906 = vpack.c.b16 %v1742, %v1741
  %v1907 = vpack.c.b16 %v1744, %v1743
  %v1908 = vpack.c.b16 %v1746, %v1745
  %v1909 = vpack.c.b16 %v1748, %v1747
  %v1910 = vpack.c.b16 %v1750, %v1749
  %2071 = vmatpush.bf16.msra.mxu0 %v1758
  %2072 = vmatpush.bf16.msra.mxu0 %v1757
  %2073 = vmatpush.bf16.msra.mxu0 %v1756
  %2074 = vmatpush.bf16.msra.mxu0 %v1755
  %2075 = vmatpush.bf16.msra.mxu0 %v1754
  %2076 = vmatpush.bf16.msra.mxu0 %v1753
  %2077 = vmatpush.bf16.msra.mxu0 %v1752
  %2078 = vmatpush.bf16.msra.mxu0 %v1751
  %2079 = vmatmul.bf16.gmra.mxu0 %v499
  %v2080 = vpop.f32.mrf.mxu0
  %v2081 = vadd.f32 %v1109, %v2080
  %v2082 = vpop.f32.mrf.mxu0
  %v2083 = vadd.f32 %v1109, %v2082
  %2084 = vmatmul.bf16.gmra.mxu0 %v503
  %v2085 = vpop.f32.mrf.mxu0
  %v2086 = vadd.f32 %v1109, %v2085
  %v2087 = vpop.f32.mrf.mxu0
  %v2088 = vadd.f32 %v1109, %v2087
  %2089 = vmatmul.bf16.gmra.mxu0 %v507
  %v2090 = vpop.f32.mrf.mxu0
  %v2091 = vadd.f32 %v1109, %v2090
  %v2092 = vpop.f32.mrf.mxu0
  %v2093 = vadd.f32 %v1109, %v2092
  %2094 = vmatmul.bf16.gmra.mxu0 %v511
  %v2095 = vpop.f32.mrf.mxu0
  %v2096 = vadd.f32 %v1109, %v2095
  %v2097 = vpop.f32.mrf.mxu0
  %v2098 = vadd.f32 %v1109, %v2097
  %2099 = vdwg.mxu0
  %2100 = vmatpush.bf16.msra.mxu0 %v1766
  %2101 = vmatpush.bf16.msra.mxu0 %v1765
  %2102 = vmatpush.bf16.msra.mxu0 %v1764
  %2103 = vmatpush.bf16.msra.mxu0 %v1763
  %2104 = vmatpush.bf16.msra.mxu0 %v1762
  %2105 = vmatpush.bf16.msra.mxu0 %v1761
  %2106 = vmatpush.bf16.msra.mxu0 %v1760
  %2107 = vmatpush.bf16.msra.mxu0 %v1759
  %2108 = vmatmul.bf16.gmra.mxu0 %v500
  %v2109 = vpop.f32.mrf.mxu0
  %v2110 = vadd.f32 %v2081, %v2109
  %v2111 = vpop.f32.mrf.mxu0
  %v2112 = vadd.f32 %v2083, %v2111
  %2113 = vmatmul.bf16.gmra.mxu0 %v504
  %v2114 = vpop.f32.mrf.mxu0
  %v2115 = vadd.f32 %v2086, %v2114
  %v2116 = vpop.f32.mrf.mxu0
  %v2117 = vadd.f32 %v2088, %v2116
  %2118 = vmatmul.bf16.gmra.mxu0 %v508
  %v2119 = vpop.f32.mrf.mxu0
  %v2120 = vadd.f32 %v2091, %v2119
  %v2121 = vpop.f32.mrf.mxu0
  %v2122 = vadd.f32 %v2093, %v2121
  %2123 = vmatmul.bf16.gmra.mxu0 %v512
  %v2124 = vpop.f32.mrf.mxu0
  %v2125 = vadd.f32 %v2096, %v2124
  %v2126 = vpop.f32.mrf.mxu0
  %v2127 = vadd.f32 %v2098, %v2126
  %2128 = vdwg.mxu0
  %2129 = vmatpush.bf16.msra.mxu0 %v1774
  %2130 = vmatpush.bf16.msra.mxu0 %v1773
  %2131 = vmatpush.bf16.msra.mxu0 %v1772
  %2132 = vmatpush.bf16.msra.mxu0 %v1771
  %2133 = vmatpush.bf16.msra.mxu0 %v1770
  %2134 = vmatpush.bf16.msra.mxu0 %v1769
  %2135 = vmatpush.bf16.msra.mxu0 %v1768
  %2136 = vmatpush.bf16.msra.mxu0 %v1767
  %2137 = vmatmul.bf16.gmra.mxu0 %v501
  %v2138 = vpop.f32.mrf.mxu0
  %v2139 = vadd.f32 %v2110, %v2138
  %v2140 = vpop.f32.mrf.mxu0
  %v2141 = vadd.f32 %v2112, %v2140
  %2142 = vmatmul.bf16.gmra.mxu0 %v505
  %v2143 = vpop.f32.mrf.mxu0
  %v2144 = vadd.f32 %v2115, %v2143
  %v2145 = vpop.f32.mrf.mxu0
  %v2146 = vadd.f32 %v2117, %v2145
  %2147 = vmatmul.bf16.gmra.mxu0 %v509
  %v2148 = vpop.f32.mrf.mxu0
  %v2149 = vadd.f32 %v2120, %v2148
  %v2150 = vpop.f32.mrf.mxu0
  %v2151 = vadd.f32 %v2122, %v2150
  %2152 = vmatmul.bf16.gmra.mxu0 %v513
  %v2153 = vpop.f32.mrf.mxu0
  %v2154 = vadd.f32 %v2125, %v2153
  %v2155 = vpop.f32.mrf.mxu0
  %v2156 = vadd.f32 %v2127, %v2155
  %2157 = vdwg.mxu0
  %2158 = vmatpush.bf16.msra.mxu0 %v1782
  %2159 = vmatpush.bf16.msra.mxu0 %v1781
  %2160 = vmatpush.bf16.msra.mxu0 %v1780
  %2161 = vmatpush.bf16.msra.mxu0 %v1779
  %2162 = vmatpush.bf16.msra.mxu0 %v1778
  %2163 = vmatpush.bf16.msra.mxu0 %v1777
  %2164 = vmatpush.bf16.msra.mxu0 %v1776
  %2165 = vmatpush.bf16.msra.mxu0 %v1775
  %2166 = vmatmul.bf16.gmra.mxu0 %v502
  %v2167 = vpop.f32.mrf.mxu0
  %v2168 = vadd.f32 %v2139, %v2167
  %v2169 = vpop.f32.mrf.mxu0
  %v2170 = vadd.f32 %v2141, %v2169
  %2171 = vmatmul.bf16.gmra.mxu0 %v506
  %v2172 = vpop.f32.mrf.mxu0
  %v2173 = vadd.f32 %v2144, %v2172
  %v2174 = vpop.f32.mrf.mxu0
  %v2175 = vadd.f32 %v2146, %v2174
  %2176 = vmatmul.bf16.gmra.mxu0 %v510
  %v2177 = vpop.f32.mrf.mxu0
  %v2178 = vadd.f32 %v2149, %v2177
  %v2179 = vpop.f32.mrf.mxu0
  %v2180 = vadd.f32 %v2151, %v2179
  %2181 = vmatmul.bf16.gmra.mxu0 %v514
  %v2182 = vpop.f32.mrf.mxu0
  %v2183 = vadd.f32 %v2154, %v2182
  %v2184 = vpop.f32.mrf.mxu0
  %v2185 = vadd.f32 %v2156, %v2184
  %2186 = vdwg.mxu0
  %2187 = vmatpush.bf16.msra.mxu0 %v1790
  %2188 = vmatpush.bf16.msra.mxu0 %v1789
  %2189 = vmatpush.bf16.msra.mxu0 %v1788
  %2190 = vmatpush.bf16.msra.mxu0 %v1787
  %2191 = vmatpush.bf16.msra.mxu0 %v1786
  %2192 = vmatpush.bf16.msra.mxu0 %v1785
  %2193 = vmatpush.bf16.msra.mxu0 %v1784
  %2194 = vmatpush.bf16.msra.mxu0 %v1783
  %2195 = vmatmul.bf16.gmra.mxu0 %v563
  %v2196 = vpop.f32.mrf.mxu0
  %v2197 = vadd.f32 %v2168, %v2196
  %v2198 = vpop.f32.mrf.mxu0
  %v2199 = vadd.f32 %v2170, %v2198
  %2200 = vmatmul.bf16.gmra.mxu0 %v567
  %v2201 = vpop.f32.mrf.mxu0
  %v2202 = vadd.f32 %v2173, %v2201
  %v2203 = vpop.f32.mrf.mxu0
  %v2204 = vadd.f32 %v2175, %v2203
  %2205 = vmatmul.bf16.gmra.mxu0 %v571
  %v2206 = vpop.f32.mrf.mxu0
  %v2207 = vadd.f32 %v2178, %v2206
  %v2208 = vpop.f32.mrf.mxu0
  %v2209 = vadd.f32 %v2180, %v2208
  %2210 = vmatmul.bf16.gmra.mxu0 %v575
  %v2211 = vpop.f32.mrf.mxu0
  %v2212 = vadd.f32 %v2183, %v2211
  %v2213 = vpop.f32.mrf.mxu0
  %v2214 = vadd.f32 %v2185, %v2213
  %2215 = vdwg.mxu0
  %2216 = vmatpush.bf16.msra.mxu0 %v1798
  %2217 = vmatpush.bf16.msra.mxu0 %v1797
  %2218 = vmatpush.bf16.msra.mxu0 %v1796
  %2219 = vmatpush.bf16.msra.mxu0 %v1795
  %2220 = vmatpush.bf16.msra.mxu0 %v1794
  %2221 = vmatpush.bf16.msra.mxu0 %v1793
  %2222 = vmatpush.bf16.msra.mxu0 %v1792
  %2223 = vmatpush.bf16.msra.mxu0 %v1791
  %2224 = vmatmul.bf16.gmra.mxu0 %v564
  %v2225 = vpop.f32.mrf.mxu0
  %v2226 = vadd.f32 %v2197, %v2225
  %v2227 = vpop.f32.mrf.mxu0
  %v2228 = vadd.f32 %v2199, %v2227
  %2229 = vmatmul.bf16.gmra.mxu0 %v568
  %v2230 = vpop.f32.mrf.mxu0
  %v2231 = vadd.f32 %v2202, %v2230
  %v2232 = vpop.f32.mrf.mxu0
  %v2233 = vadd.f32 %v2204, %v2232
  %2234 = vmatmul.bf16.gmra.mxu0 %v572
  %v2235 = vpop.f32.mrf.mxu0
  %v2236 = vadd.f32 %v2207, %v2235
  %v2237 = vpop.f32.mrf.mxu0
  %v2238 = vadd.f32 %v2209, %v2237
  %2239 = vmatmul.bf16.gmra.mxu0 %v576
  %v2240 = vpop.f32.mrf.mxu0
  %v2241 = vadd.f32 %v2212, %v2240
  %v2242 = vpop.f32.mrf.mxu0
  %v2243 = vadd.f32 %v2214, %v2242
  %2244 = vdwg.mxu0
  %2245 = vmatpush.bf16.msra.mxu0 %v1806
  %2246 = vmatpush.bf16.msra.mxu0 %v1805
  %2247 = vmatpush.bf16.msra.mxu0 %v1804
  %2248 = vmatpush.bf16.msra.mxu0 %v1803
  %2249 = vmatpush.bf16.msra.mxu0 %v1802
  %2250 = vmatpush.bf16.msra.mxu0 %v1801
  %2251 = vmatpush.bf16.msra.mxu0 %v1800
  %2252 = vmatpush.bf16.msra.mxu0 %v1799
  %2253 = vmatmul.bf16.gmra.mxu0 %v565
  %v2254 = vpop.f32.mrf.mxu0
  %v2255 = vadd.f32 %v2226, %v2254
  %v2256 = vpop.f32.mrf.mxu0
  %v2257 = vadd.f32 %v2228, %v2256
  %2258 = vmatmul.bf16.gmra.mxu0 %v569
  %v2259 = vpop.f32.mrf.mxu0
  %v2260 = vadd.f32 %v2231, %v2259
  %v2261 = vpop.f32.mrf.mxu0
  %v2262 = vadd.f32 %v2233, %v2261
  %2263 = vmatmul.bf16.gmra.mxu0 %v573
  %v2264 = vpop.f32.mrf.mxu0
  %v2265 = vadd.f32 %v2236, %v2264
  %v2266 = vpop.f32.mrf.mxu0
  %v2267 = vadd.f32 %v2238, %v2266
  %2268 = vmatmul.bf16.gmra.mxu0 %v577
  %v2269 = vpop.f32.mrf.mxu0
  %v2270 = vadd.f32 %v2241, %v2269
  %v2271 = vpop.f32.mrf.mxu0
  %v2272 = vadd.f32 %v2243, %v2271
  %2273 = vdwg.mxu0
  %2274 = vmatpush.bf16.msra.mxu0 %v1814
  %2275 = vmatpush.bf16.msra.mxu0 %v1813
  %2276 = vmatpush.bf16.msra.mxu0 %v1812
  %2277 = vmatpush.bf16.msra.mxu0 %v1811
  %2278 = vmatpush.bf16.msra.mxu0 %v1810
  %2279 = vmatpush.bf16.msra.mxu0 %v1809
  %2280 = vmatpush.bf16.msra.mxu0 %v1808
  %2281 = vmatpush.bf16.msra.mxu0 %v1807
  %2282 = vmatmul.bf16.gmra.mxu0 %v566
  %v2283 = vpop.f32.mrf.mxu0
  %v2284 = vadd.f32 %v2255, %v2283
  %v2285 = vpop.f32.mrf.mxu0
  %v2286 = vadd.f32 %v2257, %v2285
  %2287 = vmatmul.bf16.gmra.mxu0 %v570
  %v2288 = vpop.f32.mrf.mxu0
  %v2289 = vadd.f32 %v2260, %v2288
  %v2290 = vpop.f32.mrf.mxu0
  %v2291 = vadd.f32 %v2262, %v2290
  %2292 = vmatmul.bf16.gmra.mxu0 %v574
  %v2293 = vpop.f32.mrf.mxu0
  %v2294 = vadd.f32 %v2265, %v2293
  %v2295 = vpop.f32.mrf.mxu0
  %v2296 = vadd.f32 %v2267, %v2295
  %2297 = vmatmul.bf16.gmra.mxu0 %v578
  %v2298 = vpop.f32.mrf.mxu0
  %v2299 = vadd.f32 %v2270, %v2298
  %v2300 = vpop.f32.mrf.mxu0
  %v2301 = vadd.f32 %v2272, %v2300
  %2302 = vdwg.mxu0
  %2303 = vmatpush.bf16.msra.mxu0 %v1822
  %2304 = vmatpush.bf16.msra.mxu0 %v1821
  %2305 = vmatpush.bf16.msra.mxu0 %v1820
  %2306 = vmatpush.bf16.msra.mxu0 %v1819
  %2307 = vmatpush.bf16.msra.mxu0 %v1818
  %2308 = vmatpush.bf16.msra.mxu0 %v1817
  %2309 = vmatpush.bf16.msra.mxu0 %v1816
  %2310 = vmatpush.bf16.msra.mxu0 %v1815
  %2311 = vmatmul.bf16.gmra.mxu0 %v627
  %v2312 = vpop.f32.mrf.mxu0
  %v2313 = vadd.f32 %v2284, %v2312
  %v2314 = vpop.f32.mrf.mxu0
  %v2315 = vadd.f32 %v2286, %v2314
  %2316 = vmatmul.bf16.gmra.mxu0 %v631
  %v2317 = vpop.f32.mrf.mxu0
  %v2318 = vadd.f32 %v2289, %v2317
  %v2319 = vpop.f32.mrf.mxu0
  %v2320 = vadd.f32 %v2291, %v2319
  %2321 = vmatmul.bf16.gmra.mxu0 %v635
  %v2322 = vpop.f32.mrf.mxu0
  %v2323 = vadd.f32 %v2294, %v2322
  %v2324 = vpop.f32.mrf.mxu0
  %v2325 = vadd.f32 %v2296, %v2324
  %2326 = vmatmul.bf16.gmra.mxu0 %v639
  %v2327 = vpop.f32.mrf.mxu0
  %v2328 = vadd.f32 %v2299, %v2327
  %v2329 = vpop.f32.mrf.mxu0
  %v2330 = vadd.f32 %v2301, %v2329
  %2331 = vdwg.mxu0
  %2332 = vmatpush.bf16.msra.mxu0 %v1830
  %2333 = vmatpush.bf16.msra.mxu0 %v1829
  %2334 = vmatpush.bf16.msra.mxu0 %v1828
  %2335 = vmatpush.bf16.msra.mxu0 %v1827
  %2336 = vmatpush.bf16.msra.mxu0 %v1826
  %2337 = vmatpush.bf16.msra.mxu0 %v1825
  %2338 = vmatpush.bf16.msra.mxu0 %v1824
  %2339 = vmatpush.bf16.msra.mxu0 %v1823
  %2340 = vmatmul.bf16.gmra.mxu0 %v628
  %v2341 = vpop.f32.mrf.mxu0
  %v2342 = vadd.f32 %v2313, %v2341
  %v2343 = vpop.f32.mrf.mxu0
  %v2344 = vadd.f32 %v2315, %v2343
  %2345 = vmatmul.bf16.gmra.mxu0 %v632
  %v2346 = vpop.f32.mrf.mxu0
  %v2347 = vadd.f32 %v2318, %v2346
  %v2348 = vpop.f32.mrf.mxu0
  %v2349 = vadd.f32 %v2320, %v2348
  %2350 = vmatmul.bf16.gmra.mxu0 %v636
  %v2351 = vpop.f32.mrf.mxu0
  %v2352 = vadd.f32 %v2323, %v2351
  %v2353 = vpop.f32.mrf.mxu0
  %v2354 = vadd.f32 %v2325, %v2353
  %2355 = vmatmul.bf16.gmra.mxu0 %v640
  %v2356 = vpop.f32.mrf.mxu0
  %v2357 = vadd.f32 %v2328, %v2356
  %v2358 = vpop.f32.mrf.mxu0
  %v2359 = vadd.f32 %v2330, %v2358
  %2360 = vdwg.mxu0
  %2361 = vmatpush.bf16.msra.mxu0 %v1838
  %2362 = vmatpush.bf16.msra.mxu0 %v1837
  %2363 = vmatpush.bf16.msra.mxu0 %v1836
  %2364 = vmatpush.bf16.msra.mxu0 %v1835
  %2365 = vmatpush.bf16.msra.mxu0 %v1834
  %2366 = vmatpush.bf16.msra.mxu0 %v1833
  %2367 = vmatpush.bf16.msra.mxu0 %v1832
  %2368 = vmatpush.bf16.msra.mxu0 %v1831
  %2369 = vmatmul.bf16.gmra.mxu0 %v629
  %v2370 = vpop.f32.mrf.mxu0
  %v2371 = vadd.f32 %v2342, %v2370
  %v2372 = vpop.f32.mrf.mxu0
  %v2373 = vadd.f32 %v2344, %v2372
  %2374 = vmatmul.bf16.gmra.mxu0 %v633
  %v2375 = vpop.f32.mrf.mxu0
  %v2376 = vadd.f32 %v2347, %v2375
  %v2377 = vpop.f32.mrf.mxu0
  %v2378 = vadd.f32 %v2349, %v2377
  %2379 = vmatmul.bf16.gmra.mxu0 %v637
  %v2380 = vpop.f32.mrf.mxu0
  %v2381 = vadd.f32 %v2352, %v2380
  %v2382 = vpop.f32.mrf.mxu0
  %v2383 = vadd.f32 %v2354, %v2382
  %2384 = vmatmul.bf16.gmra.mxu0 %v641
  %v2385 = vpop.f32.mrf.mxu0
  %v2386 = vadd.f32 %v2357, %v2385
  %v2387 = vpop.f32.mrf.mxu0
  %v2388 = vadd.f32 %v2359, %v2387
  %2389 = vdwg.mxu0
  %2390 = vmatpush.bf16.msra.mxu0 %v1846
  %2391 = vmatpush.bf16.msra.mxu0 %v1845
  %2392 = vmatpush.bf16.msra.mxu0 %v1844
  %2393 = vmatpush.bf16.msra.mxu0 %v1843
  %2394 = vmatpush.bf16.msra.mxu0 %v1842
  %2395 = vmatpush.bf16.msra.mxu0 %v1841
  %2396 = vmatpush.bf16.msra.mxu0 %v1840
  %2397 = vmatpush.bf16.msra.mxu0 %v1839
  %2398 = vmatmul.bf16.gmra.mxu0 %v630
  %v2399 = vpop.f32.mrf.mxu0
  %v2400 = vadd.f32 %v2371, %v2399
  %v2401 = vpop.f32.mrf.mxu0
  %v2402 = vadd.f32 %v2373, %v2401
  %2403 = vmatmul.bf16.gmra.mxu0 %v634
  %v2404 = vpop.f32.mrf.mxu0
  %v2405 = vadd.f32 %v2376, %v2404
  %v2406 = vpop.f32.mrf.mxu0
  %v2407 = vadd.f32 %v2378, %v2406
  %2408 = vmatmul.bf16.gmra.mxu0 %v638
  %v2409 = vpop.f32.mrf.mxu0
  %v2410 = vadd.f32 %v2381, %v2409
  %v2411 = vpop.f32.mrf.mxu0
  %v2412 = vadd.f32 %v2383, %v2411
  %2413 = vmatmul.bf16.gmra.mxu0 %v642
  %v2414 = vpop.f32.mrf.mxu0
  %v2415 = vadd.f32 %v2386, %v2414
  %v2416 = vpop.f32.mrf.mxu0
  %v2417 = vadd.f32 %v2388, %v2416
  %2418 = vdwg.mxu0
  %2419 = vmatpush.bf16.msra.mxu0 %v1854
  %2420 = vmatpush.bf16.msra.mxu0 %v1853
  %2421 = vmatpush.bf16.msra.mxu0 %v1852
  %2422 = vmatpush.bf16.msra.mxu0 %v1851
  %2423 = vmatpush.bf16.msra.mxu0 %v1850
  %2424 = vmatpush.bf16.msra.mxu0 %v1849
  %2425 = vmatpush.bf16.msra.mxu0 %v1848
  %2426 = vmatpush.bf16.msra.mxu0 %v1847
  %2427 = vmatmul.bf16.gmra.mxu0 %v691
  %v2428 = vpop.f32.mrf.mxu0
  %v2429 = vadd.f32 %v2400, %v2428
  %v2430 = vpop.f32.mrf.mxu0
  %v2431 = vadd.f32 %v2402, %v2430
  %2432 = vmatmul.bf16.gmra.mxu0 %v695
  %v2433 = vpop.f32.mrf.mxu0
  %v2434 = vadd.f32 %v2405, %v2433
  %v2435 = vpop.f32.mrf.mxu0
  %v2436 = vadd.f32 %v2407, %v2435
  %2437 = vmatmul.bf16.gmra.mxu0 %v699
  %v2438 = vpop.f32.mrf.mxu0
  %v2439 = vadd.f32 %v2410, %v2438
  %v2440 = vpop.f32.mrf.mxu0
  %v2441 = vadd.f32 %v2412, %v2440
  %2442 = vmatmul.bf16.gmra.mxu0 %v703
  %v2443 = vpop.f32.mrf.mxu0
  %v2444 = vadd.f32 %v2415, %v2443
  %v2445 = vpop.f32.mrf.mxu0
  %v2446 = vadd.f32 %v2417, %v2445
  %2447 = vdwg.mxu0
  %2448 = vmatpush.bf16.msra.mxu0 %v1862
  %2449 = vmatpush.bf16.msra.mxu0 %v1861
  %2450 = vmatpush.bf16.msra.mxu0 %v1860
  %2451 = vmatpush.bf16.msra.mxu0 %v1859
  %2452 = vmatpush.bf16.msra.mxu0 %v1858
  %2453 = vmatpush.bf16.msra.mxu0 %v1857
  %2454 = vmatpush.bf16.msra.mxu0 %v1856
  %2455 = vmatpush.bf16.msra.mxu0 %v1855
  %2456 = vmatmul.bf16.gmra.mxu0 %v692
  %v2457 = vpop.f32.mrf.mxu0
  %v2458 = vadd.f32 %v2429, %v2457
  %v2459 = vpop.f32.mrf.mxu0
  %v2460 = vadd.f32 %v2431, %v2459
  %2461 = vmatmul.bf16.gmra.mxu0 %v696
  %v2462 = vpop.f32.mrf.mxu0
  %v2463 = vadd.f32 %v2434, %v2462
  %v2464 = vpop.f32.mrf.mxu0
  %v2465 = vadd.f32 %v2436, %v2464
  %2466 = vmatmul.bf16.gmra.mxu0 %v700
  %v2467 = vpop.f32.mrf.mxu0
  %v2468 = vadd.f32 %v2439, %v2467
  %v2469 = vpop.f32.mrf.mxu0
  %v2470 = vadd.f32 %v2441, %v2469
  %2471 = vmatmul.bf16.gmra.mxu0 %v704
  %v2472 = vpop.f32.mrf.mxu0
  %v2473 = vadd.f32 %v2444, %v2472
  %v2474 = vpop.f32.mrf.mxu0
  %v2475 = vadd.f32 %v2446, %v2474
  %2476 = vdwg.mxu0
  %2477 = vmatpush.bf16.msra.mxu0 %v1870
  %2478 = vmatpush.bf16.msra.mxu0 %v1869
  %2479 = vmatpush.bf16.msra.mxu0 %v1868
  %2480 = vmatpush.bf16.msra.mxu0 %v1867
  %2481 = vmatpush.bf16.msra.mxu0 %v1866
  %2482 = vmatpush.bf16.msra.mxu0 %v1865
  %2483 = vmatpush.bf16.msra.mxu0 %v1864
  %2484 = vmatpush.bf16.msra.mxu0 %v1863
  %2485 = vmatmul.bf16.gmra.mxu0 %v693
  %v2486 = vpop.f32.mrf.mxu0
  %v2487 = vadd.f32 %v2458, %v2486
  %v2488 = vpop.f32.mrf.mxu0
  %v2489 = vadd.f32 %v2460, %v2488
  %2490 = vmatmul.bf16.gmra.mxu0 %v697
  %v2491 = vpop.f32.mrf.mxu0
  %v2492 = vadd.f32 %v2463, %v2491
  %v2493 = vpop.f32.mrf.mxu0
  %v2494 = vadd.f32 %v2465, %v2493
  %2495 = vmatmul.bf16.gmra.mxu0 %v701
  %v2496 = vpop.f32.mrf.mxu0
  %v2497 = vadd.f32 %v2468, %v2496
  %v2498 = vpop.f32.mrf.mxu0
  %v2499 = vadd.f32 %v2470, %v2498
  %2500 = vmatmul.bf16.gmra.mxu0 %v705
  %v2501 = vpop.f32.mrf.mxu0
  %v2502 = vadd.f32 %v2473, %v2501
  %v2503 = vpop.f32.mrf.mxu0
  %v2504 = vadd.f32 %v2475, %v2503
  %2505 = vdwg.mxu0
  %2506 = vmatpush.bf16.msra.mxu0 %v1878
  %2507 = vmatpush.bf16.msra.mxu0 %v1877
  %2508 = vmatpush.bf16.msra.mxu0 %v1876
  %2509 = vmatpush.bf16.msra.mxu0 %v1875
  %2510 = vmatpush.bf16.msra.mxu0 %v1874
  %2511 = vmatpush.bf16.msra.mxu0 %v1873
  %2512 = vmatpush.bf16.msra.mxu0 %v1872
  %2513 = vmatpush.bf16.msra.mxu0 %v1871
  %2514 = vmatmul.bf16.gmra.mxu0 %v694
  %v2515 = vpop.f32.mrf.mxu0
  %v2516 = vadd.f32 %v2487, %v2515
  %v2517 = vpop.f32.mrf.mxu0
  %v2518 = vadd.f32 %v2489, %v2517
  %2519 = vmatmul.bf16.gmra.mxu0 %v698
  %v2520 = vpop.f32.mrf.mxu0
  %v2521 = vadd.f32 %v2492, %v2520
  %v2522 = vpop.f32.mrf.mxu0
  %v2523 = vadd.f32 %v2494, %v2522
  %2524 = vmatmul.bf16.gmra.mxu0 %v702
  %v2525 = vpop.f32.mrf.mxu0
  %v2526 = vadd.f32 %v2497, %v2525
  %v2527 = vpop.f32.mrf.mxu0
  %v2528 = vadd.f32 %v2499, %v2527
  %2529 = vmatmul.bf16.gmra.mxu0 %v706
  %v2530 = vpop.f32.mrf.mxu0
  %v2531 = vadd.f32 %v2502, %v2530
  %v2532 = vpop.f32.mrf.mxu0
  %v2533 = vadd.f32 %v2504, %v2532
  %2534 = vdwg.mxu0
  %2535 = vmatpush.bf16.msra.mxu0 %v1886
  %2536 = vmatpush.bf16.msra.mxu0 %v1885
  %2537 = vmatpush.bf16.msra.mxu0 %v1884
  %2538 = vmatpush.bf16.msra.mxu0 %v1883
  %2539 = vmatpush.bf16.msra.mxu0 %v1882
  %2540 = vmatpush.bf16.msra.mxu0 %v1881
  %2541 = vmatpush.bf16.msra.mxu0 %v1880
  %2542 = vmatpush.bf16.msra.mxu0 %v1879
  %2543 = vmatmul.bf16.gmra.mxu0 %v755
  %v2544 = vpop.f32.mrf.mxu0
  %v2545 = vadd.f32 %v2516, %v2544
  %v2546 = vpop.f32.mrf.mxu0
  %v2547 = vadd.f32 %v2518, %v2546
  %2548 = vmatmul.bf16.gmra.mxu0 %v759
  %v2549 = vpop.f32.mrf.mxu0
  %v2550 = vadd.f32 %v2521, %v2549
  %v2551 = vpop.f32.mrf.mxu0
  %v2552 = vadd.f32 %v2523, %v2551
  %2553 = vmatmul.bf16.gmra.mxu0 %v763
  %v2554 = vpop.f32.mrf.mxu0
  %v2555 = vadd.f32 %v2526, %v2554
  %v2556 = vpop.f32.mrf.mxu0
  %v2557 = vadd.f32 %v2528, %v2556
  %2558 = vmatmul.bf16.gmra.mxu0 %v767
  %v2559 = vpop.f32.mrf.mxu0
  %v2560 = vadd.f32 %v2531, %v2559
  %v2561 = vpop.f32.mrf.mxu0
  %v2562 = vadd.f32 %v2533, %v2561
  %2563 = vdwg.mxu0
  %2564 = vmatpush.bf16.msra.mxu0 %v1894
  %2565 = vmatpush.bf16.msra.mxu0 %v1893
  %2566 = vmatpush.bf16.msra.mxu0 %v1892
  %2567 = vmatpush.bf16.msra.mxu0 %v1891
  %2568 = vmatpush.bf16.msra.mxu0 %v1890
  %2569 = vmatpush.bf16.msra.mxu0 %v1889
  %2570 = vmatpush.bf16.msra.mxu0 %v1888
  %2571 = vmatpush.bf16.msra.mxu0 %v1887
  %2572 = vmatmul.bf16.gmra.mxu0 %v756
  %v2573 = vpop.f32.mrf.mxu0
  %v2574 = vadd.f32 %v2545, %v2573
  %v2575 = vpop.f32.mrf.mxu0
  %v2576 = vadd.f32 %v2547, %v2575
  %2577 = vmatmul.bf16.gmra.mxu0 %v760
  %v2578 = vpop.f32.mrf.mxu0
  %v2579 = vadd.f32 %v2550, %v2578
  %v2580 = vpop.f32.mrf.mxu0
  %v2581 = vadd.f32 %v2552, %v2580
  %2582 = vmatmul.bf16.gmra.mxu0 %v764
  %v2583 = vpop.f32.mrf.mxu0
  %v2584 = vadd.f32 %v2555, %v2583
  %v2585 = vpop.f32.mrf.mxu0
  %v2586 = vadd.f32 %v2557, %v2585
  %2587 = vmatmul.bf16.gmra.mxu0 %v768
  %v2588 = vpop.f32.mrf.mxu0
  %v2589 = vadd.f32 %v2560, %v2588
  %v2590 = vpop.f32.mrf.mxu0
  %v2591 = vadd.f32 %v2562, %v2590
  %2592 = vdwg.mxu0
  %2593 = vmatpush.bf16.msra.mxu0 %v1902
  %2594 = vmatpush.bf16.msra.mxu0 %v1901
  %2595 = vmatpush.bf16.msra.mxu0 %v1900
  %2596 = vmatpush.bf16.msra.mxu0 %v1899
  %2597 = vmatpush.bf16.msra.mxu0 %v1898
  %2598 = vmatpush.bf16.msra.mxu0 %v1897
  %2599 = vmatpush.bf16.msra.mxu0 %v1896
  %2600 = vmatpush.bf16.msra.mxu0 %v1895
  %2601 = vmatmul.bf16.gmra.mxu0 %v757
  %v2602 = vpop.f32.mrf.mxu0
  %v2603 = vadd.f32 %v2574, %v2602
  %v2604 = vpop.f32.mrf.mxu0
  %v2605 = vadd.f32 %v2576, %v2604
  %2606 = vmatmul.bf16.gmra.mxu0 %v761
  %v2607 = vpop.f32.mrf.mxu0
  %v2608 = vadd.f32 %v2579, %v2607
  %v2609 = vpop.f32.mrf.mxu0
  %v2610 = vadd.f32 %v2581, %v2609
  %2611 = vmatmul.bf16.gmra.mxu0 %v765
  %v2612 = vpop.f32.mrf.mxu0
  %v2613 = vadd.f32 %v2584, %v2612
  %v2614 = vpop.f32.mrf.mxu0
  %v2615 = vadd.f32 %v2586, %v2614
  %2616 = vmatmul.bf16.gmra.mxu0 %v769
  %v2617 = vpop.f32.mrf.mxu0
  %v2618 = vadd.f32 %v2589, %v2617
  %v2619 = vpop.f32.mrf.mxu0
  %v2620 = vadd.f32 %v2591, %v2619
  %2621 = vdwg.mxu0
  %2622 = vmatpush.bf16.msra.mxu0 %v1910
  %2623 = vmatpush.bf16.msra.mxu0 %v1909
  %2624 = vmatpush.bf16.msra.mxu0 %v1908
  %2625 = vmatpush.bf16.msra.mxu0 %v1907
  %2626 = vmatpush.bf16.msra.mxu0 %v1906
  %2627 = vmatpush.bf16.msra.mxu0 %v1905
  %2628 = vmatpush.bf16.msra.mxu0 %v1904
  %2629 = vmatpush.bf16.msra.mxu0 %v1903
  %2630 = vmatmul.bf16.gmra.mxu0 %v758
  %v2631 = vpop.f32.mrf.mxu0
  %v2632 = vadd.f32 %v2603, %v2631
  %v2633 = vpop.f32.mrf.mxu0
  %v2634 = vadd.f32 %v2605, %v2633
  %2635 = vmatmul.bf16.gmra.mxu0 %v762
  %v2636 = vpop.f32.mrf.mxu0
  %v2637 = vadd.f32 %v2608, %v2636
  %v2638 = vpop.f32.mrf.mxu0
  %v2639 = vadd.f32 %v2610, %v2638
  %2640 = vmatmul.bf16.gmra.mxu0 %v766
  %v2641 = vpop.f32.mrf.mxu0
  %v2642 = vadd.f32 %v2613, %v2641
  %v2643 = vpop.f32.mrf.mxu0
  %v2644 = vadd.f32 %v2615, %v2643
  %2645 = vmatmul.bf16.gmra.mxu0 %v770
  %v2646 = vpop.f32.mrf.mxu0
  %v2647 = vadd.f32 %v2618, %v2646
  %v2648 = vpop.f32.mrf.mxu0
  %v2649 = vadd.f32 %v2620, %v2648
  %2650 = vdwg.mxu0
  %v2651 = vmax.f32 %v2632, 0.0
  %v2652 = vmax.f32 %v2634, 0.0
  %v2653 = vmax.f32 %v2637, 0.0
  %v2654 = vmax.f32 %v2639, 0.0
  %v2655 = vmax.f32 %v2642, 0.0
  %v2656 = vmax.f32 %v2644, 0.0
  %v2657 = vmax.f32 %v2647, 0.0
  %v2658 = vmax.f32 %v2649, 0.0
  %vm2659 = vcmask 523264
  %2660 = vst.msk [vmem:[#allocation2] sm:$0xff] %vm2659, %v2651
  %2661 = vst.msk [vmem:[#allocation2 + $0x8] sm:$0xff] %vm2659, %v2652
  %2662 = vst.msk [vmem:[#allocation2 + $0x10] sm:$0xff] %vm2659, %v2653
  %2663 = vst.msk [vmem:[#allocation2 + $0x18] sm:$0xff] %vm2659, %v2654
  %2664 = vst.msk [vmem:[#allocation2 + $0x20] sm:$0xff] %vm2659, %v2655
  %2665 = vst.msk [vmem:[#allocation2 + $0x28] sm:$0xff] %vm2659, %v2656
  %2666 = vst.msk [vmem:[#allocation2 + $0x30] sm:$0xff] %vm2659, %v2657
  %2667 = vst.msk [vmem:[#allocation2 + $0x38] sm:$0xff] %vm2659, %v2658
  %v2668 = vld [vmem:[#allocation2] ss:$2 sm:$0xff]
  %s2669 = scalar_lea.vmem [#allocation2], 16
  %v2670 = vld [vmem:[%s2669] ss:$2 sm:$0xff]
  %s2671 = scalar_lea.vmem [#allocation2], 32
  %v2672 = vld [vmem:[%s2671] ss:$2 sm:$0xff]
  %s2673 = scalar_lea.vmem [#allocation2], 48
  %v2674 = vld [vmem:[%s2673] ss:$2 sm:$0xff]
  %s2675 = scalar_lea.vmem [#allocation2], 1
  %v2676 = vld [vmem:[%s2675] ss:$2 sm:$0xff]
  %s2677 = scalar_lea.vmem [#allocation2], 17
  %v2678 = vld [vmem:[%s2677] ss:$2 sm:$0xff]
  %s2679 = scalar_lea.vmem [#allocation2], 33
  %v2680 = vld [vmem:[%s2679] ss:$2 sm:$0xff]
  %s2681 = scalar_lea.vmem [#allocation2], 49
  %v2682 = vld [vmem:[%s2681] ss:$2 sm:$0xff]
  %v2683 = vmax.f32 %v2668, %v2676
  %v2684 = vmax.f32 %v2670, %v2678
  %v2685 = vmax.f32 %v2672, %v2680
  %v2686 = vmax.f32 %v2674, %v2682
  %v2687 = vpack.c.bf16 %v2683, %v2683
  %v2688 = vpack.c.bf16 %v2684, %v2684
  %v2689 = vpack.c.bf16 %v2685, %v2685
  %v2690 = vpack.c.bf16 %v2686, %v2686
  %v2695 = vunpack.c.l.b16 %v2687
  %v2696 = vunpack.c.l.b16 %v2688
  %v2697 = vunpack.c.l.b16 %v2689
  %v2698 = vunpack.c.l.b16 %v2690
  %v2699 = vpack.c.b16 %v2696, %v2695
  %v2700 = vpack.c.b16 %v2698, %v2697
  %vm2701 = vsmask.f32 7424
  %v2703 = vshrl.u32 %v2699, 16
  %v2705 = vshll.u32 %v2699, 16
  %v2707 = vrot.slane %v2705, 1
  %v2708 = vor.u32 %v2703, %v2707
  %v2710 = vshll.u32 %v2700, 16
  %v2712 = vrot.slane %v2710, 1
  %v2713 = vsel %vm2701, %v2708, %v2712
  %v2714 = vshrl.u32 %v2700, 16
  %v2716 = vor.u32 %v2714, %v2712
  %v2718 = vshll.u32 0, 16
  %v2720 = vrot.slane %v2718, 1
  %v2721 = vsel %vm2701, %v2716, %v2720
  %2722 = vrot.lane.b32.xlu0 %v2713, 64
  %v2723 = vpop.permute.xlu0 %2722
  %2724 = vrot.lane.b32.xlu0 %v2721, 64
  %v2725 = vpop.permute.xlu0 %2724
  %vm2727 = vcmask 1046528
  %v2728 = vrot.slane %v2699, 1
  %v2729 = vrot.slane %v2700, 1
  %v2730 = vsel %vm2727, %v2728, %v2729
  %v2731 = vrot.slane 0, 1
  %v2732 = vsel %vm2727, %v2729, %v2731
  %vm2733 = vsmask.f32 6400
  %v2734 = vrot.slane %v2703, 1
  %v2735 = vrot.slane %v2705, 2
  %v2736 = vor.u32 %v2734, %v2735
  %v2737 = vrot.slane %v2714, 1
  %v2738 = vrot.slane %v2710, 2
  %v2739 = vor.u32 %v2737, %v2738
  %v2740 = vsel %vm2733, %v2736, %v2739
  %v2741 = vshrl.u32 0, 16
  %v2743 = vrot.slane %v2741, 1
  %v2744 = vrot.slane %v2718, 2
  %v2745 = vor.u32 %v2743, %v2744
  %v2746 = vsel %vm2733, %v2739, %v2745
  %2747 = vrot.lane.b32.xlu0 %v2740, 64
  %v2748 = vpop.permute.xlu0 %2747
  %2749 = vrot.lane.b32.xlu0 %v2746, 64
  %v2750 = vpop.permute.xlu0 %2749
  %vm2751 = vcmask 1045504
  %v2752 = vrot.slane %v2699, 2
  %v2753 = vrot.slane %v2700, 2
  %v2754 = vsel %vm2751, %v2752, %v2753
  %v2755 = vrot.slane 0, 2
  %v2756 = vsel %vm2751, %v2753, %v2755
  %v2758 = vsel %vm2659, %v2699, %v2723
  %v2761 = vsel %vm2659, %v2700, %v2725
  %v2765 = vsel %vm2659, %v2730, %v2748
  %v2769 = vsel %vm2659, %v2732, %v2750
  %v2771 = vld [vmem:[%s3] sm:$0xf]
  %v2772 = vld [vmem:[%s3 + $0x4] sm:$0xf]
  %v2773 = vld [vmem:[%s3 + $0x8] sm:$0xf]
  %v2774 = vld [vmem:[%s3 + $0xc] sm:$0xf]
  %v2775 = vld [vmem:[%s3 + $0x10] sm:$0xf]
  %v2776 = vld [vmem:[%s3 + $0x14] sm:$0xf]
  %v2777 = vld [vmem:[%s3 + $0x18] sm:$0xf]
  %v2778 = vld [vmem:[%s3 + $0x1c] sm:$0xf]
  %v2779 = vld [vmem:[%s3 + $0x20] sm:$0xf]
  %v2780 = vld [vmem:[%s3 + $0x24] sm:$0xf]
  %v2781 = vld [vmem:[%s3 + $0x28] sm:$0xf]
  %v2782 = vld [vmem:[%s3 + $0x2c] sm:$0xf]
  %v2783 = vld [vmem:[%s3 + $0x30] sm:$0xf]
  %v2784 = vld [vmem:[%s3 + $0x34] sm:$0xf]
  %v2785 = vld [vmem:[%s3 + $0x38] sm:$0xf]
  %v2786 = vld [vmem:[%s3 + $0x3c] sm:$0xf]
  %v2787 = vld [vmem:[%s3 + $0x40] sm:$0xf]
  %v2788 = vld [vmem:[%s3 + $0x44] sm:$0xf]
  %v2789 = vld [vmem:[%s3 + $0x48] sm:$0xf]
  %v2790 = vld [vmem:[%s3 + $0x4c] sm:$0xf]
  %v2791 = vld [vmem:[%s3 + $0x50] sm:$0xf]
  %v2792 = vld [vmem:[%s3 + $0x54] sm:$0xf]
  %v2793 = vld [vmem:[%s3 + $0x58] sm:$0xf]
  %v2794 = vld [vmem:[%s3 + $0x5c] sm:$0xf]
  %v2795 = vld [vmem:[%s3 + $0x60] sm:$0xf]
  %v2796 = vld [vmem:[%s3 + $0x64] sm:$0xf]
  %v2797 = vld [vmem:[%s3 + $0x68] sm:$0xf]
  %v2798 = vld [vmem:[%s3 + $0x6c] sm:$0xf]
  %v2799 = vld [vmem:[%s3 + $0x70] sm:$0xf]
  %v2800 = vld [vmem:[%s3 + $0x74] sm:$0xf]
  %v2801 = vld [vmem:[%s3 + $0x78] sm:$0xf]
  %v2802 = vld [vmem:[%s3 + $0x7c] sm:$0xf]
  %v2803 = vld [vmem:[%s3 + $0x80] sm:$0xf]
  %v2804 = vld [vmem:[%s3 + $0x84] sm:$0xf]
  %v2805 = vld [vmem:[%s3 + $0x88] sm:$0xf]
  %v2806 = vld [vmem:[%s3 + $0x8c] sm:$0xf]
  %v2807 = vld [vmem:[%s3 + $0x90] sm:$0xf]
  %v2808 = vld [vmem:[%s3 + $0x94] sm:$0xf]
  %v2809 = vld [vmem:[%s3 + $0x98] sm:$0xf]
  %v2810 = vld [vmem:[%s3 + $0x9c] sm:$0xf]
  %v2811 = vld [vmem:[%s4] sm:$0x1]
  %v2813 = vperm.slane %v2811, 0
  %v2855 = vunpack.c.l.b16 %v2771
  %v2856 = vunpack.c.l.b16 %v2772
  %v2857 = vunpack.c.l.b16 %v2773
  %v2858 = vunpack.c.l.b16 %v2774
  %v2859 = vunpack.c.l.b16 %v2775
  %v2860 = vunpack.c.l.b16 %v2776
  %v2861 = vunpack.c.l.b16 %v2777
  %v2862 = vunpack.c.l.b16 %v2778
  %v2863 = vunpack.c.l.b16 %v2779
  %v2864 = vunpack.c.l.b16 %v2780
  %v2865 = vunpack.c.l.b16 %v2781
  %v2866 = vunpack.c.l.b16 %v2782
  %v2867 = vunpack.c.l.b16 %v2783
  %v2868 = vunpack.c.l.b16 %v2784
  %v2869 = vunpack.c.l.b16 %v2785
  %v2870 = vunpack.c.l.b16 %v2786
  %v2871 = vunpack.c.l.b16 %v2787
  %v2872 = vunpack.c.l.b16 %v2788
  %v2873 = vunpack.c.l.b16 %v2789
  %v2874 = vunpack.c.l.b16 %v2790
  %v2875 = vunpack.c.l.b16 %v2791
  %v2876 = vunpack.c.l.b16 %v2792
  %v2877 = vunpack.c.l.b16 %v2793
  %v2878 = vunpack.c.l.b16 %v2794
  %v2879 = vunpack.c.l.b16 %v2795
  %v2880 = vunpack.c.l.b16 %v2796
  %v2881 = vunpack.c.l.b16 %v2797
  %v2882 = vunpack.c.l.b16 %v2798
  %v2883 = vunpack.c.l.b16 %v2799
  %v2884 = vunpack.c.l.b16 %v2800
  %v2885 = vunpack.c.l.b16 %v2801
  %v2886 = vunpack.c.l.b16 %v2802
  %v2887 = vunpack.c.l.b16 %v2803
  %v2888 = vunpack.c.l.b16 %v2804
  %v2889 = vunpack.c.l.b16 %v2805
  %v2890 = vunpack.c.l.b16 %v2806
  %v2891 = vunpack.c.l.b16 %v2807
  %v2892 = vunpack.c.l.b16 %v2808
  %v2893 = vunpack.c.l.b16 %v2809
  %v2894 = vunpack.c.l.b16 %v2810
  %v2895 = vpack.c.b16 %v2856, %v2855
  %v2896 = vpack.c.b16 %v2858, %v2857
  %v2897 = vpack.c.b16 %v2860, %v2859
  %v2898 = vpack.c.b16 %v2862, %v2861
  %v2899 = vpack.c.b16 %v2864, %v2863
  %v2900 = vpack.c.b16 %v2866, %v2865
  %v2901 = vpack.c.b16 %v2868, %v2867
  %v2902 = vpack.c.b16 %v2870, %v2869
  %v2903 = vpack.c.b16 %v2872, %v2871
  %v2904 = vpack.c.b16 %v2874, %v2873
  %v2905 = vpack.c.b16 %v2876, %v2875
  %v2906 = vpack.c.b16 %v2878, %v2877
  %v2907 = vpack.c.b16 %v2880, %v2879
  %v2908 = vpack.c.b16 %v2882, %v2881
  %v2909 = vpack.c.b16 %v2884, %v2883
  %v2910 = vpack.c.b16 %v2886, %v2885
  %v2911 = vpack.c.b16 %v2888, %v2887
  %v2912 = vpack.c.b16 %v2890, %v2889
  %v2913 = vpack.c.b16 %v2892, %v2891
  %v2914 = vpack.c.b16 %v2894, %v2893
  %v2936 = vsel %vm2659, %v2754, 0
  %v2939 = vsel %vm2659, %v2756, 0
  %2941 = vmatpush.bf16.msra.mxu0 %v2902
  %2942 = vmatpush.bf16.msra.mxu0 %v2901
  %2943 = vmatpush.bf16.msra.mxu0 %v2900
  %2944 = vmatpush.bf16.msra.mxu0 %v2899
  %2945 = vmatpush.bf16.msra.mxu0 %v2898
  %2946 = vmatpush.bf16.msra.mxu0 %v2897
  %2947 = vmatpush.bf16.msra.mxu0 %v2896
  %2948 = vmatpush.bf16.msra.mxu0 %v2895
  %2949 = vmatmul.bf16.gmra.mxu0 %v2758
  %v2950 = vpop.f32.mrf.mxu0
  %v2951 = vadd.f32 %v2813, %v2950
  %v2952 = vpop.f32.mrf.mxu0
  %v2953 = vadd.f32 %v2813, %v2952
  %2954 = vmatmul.bf16.gmra.mxu0 %v2761
  %v2955 = vpop.f32.mrf.mxu0
  %v2956 = vadd.f32 %v2813, %v2955
  %v2957 = vpop.f32.mrf.mxu0
  %v2958 = vadd.f32 %v2813, %v2957
  %2959 = vdwg.mxu0
  %2960 = vmatpush.bf16.msra.mxu0 %v2910
  %2961 = vmatpush.bf16.msra.mxu0 %v2909
  %2962 = vmatpush.bf16.msra.mxu0 %v2908
  %2963 = vmatpush.bf16.msra.mxu0 %v2907
  %2964 = vmatpush.bf16.msra.mxu0 %v2906
  %2965 = vmatpush.bf16.msra.mxu0 %v2905
  %2966 = vmatpush.bf16.msra.mxu0 %v2904
  %2967 = vmatpush.bf16.msra.mxu0 %v2903
  %2968 = vmatmul.bf16.gmra.mxu0 %v2765
  %v2969 = vpop.f32.mrf.mxu0
  %v2970 = vadd.f32 %v2951, %v2969
  %v2971 = vpop.f32.mrf.mxu0
  %v2972 = vadd.f32 %v2953, %v2971
  %2973 = vmatmul.bf16.gmra.mxu0 %v2769
  %v2974 = vpop.f32.mrf.mxu0
  %v2975 = vadd.f32 %v2956, %v2974
  %v2976 = vpop.f32.mrf.mxu0
  %v2977 = vadd.f32 %v2958, %v2976
  %2978 = vdwg.mxu0
  %2979 = vmatpush.bf16.msra.mxu0 0
  %2980 = vmatpush.bf16.msra.mxu0 0
  %2981 = vmatpush.bf16.msra.mxu0 0
  %2982 = vmatpush.bf16.msra.mxu0 0
  %2983 = vmatpush.bf16.msra.mxu0 %v2914
  %2984 = vmatpush.bf16.msra.mxu0 %v2913
  %2985 = vmatpush.bf16.msra.mxu0 %v2912
  %2986 = vmatpush.bf16.msra.mxu0 %v2911
  %2987 = vmatmul.bf16.gmra.mxu0 %v2936
  %v2988 = vpop.f32.mrf.mxu0
  %v2989 = vadd.f32 %v2970, %v2988
  %v2990 = vpop.f32.mrf.mxu0
  %v2991 = vadd.f32 %v2972, %v2990
  %2992 = vmatmul.bf16.gmra.mxu0 %v2939
  %v2993 = vpop.f32.mrf.mxu0
  %v2994 = vadd.f32 %v2975, %v2993
  %v2995 = vpop.f32.mrf.mxu0
  %v2996 = vadd.f32 %v2977, %v2995
  %2997 = vdwg.mxu0
  %v2998 = vmax.f32 %v2989, 0.0
  %v2999 = vmax.f32 %v2991, 0.0
  %v3000 = vmax.f32 %v2994, 0.0
  %v3001 = vmax.f32 %v2996, 0.0
  %3002 = vst.msk [vmem:[#allocation3] sm:$0xff] %vm2659, %v2998
  %3003 = vst.msk [vmem:[#allocation3 + $0x8] sm:$0xff] %vm2659, %v2999
  %3004 = vst.msk [vmem:[#allocation3 + $0x10] sm:$0xff] %vm2659, %v3000
  %3005 = vst.msk [vmem:[#allocation3 + $0x18] sm:$0xff] %vm2659, %v3001
  %v3006 = vld [vmem:[#allocation3] ss:$2 sm:$0xff]
  %s3007 = scalar_lea.vmem [#allocation3], 16
  %v3008 = vld [vmem:[%s3007] ss:$2 sm:$0xff]
  %s3009 = scalar_lea.vmem [#allocation3], 1
  %v3010 = vld [vmem:[%s3009] ss:$2 sm:$0xff]
  %s3011 = scalar_lea.vmem [#allocation3], 17
  %v3012 = vld [vmem:[%s3011] ss:$2 sm:$0xff]
  %v3013 = vmax.f32 %v3006, %v3010
  %v3014 = vmax.f32 %v3008, %v3012
  %3015 = vst.msk [vmem:[#allocation4] sm:$0xff] %vm2659, %v3013
  %3016 = vst.msk [vmem:[#allocation4 + $0x8] sm:$0xff] %vm2659, %v3014
  %v3017 = vld [vmem:[#allocation4] ss:$8 sm:$0x3]
  %s3018 = scalar_lea.vmem [#allocation4], 1
  %v3019 = vld [vmem:[%s3018] ss:$8 sm:$0x3]
  %s3020 = scalar_lea.vmem [#allocation4], 2
  %v3021 = vld [vmem:[%s3020] ss:$8 sm:$0x3]
  %s3022 = scalar_lea.vmem [#allocation4], 3
  %v3023 = vld [vmem:[%s3022] ss:$8 sm:$0x3]
  %s3024 = scalar_lea.vmem [#allocation4], 4
  %v3025 = vld [vmem:[%s3024] ss:$8 sm:$0x3]
  %s3026 = scalar_lea.vmem [#allocation4], 5
  %v3027 = vld [vmem:[%s3026] ss:$8 sm:$0x3]
  %v3029 = vrot.slane %v3019, 6
  %v3032 = vrot.slane %v3021, 4
  %v3035 = vrot.slane %v3023, 2
  %v3038 = vrot.slane %v3027, 6
  %vm3040 = vcmask 1041408
  %v3041 = vsel %vm3040, %v3017, %v3029
  %vm3042 = vcmask 1043456
  %v3043 = vsel %vm3042, %v3041, %v3032
  %vm3044 = vcmask 1045504
  %v3045 = vsel %vm3044, %v3043, %v3035
  %v3046 = vsel %vm3040, %v3025, %v3038
  %vm3047 = vcmask 261120
  %v3048 = vsel %vm3047, 1.0, 0.0
  %v3049 = vsel %vm3047, 0.0, 1.0
  %v3051 = vrot.slane %v3049, 6
  %v3053 = vsel %vm3040, %v3048, %v3051
  %v3054 = vpack.c.bf16 %v3046, %v3045
  %v3055 = vld [vmem:[%s5] sm:$0xff]
  %v3056 = vld [vmem:[%s5 + $0x8] sm:$0xff]
  %v3057 = vld [vmem:[%s5 + $0x10] sm:$0xff]
  %v3058 = vld [vmem:[%s5 + $0x18] sm:$0xff]
  %v3059 = vld [vmem:[%s5 + $0x20] sm:$0xff]
  %v3060 = vld [vmem:[%s5 + $0x28] sm:$0xff]
  %v3061 = vld [vmem:[%s5 + $0x30] sm:$0xff]
  %v3062 = vld [vmem:[%s5 + $0x38] sm:$0xff]
  %v3063 = vld [vmem:[%s7] sm:$0x3]
  %v3065 = vperm.slane %v3063, 0
  %v3066 = vperm.slane %v3063, 1
  %v3077 = vunpack.c.l.b16 %v3055
  %v3078 = vunpack.c.h.b16 %v3055
  %v3079 = vunpack.c.l.b16 %v3056
  %v3080 = vunpack.c.h.b16 %v3056
  %v3081 = vunpack.c.l.b16 %v3057
  %v3082 = vunpack.c.h.b16 %v3057
  %v3083 = vunpack.c.l.b16 %v3058
  %v3084 = vunpack.c.h.b16 %v3058
  %v3085 = vunpack.c.l.b16 %v3059
  %v3086 = vunpack.c.h.b16 %v3059
  %v3087 = vunpack.c.l.b16 %v3060
  %v3088 = vunpack.c.h.b16 %v3060
  %v3089 = vunpack.c.l.b16 %v3061
  %v3090 = vunpack.c.h.b16 %v3061
  %v3091 = vunpack.c.l.b16 %v3062
  %v3092 = vunpack.c.h.b16 %v3062
  %v3093 = vpack.c.b16 %v3079, %v3077
  %v3094 = vpack.c.b16 %v3080, %v3078
  %v3095 = vpack.c.b16 %v3083, %v3081
  %v3096 = vpack.c.b16 %v3084, %v3082
  %v3097 = vpack.c.b16 %v3087, %v3085
  %v3098 = vpack.c.b16 %v3088, %v3086
  %v3099 = vpack.c.b16 %v3091, %v3089
  %v3100 = vpack.c.b16 %v3092, %v3090
  %v3110 = vsel %vm2659, %v3054, 0
  %3112 = vmatpush.bf16.msra.mxu0 0
  %3113 = vmatpush.bf16.msra.mxu0 0
  %3114 = vmatpush.bf16.msra.mxu0 0
  %3115 = vmatpush.bf16.msra.mxu0 0
  %3116 = vmatpush.bf16.msra.mxu0 %v3099
  %3117 = vmatpush.bf16.msra.mxu0 %v3097
  %3118 = vmatpush.bf16.msra.mxu0 %v3095
  %3119 = vmatpush.bf16.msra.mxu0 %v3093
  %3120 = vmatmul.bf16.gmra.mxu0 %v3110
  %v3121 = vpop.f32.mrf.mxu0
  %v3122 = vadd.f32 %v3065, %v3121
  %v3123 = vpop.f32.mrf.mxu0
  %v3124 = vadd.f32 %v3065, %v3123
  %3125 = vdwg.mxu0
  %3126 = vmatpush.bf16.msra.mxu0 0
  %3127 = vmatpush.bf16.msra.mxu0 0
  %3128 = vmatpush.bf16.msra.mxu0 0
  %3129 = vmatpush.bf16.msra.mxu0 0
  %3130 = vmatpush.bf16.msra.mxu0 %v3100
  %3131 = vmatpush.bf16.msra.mxu0 %v3098
  %3132 = vmatpush.bf16.msra.mxu0 %v3096
  %3133 = vmatpush.bf16.msra.mxu0 %v3094
  %3134 = vmatmul.bf16.gmra.mxu0 %v3110
  %v3135 = vpop.f32.mrf.mxu0
  %v3136 = vadd.f32 %v3066, %v3135
  %v3137 = vpop.f32.mrf.mxu0
  %v3138 = vadd.f32 %v3066, %v3137
  %3139 = vdwg.mxu0
  %v3140 = vld [vmem:[%s6] sm:$0xf]
  %v3141 = vld [vmem:[%s6 + $0x4] sm:$0xf]
  %v3142 = vld [vmem:[%s6 + $0x8] sm:$0xf]
  %v3143 = vld [vmem:[%s6 + $0xc] sm:$0xf]
  %v3144 = vld [vmem:[%s6 + $0x10] sm:$0xf]
  %v3145 = vld [vmem:[%s6 + $0x14] sm:$0xf]
  %v3146 = vld [vmem:[%s6 + $0x18] sm:$0xf]
  %v3147 = vld [vmem:[%s6 + $0x1c] sm:$0xf]
  %v3148 = vsel %vm3040, %v3122, %v3138
  %v3149 = vmul.f32 %v3053, 0.0
  %v3150 = vpack.c.bf16 %v3149, %v3149
  %v3159 = vunpack.c.l.b16 %v3140
  %v3160 = vunpack.c.l.b16 %v3141
  %v3161 = vunpack.c.l.b16 %v3142
  %v3162 = vunpack.c.l.b16 %v3143
  %v3163 = vunpack.c.l.b16 %v3144
  %v3164 = vunpack.c.l.b16 %v3145
  %v3165 = vunpack.c.l.b16 %v3146
  %v3166 = vunpack.c.l.b16 %v3147
  %v3167 = vpack.c.b16 %v3160, %v3159
  %v3168 = vpack.c.b16 %v3162, %v3161
  %v3169 = vpack.c.b16 %v3164, %v3163
  %v3170 = vpack.c.b16 %v3166, %v3165
  %v3176 = vsel %vm2659, %v3150, 0
  %3178 = vmatpush.bf16.msra.mxu0 0
  %3179 = vmatpush.bf16.msra.mxu0 0
  %3180 = vmatpush.bf16.msra.mxu0 0
  %3181 = vmatpush.bf16.msra.mxu0 0
  %3182 = vmatpush.bf16.msra.mxu0 %v3170
  %3183 = vmatpush.bf16.msra.mxu0 %v3169
  %3184 = vmatpush.bf16.msra.mxu0 %v3168
  %3185 = vmatpush.bf16.msra.mxu0 %v3167
  %3186 = vmatmul.bf16.gmra.mxu0 %v3176
  %v3187 = vpop.f32.mrf.mxu0
  %v3188 = vadd.f32 0.0, %v3187
  %v3189 = vpop.f32.mrf.mxu0
  %3190 = vdwg.mxu0
  %v3191 = vadd.f32 %v3148, %v3188
  %v3192 = vxor.u32 %v3191, 2147483648
  %v3193 = vmul.f32 %v3192, 1.442695
  %v3194 = vpow.pop %v3193
  %v3195 = vadd.f32 %v3194, 1.0
  %v3196 = vrcp.pop %v3195
  %v3197 = vmul.f32 %v3195, %v3196
  %v3198 = vsub.f32 1.0, %v3197
  %v3199 = vmul.f32 %v3196, %v3198
  %v3200 = vadd.f32 %v3196, %v3199
  %vm3201 = vweird.f32 %v3195
  %vm3202 = vweird.f32 %v3196
  %vm3203 = vmor %vm3201, %vm3202
  %v3204 = vsel %vm3203, %v3196, %v3200
  %v3205 = vand.u32 2147483647, %v3195
  %vm3206 = vcmp.eq.f32.partialorder %v3205, 8.507059e+37
  %v3207 = vand.u32 %v3195, 2147483648
  %v3208 = vor.u32 1.1754944e-38, %v3207
  %v3209 = vsel %vm3206, %v3208, %v3204
  %v3210 = vmul.f32 1.0, %v3209
  %v3211 = vtanh.pop %v3191
  %v3212 = vmul.f32 %v3210, 0.0
  %3214 = vrot.lane.b32.xlu0 %v3211, 64
  %v3215 = vpop.permute.xlu0 %3214
  %v3217 = vmul.f32 %v3210, %v3215
  %3219 = vrot.lane.b32.xlu0 %v3217, 32
  %v3220 = vpop.permute.xlu0 %3219
  %v3222 = vadd.f32 %v3212, %v3220
  %v3223 = vtanh.pop %v3222
  %3225 = vrot.lane.b32.xlu0 %v3223, 64
  %v3226 = vpop.permute.xlu0 %3225
  %v3228 = vmul.f32 %v3210, %v3226
  %v3230 = vrot.slane %v3122, 2
  %v3233 = vrot.slane %v3138, 6
  %v3235 = vsel %vm3040, %v3230, %v3233
  %3237 = vrot.lane.b32.xlu0 %v3228, 32
  %v3238 = vpop.permute.xlu0 %3237
  %3240 = vrot.lane.b32.xlu0 %v3228, 64
  %v3241 = vpop.permute.xlu0 %3240
  %v3243 = vsel %vm3047, %v3238, %v3241
  %v3244 = vmul.f32 %v3243, %v3053
  %v3245 = vpack.c.bf16 %v3244, %v3244
  %v3247 = vsel %vm2659, %v3245, 0
  %3249 = vmatpush.bf16.msra.mxu0 0
  %3250 = vmatpush.bf16.msra.mxu0 0
  %3251 = vmatpush.bf16.msra.mxu0 0
  %3252 = vmatpush.bf16.msra.mxu0 0
  %3253 = vmatpush.bf16.msra.mxu0 %v3170
  %3254 = vmatpush.bf16.msra.mxu0 %v3169
  %3255 = vmatpush.bf16.msra.mxu0 %v3168
  %3256 = vmatpush.bf16.msra.mxu0 %v3167
  %3257 = vmatmul.bf16.gmra.mxu0 %v3247
  %v3258 = vpop.f32.mrf.mxu0
  %v3259 = vadd.f32 0.0, %v3258
  %v3260 = vpop.f32.mrf.mxu0
  %3261 = vdwg.mxu0
  %v3262 = vadd.f32 %v3235, %v3259
  %v3263 = vxor.u32 %v3262, 2147483648
  %v3264 = vmul.f32 %v3263, 1.442695
  %v3265 = vpow.pop %v3264
  %v3266 = vadd.f32 %v3265, 1.0
  %v3267 = vrcp.pop %v3266
  %v3268 = vmul.f32 %v3266, %v3267
  %v3269 = vsub.f32 1.0, %v3268
  %v3270 = vmul.f32 %v3267, %v3269
  %v3271 = vadd.f32 %v3267, %v3270
  %vm3272 = vweird.f32 %v3266
  %vm3273 = vweird.f32 %v3267
  %vm3274 = vmor %vm3272, %vm3273
  %v3275 = vsel %vm3274, %v3267, %v3271
  %v3276 = vand.u32 2147483647, %v3266
  %vm3277 = vcmp.eq.f32.partialorder %v3276, 8.507059e+37
  %v3278 = vand.u32 %v3266, 2147483648
  %v3279 = vor.u32 1.1754944e-38, %v3278
  %v3280 = vsel %vm3277, %v3279, %v3275
  %v3281 = vmul.f32 1.0, %v3280
  %v3282 = vtanh.pop %v3262
  %v3283 = vmul.f32 %v3281, %v3222
  %3285 = vrot.lane.b32.xlu0 %v3282, 64
  %v3286 = vpop.permute.xlu0 %3285
  %v3288 = vmul.f32 %v3281, %v3286
  %3290 = vrot.lane.b32.xlu0 %v3288, 32
  %v3291 = vpop.permute.xlu0 %3290
  %v3293 = vadd.f32 %v3283, %v3291
  %v3294 = vtanh.pop %v3293
  %3296 = vrot.lane.b32.xlu0 %v3294, 64
  %v3297 = vpop.permute.xlu0 %3296
  %v3299 = vmul.f32 %v3281, %v3297
  %v3300 = vrot.slane %v3122, 4
  %v3303 = vrot.slane %v3136, 4
  %v3305 = vsel %vm3040, %v3300, %v3303
  %3307 = vrot.lane.b32.xlu0 %v3299, 32
  %v3308 = vpop.permute.xlu0 %3307
  %3310 = vrot.lane.b32.xlu0 %v3299, 64
  %v3311 = vpop.permute.xlu0 %3310
  %v3313 = vsel %vm3047, %v3308, %v3311
  %v3314 = vmul.f32 %v3313, %v3053
  %v3315 = vpack.c.bf16 %v3314, %v3314
  %v3317 = vsel %vm2659, %v3315, 0
  %3319 = vmatpush.bf16.msra.mxu0 0
  %3320 = vmatpush.bf16.msra.mxu0 0
  %3321 = vmatpush.bf16.msra.mxu0 0
  %3322 = vmatpush.bf16.msra.mxu0 0
  %3323 = vmatpush.bf16.msra.mxu0 %v3170
  %3324 = vmatpush.bf16.msra.mxu0 %v3169
  %3325 = vmatpush.bf16.msra.mxu0 %v3168
  %3326 = vmatpush.bf16.msra.mxu0 %v3167
  %3327 = vmatmul.bf16.gmra.mxu0 %v3317
  %v3328 = vpop.f32.mrf.mxu0
  %v3329 = vadd.f32 0.0, %v3328
  %v3330 = vpop.f32.mrf.mxu0
  %3331 = vdwg.mxu0
  %v3332 = vadd.f32 %v3305, %v3329
  %v3333 = vxor.u32 %v3332, 2147483648
  %v3334 = vmul.f32 %v3333, 1.442695
  %v3335 = vpow.pop %v3334
  %v3336 = vadd.f32 %v3335, 1.0
  %v3337 = vrcp.pop %v3336
  %v3338 = vmul.f32 %v3336, %v3337
  %v3339 = vsub.f32 1.0, %v3338
  %v3340 = vmul.f32 %v3337, %v3339
  %v3341 = vadd.f32 %v3337, %v3340
  %vm3342 = vweird.f32 %v3336
  %vm3343 = vweird.f32 %v3337
  %vm3344 = vmor %vm3342, %vm3343
  %v3345 = vsel %vm3344, %v3337, %v3341
  %v3346 = vand.u32 2147483647, %v3336
  %vm3347 = vcmp.eq.f32.partialorder %v3346, 8.507059e+37
  %v3348 = vand.u32 %v3336, 2147483648
  %v3349 = vor.u32 1.1754944e-38, %v3348
  %v3350 = vsel %vm3347, %v3349, %v3345
  %v3351 = vmul.f32 1.0, %v3350
  %v3352 = vtanh.pop %v3332
  %v3353 = vmul.f32 %v3351, %v3293
  %3355 = vrot.lane.b32.xlu0 %v3352, 64
  %v3356 = vpop.permute.xlu0 %3355
  %v3358 = vmul.f32 %v3351, %v3356
  %3360 = vrot.lane.b32.xlu0 %v3358, 32
  %v3361 = vpop.permute.xlu0 %3360
  %v3363 = vadd.f32 %v3353, %v3361
  %v3364 = vtanh.pop %v3363
  %3366 = vrot.lane.b32.xlu0 %v3364, 64
  %v3367 = vpop.permute.xlu0 %3366
  %v3369 = vmul.f32 %v3351, %v3367
  %v3370 = vrot.slane %v3122, 6
  %v3372 = vrot.slane %v3136, 2
  %v3374 = vsel %vm3040, %v3370, %v3372
  %3376 = vrot.lane.b32.xlu0 %v3369, 32
  %v3377 = vpop.permute.xlu0 %3376
  %3379 = vrot.lane.b32.xlu0 %v3369, 64
  %v3380 = vpop.permute.xlu0 %3379
  %v3382 = vsel %vm3047, %v3377, %v3380
  %v3383 = vmul.f32 %v3382, %v3053
  %v3384 = vpack.c.bf16 %v3383, %v3383
  %v3386 = vsel %vm2659, %v3384, 0
  %3388 = vmatpush.bf16.msra.mxu0 0
  %3389 = vmatpush.bf16.msra.mxu0 0
  %3390 = vmatpush.bf16.msra.mxu0 0
  %3391 = vmatpush.bf16.msra.mxu0 0
  %3392 = vmatpush.bf16.msra.mxu0 %v3170
  %3393 = vmatpush.bf16.msra.mxu0 %v3169
  %3394 = vmatpush.bf16.msra.mxu0 %v3168
  %3395 = vmatpush.bf16.msra.mxu0 %v3167
  %3396 = vmatmul.bf16.gmra.mxu0 %v3386
  %v3397 = vpop.f32.mrf.mxu0
  %v3398 = vadd.f32 0.0, %v3397
  %v3399 = vpop.f32.mrf.mxu0
  %3400 = vdwg.mxu0
  %v3401 = vadd.f32 %v3374, %v3398
  %v3402 = vxor.u32 %v3401, 2147483648
  %v3403 = vmul.f32 %v3402, 1.442695
  %v3404 = vpow.pop %v3403
  %v3405 = vadd.f32 %v3404, 1.0
  %v3406 = vrcp.pop %v3405
  %v3407 = vmul.f32 %v3405, %v3406
  %v3408 = vsub.f32 1.0, %v3407
  %v3409 = vmul.f32 %v3406, %v3408
  %v3410 = vadd.f32 %v3406, %v3409
  %vm3411 = vweird.f32 %v3405
  %vm3412 = vweird.f32 %v3406
  %vm3413 = vmor %vm3411, %vm3412
  %v3414 = vsel %vm3413, %v3406, %v3410
  %v3415 = vand.u32 2147483647, %v3405
  %vm3416 = vcmp.eq.f32.partialorder %v3415, 8.507059e+37
  %v3417 = vand.u32 %v3405, 2147483648
  %v3418 = vor.u32 1.1754944e-38, %v3417
  %v3419 = vsel %vm3416, %v3418, %v3414
  %v3420 = vmul.f32 1.0, %v3419
  %v3421 = vtanh.pop %v3401
  %v3422 = vmul.f32 %v3420, %v3363
  %3424 = vrot.lane.b32.xlu0 %v3421, 64
  %v3425 = vpop.permute.xlu0 %3424
  %v3427 = vmul.f32 %v3420, %v3425
  %3429 = vrot.lane.b32.xlu0 %v3427, 32
  %v3430 = vpop.permute.xlu0 %3429
  %v3432 = vadd.f32 %v3422, %v3430
  %v3433 = vtanh.pop %v3432
  %3435 = vrot.lane.b32.xlu0 %v3433, 64
  %v3436 = vpop.permute.xlu0 %3435
  %v3438 = vmul.f32 %v3420, %v3436
  %v3439 = vsel %vm3040, %v3124, %v3136
  %3441 = vrot.lane.b32.xlu0 %v3438, 32
  %v3442 = vpop.permute.xlu0 %3441
  %3444 = vrot.lane.b32.xlu0 %v3438, 64
  %v3445 = vpop.permute.xlu0 %3444
  %v3447 = vsel %vm3047, %v3442, %v3445
  %v3448 = vmul.f32 %v3447, %v3053
  %v3449 = vpack.c.bf16 %v3448, %v3448
  %v3451 = vsel %vm2659, %v3449, 0
  %3453 = vmatpush.bf16.msra.mxu0 0
  %3454 = vmatpush.bf16.msra.mxu0 0
  %3455 = vmatpush.bf16.msra.mxu0 0
  %3456 = vmatpush.bf16.msra.mxu0 0
  %3457 = vmatpush.bf16.msra.mxu0 %v3170
  %3458 = vmatpush.bf16.msra.mxu0 %v3169
  %3459 = vmatpush.bf16.msra.mxu0 %v3168
  %3460 = vmatpush.bf16.msra.mxu0 %v3167
  %3461 = vmatmul.bf16.gmra.mxu0 %v3451
  %v3462 = vpop.f32.mrf.mxu0
  %v3463 = vadd.f32 0.0, %v3462
  %v3464 = vpop.f32.mrf.mxu0
  %3465 = vdwg.mxu0
  %v3466 = vadd.f32 %v3439, %v3463
  %v3467 = vxor.u32 %v3466, 2147483648
  %v3468 = vmul.f32 %v3467, 1.442695
  %v3469 = vpow.pop %v3468
  %v3470 = vadd.f32 %v3469, 1.0
  %v3471 = vrcp.pop %v3470
  %v3472 = vmul.f32 %v3470, %v3471
  %v3473 = vsub.f32 1.0, %v3472
  %v3474 = vmul.f32 %v3471, %v3473
  %v3475 = vadd.f32 %v3471, %v3474
  %vm3476 = vweird.f32 %v3470
  %vm3477 = vweird.f32 %v3471
  %vm3478 = vmor %vm3476, %vm3477
  %v3479 = vsel %vm3478, %v3471, %v3475
  %v3480 = vand.u32 2147483647, %v3470
  %vm3481 = vcmp.eq.f32.partialorder %v3480, 8.507059e+37
  %v3482 = vand.u32 %v3470, 2147483648
  %v3483 = vor.u32 1.1754944e-38, %v3482
  %v3484 = vsel %vm3481, %v3483, %v3479
  %v3485 = vmul.f32 1.0, %v3484
  %v3486 = vtanh.pop %v3466
  %v3487 = vmul.f32 %v3485, %v3432
  %3489 = vrot.lane.b32.xlu0 %v3486, 64
  %v3490 = vpop.permute.xlu0 %3489
  %v3492 = vmul.f32 %v3485, %v3490
  %3494 = vrot.lane.b32.xlu0 %v3492, 32
  %v3495 = vpop.permute.xlu0 %3494
  %v3497 = vadd.f32 %v3487, %v3495
  %v3498 = vtanh.pop %v3497
  %3500 = vrot.lane.b32.xlu0 %v3498, 64
  %v3501 = vpop.permute.xlu0 %3500
  %v3503 = vmul.f32 %v3485, %v3501
  %v3505 = vrot.slane %v3124, 2
  %v3507 = vrot.slane %v3136, 6
  %v3509 = vsel %vm3040, %v3505, %v3507
  %3511 = vrot.lane.b32.xlu0 %v3503, 32
  %v3512 = vpop.permute.xlu0 %3511
  %3514 = vrot.lane.b32.xlu0 %v3503, 64
  %v3515 = vpop.permute.xlu0 %3514
  %v3517 = vsel %vm3047, %v3512, %v3515
  %v3518 = vmul.f32 %v3517, %v3053
  %v3519 = vpack.c.bf16 %v3518, %v3518
  %v3521 = vsel %vm2659, %v3519, 0
  %3523 = vmatpush.bf16.msra.mxu0 0
  %3524 = vmatpush.bf16.msra.mxu0 0
  %3525 = vmatpush.bf16.msra.mxu0 0
  %3526 = vmatpush.bf16.msra.mxu0 0
  %3527 = vmatpush.bf16.msra.mxu0 %v3170
  %3528 = vmatpush.bf16.msra.mxu0 %v3169
  %3529 = vmatpush.bf16.msra.mxu0 %v3168
  %3530 = vmatpush.bf16.msra.mxu0 %v3167
  %3531 = vmatmul.bf16.gmra.mxu0 %v3521
  %v3532 = vpop.f32.mrf.mxu0
  %v3533 = vadd.f32 0.0, %v3532
  %v3534 = vpop.f32.mrf.mxu0
  %3535 = vdwg.mxu0
  %v3536 = vadd.f32 %v3509, %v3533
  %v3537 = vxor.u32 %v3536, 2147483648
  %v3538 = vmul.f32 %v3537, 1.442695
  %v3539 = vpow.pop %v3538
  %v3540 = vadd.f32 %v3539, 1.0
  %v3541 = vrcp.pop %v3540
  %v3542 = vmul.f32 %v3540, %v3541
  %v3543 = vsub.f32 1.0, %v3542
  %v3544 = vmul.f32 %v3541, %v3543
  %v3545 = vadd.f32 %v3541, %v3544
  %vm3546 = vweird.f32 %v3540
  %vm3547 = vweird.f32 %v3541
  %vm3548 = vmor %vm3546, %vm3547
  %v3549 = vsel %vm3548, %v3541, %v3545
  %v3550 = vand.u32 2147483647, %v3540
  %vm3551 = vcmp.eq.f32.partialorder %v3550, 8.507059e+37
  %v3552 = vand.u32 %v3540, 2147483648
  %v3553 = vor.u32 1.1754944e-38, %v3552
  %v3554 = vsel %vm3551, %v3553, %v3549
  %v3555 = vmul.f32 1.0, %v3554
  %v3556 = vtanh.pop %v3536
  %v3557 = vmul.f32 %v3555, %v3497
  %3559 = vrot.lane.b32.xlu0 %v3556, 64
  %v3560 = vpop.permute.xlu0 %3559
  %v3562 = vmul.f32 %v3555, %v3560
  %3564 = vrot.lane.b32.xlu0 %v3562, 32
  %v3565 = vpop.permute.xlu0 %3564
  %v3567 = vadd.f32 %v3557, %v3565
  %v3568 = vtanh.pop %v3567
  %3570 = vrot.lane.b32.xlu0 %v3568, 64
  %v3571 = vpop.permute.xlu0 %3570
  %v3573 = vmul.f32 %v3555, %v3571
  %v3574 = vrot.slane %v3299, 6
  %v3576 = vrot.slane %v3369, 4
  %v3578 = vrot.slane %v3438, 2
  %v3581 = vrot.slane %v3573, 6
  %v3583 = vsel %vm3040, %v3228, %v3574
  %v3584 = vsel %vm3042, %v3583, %v3576
  %v3585 = vsel %vm3044, %v3584, %v3578
  %v3586 = vsel %vm3040, %v3503, %v3581
  %v3587 = vrot.slane %v3573, 2
  %v3589 = vrot.slane %v3438, 6
  %v3591 = vrot.slane %v3299, 2
  %v3593 = vsel %vm3040, %v3587, %v3503
  %v3594 = vsel %vm3042, %v3593, %v3589
  %v3595 = vsel %vm3044, %v3594, %v3576
  %v3596 = vsel %vm3040, %v3591, %v3228
  %3599 = vrot.lane.b32.xlu0 %v3585, 32
  %v3600 = vpop.permute.xlu0 %3599
  %3601 = vrot.lane.b32.xlu0 %v3586, 32
  %v3602 = vpop.permute.xlu0 %3601
  %3607 = vrot.lane.b32.xlu0 %v3595, 64
  %v3608 = vpop.permute.xlu0 %3607
  %3609 = vrot.lane.b32.xlu0 %v3596, 64
  %v3610 = vpop.permute.xlu0 %3609
  %v3613 = vsel %vm3047, %v3600, %v3608
  %v3614 = vsel %vm3047, %v3602, %v3610
  %v3615 = vpack.c.bf16 %v3614, %v3613
  %s3616 = scalar_lea.vmem %s5, 64
  %v3617 = vld [vmem:[%s3616] sm:$0xff]
  %v3618 = vld [vmem:[%s3616 + $0x8] sm:$0xff]
  %v3619 = vld [vmem:[%s3616 + $0x10] sm:$0xff]
  %v3620 = vld [vmem:[%s3616 + $0x18] sm:$0xff]
  %v3621 = vld [vmem:[%s3616 + $0x20] sm:$0xff]
  %v3622 = vld [vmem:[%s3616 + $0x28] sm:$0xff]
  %v3623 = vld [vmem:[%s3616 + $0x30] sm:$0xff]
  %v3624 = vld [vmem:[%s3616 + $0x38] sm:$0xff]
  %s3625 = scalar_lea.vmem %s7, 2
  %v3626 = vld [vmem:[%s3625] sm:$0x3]
  %v3628 = vperm.slane %v3626, 0
  %v3629 = vperm.slane %v3626, 1
  %v3640 = vunpack.c.l.b16 %v3617
  %v3641 = vunpack.c.h.b16 %v3617
  %v3642 = vunpack.c.l.b16 %v3618
  %v3643 = vunpack.c.h.b16 %v3618
  %v3644 = vunpack.c.l.b16 %v3619
  %v3645 = vunpack.c.h.b16 %v3619
  %v3646 = vunpack.c.l.b16 %v3620
  %v3647 = vunpack.c.h.b16 %v3620
  %v3648 = vunpack.c.l.b16 %v3621
  %v3649 = vunpack.c.h.b16 %v3621
  %v3650 = vunpack.c.l.b16 %v3622
  %v3651 = vunpack.c.h.b16 %v3622
  %v3652 = vunpack.c.l.b16 %v3623
  %v3653 = vunpack.c.h.b16 %v3623
  %v3654 = vunpack.c.l.b16 %v3624
  %v3655 = vunpack.c.h.b16 %v3624
  %v3656 = vpack.c.b16 %v3642, %v3640
  %v3657 = vpack.c.b16 %v3643, %v3641
  %v3658 = vpack.c.b16 %v3646, %v3644
  %v3659 = vpack.c.b16 %v3647, %v3645
  %v3660 = vpack.c.b16 %v3650, %v3648
  %v3661 = vpack.c.b16 %v3651, %v3649
  %v3662 = vpack.c.b16 %v3654, %v3652
  %v3663 = vpack.c.b16 %v3655, %v3653
  %v3673 = vsel %vm2659, %v3615, 0
  %3675 = vmatpush.bf16.msra.mxu0 0
  %3676 = vmatpush.bf16.msra.mxu0 0
  %3677 = vmatpush.bf16.msra.mxu0 0
  %3678 = vmatpush.bf16.msra.mxu0 0
  %3679 = vmatpush.bf16.msra.mxu0 %v3662
  %3680 = vmatpush.bf16.msra.mxu0 %v3660
  %3681 = vmatpush.bf16.msra.mxu0 %v3658
  %3682 = vmatpush.bf16.msra.mxu0 %v3656
  %3683 = vmatmul.bf16.gmra.mxu0 %v3673
  %v3684 = vpop.f32.mrf.mxu0
  %v3685 = vadd.f32 %v3628, %v3684
  %v3686 = vpop.f32.mrf.mxu0
  %v3687 = vadd.f32 %v3628, %v3686
  %3688 = vdwg.mxu0
  %3689 = vmatpush.bf16.msra.mxu0 0
  %3690 = vmatpush.bf16.msra.mxu0 0
  %3691 = vmatpush.bf16.msra.mxu0 0
  %3692 = vmatpush.bf16.msra.mxu0 0
  %3693 = vmatpush.bf16.msra.mxu0 %v3663
  %3694 = vmatpush.bf16.msra.mxu0 %v3661
  %3695 = vmatpush.bf16.msra.mxu0 %v3659
  %3696 = vmatpush.bf16.msra.mxu0 %v3657
  %3697 = vmatmul.bf16.gmra.mxu0 %v3673
  %v3698 = vpop.f32.mrf.mxu0
  %v3699 = vadd.f32 %v3629, %v3698
  %v3700 = vpop.f32.mrf.mxu0
  %v3701 = vadd.f32 %v3629, %v3700
  %3702 = vdwg.mxu0
  %s3703 = scalar_lea.vmem %s6, 32
  %v3704 = vld [vmem:[%s3703] sm:$0xf]
  %v3705 = vld [vmem:[%s3703 + $0x4] sm:$0xf]
  %v3706 = vld [vmem:[%s3703 + $0x8] sm:$0xf]
  %v3707 = vld [vmem:[%s3703 + $0xc] sm:$0xf]
  %v3708 = vld [vmem:[%s3703 + $0x10] sm:$0xf]
  %v3709 = vld [vmem:[%s3703 + $0x14] sm:$0xf]
  %v3710 = vld [vmem:[%s3703 + $0x18] sm:$0xf]
  %v3711 = vld [vmem:[%s3703 + $0x1c] sm:$0xf]
  %v3712 = vsel %vm3040, %v3685, %v3701
  %v3721 = vunpack.c.l.b16 %v3704
  %v3722 = vunpack.c.l.b16 %v3705
  %v3723 = vunpack.c.l.b16 %v3706
  %v3724 = vunpack.c.l.b16 %v3707
  %v3725 = vunpack.c.l.b16 %v3708
  %v3726 = vunpack.c.l.b16 %v3709
  %v3727 = vunpack.c.l.b16 %v3710
  %v3728 = vunpack.c.l.b16 %v3711
  %v3729 = vpack.c.b16 %v3722, %v3721
  %v3730 = vpack.c.b16 %v3724, %v3723
  %v3731 = vpack.c.b16 %v3726, %v3725
  %v3732 = vpack.c.b16 %v3728, %v3727
  %3737 = vmatpush.bf16.msra.mxu0 0
  %3738 = vmatpush.bf16.msra.mxu0 0
  %3739 = vmatpush.bf16.msra.mxu0 0
  %3740 = vmatpush.bf16.msra.mxu0 0
  %3741 = vmatpush.bf16.msra.mxu0 %v3732
  %3742 = vmatpush.bf16.msra.mxu0 %v3731
  %3743 = vmatpush.bf16.msra.mxu0 %v3730
  %3744 = vmatpush.bf16.msra.mxu0 %v3729
  %3745 = vmatmul.bf16.gmra.mxu0 %v3176
  %v3746 = vpop.f32.mrf.mxu0
  %v3747 = vadd.f32 0.0, %v3746
  %v3748 = vpop.f32.mrf.mxu0
  %3749 = vdwg.mxu0
  %v3750 = vadd.f32 %v3712, %v3747
  %v3751 = vxor.u32 %v3750, 2147483648
  %v3752 = vmul.f32 %v3751, 1.442695
  %v3753 = vpow.pop %v3752
  %v3754 = vadd.f32 %v3753, 1.0
  %v3755 = vrcp.pop %v3754
  %v3756 = vmul.f32 %v3754, %v3755
  %v3757 = vsub.f32 1.0, %v3756
  %v3758 = vmul.f32 %v3755, %v3757
  %v3759 = vadd.f32 %v3755, %v3758
  %vm3760 = vweird.f32 %v3754
  %vm3761 = vweird.f32 %v3755
  %vm3762 = vmor %vm3760, %vm3761
  %v3763 = vsel %vm3762, %v3755, %v3759
  %v3764 = vand.u32 2147483647, %v3754
  %vm3765 = vcmp.eq.f32.partialorder %v3764, 8.507059e+37
  %v3766 = vand.u32 %v3754, 2147483648
  %v3767 = vor.u32 1.1754944e-38, %v3766
  %v3768 = vsel %vm3765, %v3767, %v3763
  %v3769 = vmul.f32 1.0, %v3768
  %v3770 = vtanh.pop %v3750
  %v3771 = vmul.f32 %v3769, 0.0
  %3773 = vrot.lane.b32.xlu0 %v3770, 64
  %v3774 = vpop.permute.xlu0 %3773
  %v3776 = vmul.f32 %v3769, %v3774
  %3778 = vrot.lane.b32.xlu0 %v3776, 32
  %v3779 = vpop.permute.xlu0 %3778
  %v3781 = vadd.f32 %v3771, %v3779
  %v3782 = vtanh.pop %v3781
  %3784 = vrot.lane.b32.xlu0 %v3782, 64
  %v3785 = vpop.permute.xlu0 %3784
  %v3787 = vmul.f32 %v3769, %v3785
  %v3789 = vrot.slane %v3685, 2
  %v3792 = vrot.slane %v3701, 6
  %v3794 = vsel %vm3040, %v3789, %v3792
  %3796 = vrot.lane.b32.xlu0 %v3787, 32
  %v3797 = vpop.permute.xlu0 %3796
  %3799 = vrot.lane.b32.xlu0 %v3787, 64
  %v3800 = vpop.permute.xlu0 %3799
  %v3802 = vsel %vm3047, %v3797, %v3800
  %v3803 = vmul.f32 %v3802, %v3053
  %v3804 = vpack.c.bf16 %v3803, %v3803
  %v3806 = vsel %vm2659, %v3804, 0
  %3808 = vmatpush.bf16.msra.mxu0 0
  %3809 = vmatpush.bf16.msra.mxu0 0
  %3810 = vmatpush.bf16.msra.mxu0 0
  %3811 = vmatpush.bf16.msra.mxu0 0
  %3812 = vmatpush.bf16.msra.mxu0 %v3732
  %3813 = vmatpush.bf16.msra.mxu0 %v3731
  %3814 = vmatpush.bf16.msra.mxu0 %v3730
  %3815 = vmatpush.bf16.msra.mxu0 %v3729
  %3816 = vmatmul.bf16.gmra.mxu0 %v3806
  %v3817 = vpop.f32.mrf.mxu0
  %v3818 = vadd.f32 0.0, %v3817
  %v3819 = vpop.f32.mrf.mxu0
  %3820 = vdwg.mxu0
  %v3821 = vadd.f32 %v3794, %v3818
  %v3822 = vxor.u32 %v3821, 2147483648
  %v3823 = vmul.f32 %v3822, 1.442695
  %v3824 = vpow.pop %v3823
  %v3825 = vadd.f32 %v3824, 1.0
  %v3826 = vrcp.pop %v3825
  %v3827 = vmul.f32 %v3825, %v3826
  %v3828 = vsub.f32 1.0, %v3827
  %v3829 = vmul.f32 %v3826, %v3828
  %v3830 = vadd.f32 %v3826, %v3829
  %vm3831 = vweird.f32 %v3825
  %vm3832 = vweird.f32 %v3826
  %vm3833 = vmor %vm3831, %vm3832
  %v3834 = vsel %vm3833, %v3826, %v3830
  %v3835 = vand.u32 2147483647, %v3825
  %vm3836 = vcmp.eq.f32.partialorder %v3835, 8.507059e+37
  %v3837 = vand.u32 %v3825, 2147483648
  %v3838 = vor.u32 1.1754944e-38, %v3837
  %v3839 = vsel %vm3836, %v3838, %v3834
  %v3840 = vmul.f32 1.0, %v3839
  %v3841 = vtanh.pop %v3821
  %v3842 = vmul.f32 %v3840, %v3781
  %3844 = vrot.lane.b32.xlu0 %v3841, 64
  %v3845 = vpop.permute.xlu0 %3844
  %v3847 = vmul.f32 %v3840, %v3845
  %3849 = vrot.lane.b32.xlu0 %v3847, 32
  %v3850 = vpop.permute.xlu0 %3849
  %v3852 = vadd.f32 %v3842, %v3850
  %v3853 = vtanh.pop %v3852
  %3855 = vrot.lane.b32.xlu0 %v3853, 64
  %v3856 = vpop.permute.xlu0 %3855
  %v3858 = vmul.f32 %v3840, %v3856
  %v3859 = vrot.slane %v3685, 4
  %v3862 = vrot.slane %v3699, 4
  %v3864 = vsel %vm3040, %v3859, %v3862
  %3866 = vrot.lane.b32.xlu0 %v3858, 32
  %v3867 = vpop.permute.xlu0 %3866
  %3869 = vrot.lane.b32.xlu0 %v3858, 64
  %v3870 = vpop.permute.xlu0 %3869
  %v3872 = vsel %vm3047, %v3867, %v3870
  %v3873 = vmul.f32 %v3872, %v3053
  %v3874 = vpack.c.bf16 %v3873, %v3873
  %v3876 = vsel %vm2659, %v3874, 0
  %3878 = vmatpush.bf16.msra.mxu0 0
  %3879 = vmatpush.bf16.msra.mxu0 0
  %3880 = vmatpush.bf16.msra.mxu0 0
  %3881 = vmatpush.bf16.msra.mxu0 0
  %3882 = vmatpush.bf16.msra.mxu0 %v3732
  %3883 = vmatpush.bf16.msra.mxu0 %v3731
  %3884 = vmatpush.bf16.msra.mxu0 %v3730
  %3885 = vmatpush.bf16.msra.mxu0 %v3729
  %3886 = vmatmul.bf16.gmra.mxu0 %v3876
  %v3887 = vpop.f32.mrf.mxu0
  %v3888 = vadd.f32 0.0, %v3887
  %v3889 = vpop.f32.mrf.mxu0
  %3890 = vdwg.mxu0
  %v3891 = vadd.f32 %v3864, %v3888
  %v3892 = vxor.u32 %v3891, 2147483648
  %v3893 = vmul.f32 %v3892, 1.442695
  %v3894 = vpow.pop %v3893
  %v3895 = vadd.f32 %v3894, 1.0
  %v3896 = vrcp.pop %v3895
  %v3897 = vmul.f32 %v3895, %v3896
  %v3898 = vsub.f32 1.0, %v3897
  %v3899 = vmul.f32 %v3896, %v3898
  %v3900 = vadd.f32 %v3896, %v3899
  %vm3901 = vweird.f32 %v3895
  %vm3902 = vweird.f32 %v3896
  %vm3903 = vmor %vm3901, %vm3902
  %v3904 = vsel %vm3903, %v3896, %v3900
  %v3905 = vand.u32 2147483647, %v3895
  %vm3906 = vcmp.eq.f32.partialorder %v3905, 8.507059e+37
  %v3907 = vand.u32 %v3895, 2147483648
  %v3908 = vor.u32 1.1754944e-38, %v3907
  %v3909 = vsel %vm3906, %v3908, %v3904
  %v3910 = vmul.f32 1.0, %v3909
  %v3911 = vtanh.pop %v3891
  %v3912 = vmul.f32 %v3910, %v3852
  %3914 = vrot.lane.b32.xlu0 %v3911, 64
  %v3915 = vpop.permute.xlu0 %3914
  %v3917 = vmul.f32 %v3910, %v3915
  %3919 = vrot.lane.b32.xlu0 %v3917, 32
  %v3920 = vpop.permute.xlu0 %3919
  %v3922 = vadd.f32 %v3912, %v3920
  %v3923 = vtanh.pop %v3922
  %3925 = vrot.lane.b32.xlu0 %v3923, 64
  %v3926 = vpop.permute.xlu0 %3925
  %v3928 = vmul.f32 %v3910, %v3926
  %v3929 = vrot.slane %v3685, 6
  %v3931 = vrot.slane %v3699, 2
  %v3933 = vsel %vm3040, %v3929, %v3931
  %3935 = vrot.lane.b32.xlu0 %v3928, 32
  %v3936 = vpop.permute.xlu0 %3935
  %3938 = vrot.lane.b32.xlu0 %v3928, 64
  %v3939 = vpop.permute.xlu0 %3938
  %v3941 = vsel %vm3047, %v3936, %v3939
  %v3942 = vmul.f32 %v3941, %v3053
  %v3943 = vpack.c.bf16 %v3942, %v3942
  %v3945 = vsel %vm2659, %v3943, 0
  %3947 = vmatpush.bf16.msra.mxu0 0
  %3948 = vmatpush.bf16.msra.mxu0 0
  %3949 = vmatpush.bf16.msra.mxu0 0
  %3950 = vmatpush.bf16.msra.mxu0 0
  %3951 = vmatpush.bf16.msra.mxu0 %v3732
  %3952 = vmatpush.bf16.msra.mxu0 %v3731
  %3953 = vmatpush.bf16.msra.mxu0 %v3730
  %3954 = vmatpush.bf16.msra.mxu0 %v3729
  %3955 = vmatmul.bf16.gmra.mxu0 %v3945
  %v3956 = vpop.f32.mrf.mxu0
  %v3957 = vadd.f32 0.0, %v3956
  %v3958 = vpop.f32.mrf.mxu0
  %3959 = vdwg.mxu0
  %v3960 = vadd.f32 %v3933, %v3957
  %v3961 = vxor.u32 %v3960, 2147483648
  %v3962 = vmul.f32 %v3961, 1.442695
  %v3963 = vpow.pop %v3962
  %v3964 = vadd.f32 %v3963, 1.0
  %v3965 = vrcp.pop %v3964
  %v3966 = vmul.f32 %v3964, %v3965
  %v3967 = vsub.f32 1.0, %v3966
  %v3968 = vmul.f32 %v3965, %v3967
  %v3969 = vadd.f32 %v3965, %v3968
  %vm3970 = vweird.f32 %v3964
  %vm3971 = vweird.f32 %v3965
  %vm3972 = vmor %vm3970, %vm3971
  %v3973 = vsel %vm3972, %v3965, %v3969
  %v3974 = vand.u32 2147483647, %v3964
  %vm3975 = vcmp.eq.f32.partialorder %v3974, 8.507059e+37
  %v3976 = vand.u32 %v3964, 2147483648
  %v3977 = vor.u32 1.1754944e-38, %v3976
  %v3978 = vsel %vm3975, %v3977, %v3973
  %v3979 = vmul.f32 1.0, %v3978
  %v3980 = vtanh.pop %v3960
  %v3981 = vmul.f32 %v3979, %v3922
  %3983 = vrot.lane.b32.xlu0 %v3980, 64
  %v3984 = vpop.permute.xlu0 %3983
  %v3986 = vmul.f32 %v3979, %v3984
  %3988 = vrot.lane.b32.xlu0 %v3986, 32
  %v3989 = vpop.permute.xlu0 %3988
  %v3991 = vadd.f32 %v3981, %v3989
  %v3992 = vtanh.pop %v3991
  %3994 = vrot.lane.b32.xlu0 %v3992, 64
  %v3995 = vpop.permute.xlu0 %3994
  %v3997 = vmul.f32 %v3979, %v3995
  %v3998 = vsel %vm3040, %v3687, %v3699
  %4000 = vrot.lane.b32.xlu0 %v3997, 32
  %v4001 = vpop.permute.xlu0 %4000
  %4003 = vrot.lane.b32.xlu0 %v3997, 64
  %v4004 = vpop.permute.xlu0 %4003
  %v4006 = vsel %vm3047, %v4001, %v4004
  %v4007 = vmul.f32 %v4006, %v3053
  %v4008 = vpack.c.bf16 %v4007, %v4007
  %v4010 = vsel %vm2659, %v4008, 0
  %4012 = vmatpush.bf16.msra.mxu0 0
  %4013 = vmatpush.bf16.msra.mxu0 0
  %4014 = vmatpush.bf16.msra.mxu0 0
  %4015 = vmatpush.bf16.msra.mxu0 0
  %4016 = vmatpush.bf16.msra.mxu0 %v3732
  %4017 = vmatpush.bf16.msra.mxu0 %v3731
  %4018 = vmatpush.bf16.msra.mxu0 %v3730
  %4019 = vmatpush.bf16.msra.mxu0 %v3729
  %4020 = vmatmul.bf16.gmra.mxu0 %v4010
  %v4021 = vpop.f32.mrf.mxu0
  %v4022 = vadd.f32 0.0, %v4021
  %v4023 = vpop.f32.mrf.mxu0
  %4024 = vdwg.mxu0
  %v4025 = vadd.f32 %v3998, %v4022
  %v4026 = vxor.u32 %v4025, 2147483648
  %v4027 = vmul.f32 %v4026, 1.442695
  %v4028 = vpow.pop %v4027
  %v4029 = vadd.f32 %v4028, 1.0
  %v4030 = vrcp.pop %v4029
  %v4031 = vmul.f32 %v4029, %v4030
  %v4032 = vsub.f32 1.0, %v4031
  %v4033 = vmul.f32 %v4030, %v4032
  %v4034 = vadd.f32 %v4030, %v4033
  %vm4035 = vweird.f32 %v4029
  %vm4036 = vweird.f32 %v4030
  %vm4037 = vmor %vm4035, %vm4036
  %v4038 = vsel %vm4037, %v4030, %v4034
  %v4039 = vand.u32 2147483647, %v4029
  %vm4040 = vcmp.eq.f32.partialorder %v4039, 8.507059e+37
  %v4041 = vand.u32 %v4029, 2147483648
  %v4042 = vor.u32 1.1754944e-38, %v4041
  %v4043 = vsel %vm4040, %v4042, %v4038
  %v4044 = vmul.f32 1.0, %v4043
  %v4045 = vtanh.pop %v4025
  %v4046 = vmul.f32 %v4044, %v3991
  %4048 = vrot.lane.b32.xlu0 %v4045, 64
  %v4049 = vpop.permute.xlu0 %4048
  %v4051 = vmul.f32 %v4044, %v4049
  %4053 = vrot.lane.b32.xlu0 %v4051, 32
  %v4054 = vpop.permute.xlu0 %4053
  %v4056 = vadd.f32 %v4046, %v4054
  %v4057 = vtanh.pop %v4056
  %4059 = vrot.lane.b32.xlu0 %v4057, 64
  %v4060 = vpop.permute.xlu0 %4059
  %v4062 = vmul.f32 %v4044, %v4060
  %v4064 = vrot.slane %v3687, 2
  %v4066 = vrot.slane %v3699, 6
  %v4068 = vsel %vm3040, %v4064, %v4066
  %4070 = vrot.lane.b32.xlu0 %v4062, 32
  %v4071 = vpop.permute.xlu0 %4070
  %4073 = vrot.lane.b32.xlu0 %v4062, 64
  %v4074 = vpop.permute.xlu0 %4073
  %v4076 = vsel %vm3047, %v4071, %v4074
  %v4077 = vmul.f32 %v4076, %v3053
  %v4078 = vpack.c.bf16 %v4077, %v4077
  %v4080 = vsel %vm2659, %v4078, 0
  %4082 = vmatpush.bf16.msra.mxu0 0
  %4083 = vmatpush.bf16.msra.mxu0 0
  %4084 = vmatpush.bf16.msra.mxu0 0
  %4085 = vmatpush.bf16.msra.mxu0 0
  %4086 = vmatpush.bf16.msra.mxu0 %v3732
  %4087 = vmatpush.bf16.msra.mxu0 %v3731
  %4088 = vmatpush.bf16.msra.mxu0 %v3730
  %4089 = vmatpush.bf16.msra.mxu0 %v3729
  %4090 = vmatmul.bf16.gmra.mxu0 %v4080
  %v4091 = vpop.f32.mrf.mxu0
  %v4092 = vadd.f32 0.0, %v4091
  %v4093 = vpop.f32.mrf.mxu0
  %4094 = vdwg.mxu0
  %v4095 = vadd.f32 %v4068, %v4092
  %v4096 = vxor.u32 %v4095, 2147483648
  %v4097 = vmul.f32 %v4096, 1.442695
  %v4098 = vpow.pop %v4097
  %v4099 = vadd.f32 %v4098, 1.0
  %v4100 = vrcp.pop %v4099
  %v4101 = vmul.f32 %v4099, %v4100
  %v4102 = vsub.f32 1.0, %v4101
  %v4103 = vmul.f32 %v4100, %v4102
  %v4104 = vadd.f32 %v4100, %v4103
  %vm4105 = vweird.f32 %v4099
  %vm4106 = vweird.f32 %v4100
  %vm4107 = vmor %vm4105, %vm4106
  %v4108 = vsel %vm4107, %v4100, %v4104
  %v4109 = vand.u32 2147483647, %v4099
  %vm4110 = vcmp.eq.f32.partialorder %v4109, 8.507059e+37
  %v4111 = vand.u32 %v4099, 2147483648
  %v4112 = vor.u32 1.1754944e-38, %v4111
  %v4113 = vsel %vm4110, %v4112, %v4108
  %v4114 = vmul.f32 1.0, %v4113
  %v4115 = vtanh.pop %v4095
  %v4116 = vmul.f32 %v4114, %v4056
  %4118 = vrot.lane.b32.xlu0 %v4115, 64
  %v4119 = vpop.permute.xlu0 %4118
  %v4121 = vmul.f32 %v4114, %v4119
  %4123 = vrot.lane.b32.xlu0 %v4121, 32
  %v4124 = vpop.permute.xlu0 %4123
  %v4126 = vadd.f32 %v4116, %v4124
  %v4127 = vtanh.pop %v4126
  %4129 = vrot.lane.b32.xlu0 %v4127, 64
  %v4130 = vpop.permute.xlu0 %4129
  %v4132 = vmul.f32 %v4114, %v4130
  %v4133 = vrot.slane %v3858, 6
  %v4135 = vrot.slane %v3928, 4
  %v4137 = vrot.slane %v3997, 2
  %v4140 = vrot.slane %v4132, 6
  %v4142 = vsel %vm3040, %v3787, %v4133
  %v4143 = vsel %vm3042, %v4142, %v4135
  %v4144 = vsel %vm3044, %v4143, %v4137
  %v4145 = vsel %vm3040, %v4062, %v4140
  %v4146 = vrot.slane %v4132, 2
  %v4148 = vrot.slane %v3997, 6
  %v4150 = vrot.slane %v3858, 2
  %v4152 = vsel %vm3040, %v4146, %v4062
  %v4153 = vsel %vm3042, %v4152, %v4148
  %v4154 = vsel %vm3044, %v4153, %v4135
  %v4155 = vsel %vm3040, %v4150, %v3787
  %4158 = vrot.lane.b32.xlu0 %v4144, 32
  %v4159 = vpop.permute.xlu0 %4158
  %4160 = vrot.lane.b32.xlu0 %v4145, 32
  %v4161 = vpop.permute.xlu0 %4160
  %4166 = vrot.lane.b32.xlu0 %v4154, 64
  %v4167 = vpop.permute.xlu0 %4166
  %4168 = vrot.lane.b32.xlu0 %v4155, 64
  %v4169 = vpop.permute.xlu0 %4168
  %v4172 = vsel %vm3047, %v4159, %v4167
  %v4173 = vsel %vm3047, %v4161, %v4169
  %4176 = vrot.lane.b32.xlu0 %v4172, 64
  %v4177 = vpop.permute.xlu0 %4176
  %4178 = vrot.lane.b32.xlu0 %v4173, 64
  %v4179 = vpop.permute.xlu0 %4178
  %v4182 = vsel %vm2659, %v3045, %v4177
  %v4183 = vsel %vm2659, %v3046, %v4179
  %4184 = vst [vmem:[%s9] sm:$0xff] %v4182
  %4185 = vst [vmem:[%s9 + $0x8] sm:$0xf] %v4183
  %v4186 = vrot.slane %v4172, 4
  %v4187 = vrot.slane %v4173, 4
  %v4188 = vsel %vm3042, %v4186, %v4187
  %v4191 = vsel %vm3042, %v3046, %v4186
  %v4192 = vpack.c.bf16 %v4191, %v3045
  %v4193 = vpack.c.bf16 %v4188, %v4188
  %v4194 = vld [vmem:[%s8] sm:$0xf]
  %v4195 = vld [vmem:[%s8 + $0x4] sm:$0xf]
  %v4196 = vld [vmem:[%s8 + $0x8] sm:$0xf]
  %v4197 = vld [vmem:[%s8 + $0xc] sm:$0xf]
  %v4198 = vld [vmem:[%s8 + $0x10] sm:$0xf]
  %v4199 = vld [vmem:[%s8 + $0x14] sm:$0xf]
  %v4200 = vld [vmem:[%s8 + $0x18] sm:$0xf]
  %v4201 = vld [vmem:[%s8 + $0x1c] sm:$0xf]
  %v4210 = vunpack.c.l.b16 %v4194
  %v4211 = vunpack.c.l.b16 %v4195
  %v4212 = vunpack.c.l.b16 %v4196
  %v4213 = vunpack.c.l.b16 %v4197
  %v4214 = vunpack.c.l.b16 %v4198
  %v4215 = vunpack.c.l.b16 %v4199
  %v4216 = vunpack.c.l.b16 %v4200
  %v4217 = vunpack.c.l.b16 %v4201
  %v4218 = vpack.c.b16 %v4211, %v4210
  %v4219 = vpack.c.b16 %v4213, %v4212
  %v4220 = vpack.c.b16 %v4215, %v4214
  %v4221 = vpack.c.b16 %v4217, %v4216
  %v4227 = vsel %vm2659, %v4192, 0
  %v4230 = vsel %vm2659, %v4193, 0
  %4232 = vmatpush.bf16.msra.mxu0 0
  %4233 = vmatpush.bf16.msra.mxu0 0
  %4234 = vmatpush.bf16.msra.mxu0 0
  %4235 = vmatpush.bf16.msra.mxu0 0
  %4236 = vmatpush.bf16.msra.mxu0 %v4221
  %4237 = vmatpush.bf16.msra.mxu0 %v4220
  %4238 = vmatpush.bf16.msra.mxu0 %v4219
  %4239 = vmatpush.bf16.msra.mxu0 %v4218
  %4240 = vmatmul.bf16.gmra.mxu0 %v4227
  %v4241 = vpop.f32.mrf.mxu0
  %v4242 = vadd.f32 0.0, %v4241
  %v4243 = vpop.f32.mrf.mxu0
  %v4244 = vadd.f32 0.0, %v4243
  %4245 = vmatmul.bf16.gmra.mxu0 %v4230
  %v4246 = vpop.f32.mrf.mxu0
  %v4247 = vadd.f32 0.0, %v4246
  %v4248 = vpop.f32.mrf.mxu0
  %4249 = vdwg.mxu0
  %4250 = vst.msk [vmem:[%s10] sm:$0xff] %vm3047, %v4242
  %4251 = vst.msk [vmem:[%s10 + $0x8] sm:$0xff] %vm3047, %v4244
  %4252 = vst.msk [vmem:[%s10 + $0x10] sm:$0xff] %vm3047, %v4247
  // Predicated region
  $region38: #{slr_forward.1} parent=0 // pred_check
    _
  $region39: #{slr_forward.1} parent=0 // pred_check_branch
    %4254 = sbr.rel (0) target = $region41
  $region40: #{slr_forward.1} parent=0 // pred_region
    _
  $region41: #{slr_forward.1} parent=0 // pred_fallthru
    _
  // Predicated region
  $region42: #{slr_forward.1} parent=0 // pred_check
    _
  $region43: #{slr_forward.1} parent=0 // pred_check_branch
    %4256 = sbr.rel (0) target = $region45
  $region44: #{slr_forward.1} parent=0 // pred_region
    _
  $region45: #{slr_forward.1} parent=0 // pred_fallthru
    _
  // Predicated region
  $region46: #{slr_forward.1} parent=0 // pred_check
    _
  $region47: #{slr_forward.1} parent=0 // pred_check_branch
    %4258 = sbr.rel (0) target = $region49
  $region48: #{slr_forward.1} parent=0 // pred_region
    _
  $region49: #{slr_forward.1} parent=0 // pred_fallthru
    _
  // Predicated region
  $region50: #{slr_forward.1} parent=0 // pred_check
    _
  $region51: #{slr_forward.1} parent=0 // pred_check_branch
    %4260 = sbr.rel (0) target = $region53
  $region52: #{slr_forward.1} parent=0 // pred_region
    _
  $region53: #{slr_forward.1} parent=0 // pred_fallthru
    _

</llo_original>
